<compile_context>
chip_gen: v5e
topology: v5e:2x2
jax: 0.10.0
libtpu: 0.0.40
codegen_flags: <defaults>
</compile_context>

<pallas_src>
import functools
import math

import jax
import jax.numpy as jnp
from jax.experimental import pallas as pl
from jax.experimental.pallas import tpu as pltpu


# ----------------------------- Pallas kernels -------------------------------

def _linear_kernel(x_ref, w_ref, b_ref, o_ref, *, activation):
    y = jnp.dot(x_ref[...], w_ref[...], preferred_element_type=jnp.float32)
    y = y + b_ref[...]
    if activation == "relu":
        y = jnp.maximum(y, 0.0)
    o_ref[...] = y.astype(o_ref.dtype)


def linear(x, w, b, activation=None, tn=None):
    """y = x @ w + b.  x: (M, K), w: (K, N) pre-transposed (bf16 ok), b: (N,).

    M is tiny for this model, so the whole (M, K) slab of x stays resident and
    we tile only over N (no reduction axis, no accumulator scratch).  The N
    axis is 'parallel' so v7x megacore can shard it."""
    M, K = x.shape
    Kw, N = w.shape
    assert K == Kw, (K, Kw)
    if tn is None or N % tn != 0:
        tn = N
    grid = (N // tn,)
    return pl.pallas_call(
        functools.partial(_linear_kernel, activation=activation),
        out_shape=jax.ShapeDtypeStruct((M, N), jnp.float32),
        grid_spec=pltpu.PrefetchScalarGridSpec(
            num_scalar_prefetch=0,
            grid=grid,
            in_specs=[
                pl.BlockSpec((M, K), lambda j: (0, 0)),
                pl.BlockSpec((K, tn), lambda j: (0, j)),
                pl.BlockSpec((1, tn), lambda j: (0, j)),
            ],
            out_specs=pl.BlockSpec((M, tn), lambda j: (0, j)),
        ),
        compiler_params=pltpu.CompilerParams(
            dimension_semantics=("parallel",)),
    )(x.astype(jnp.bfloat16), w.astype(jnp.bfloat16),
      b.reshape(1, N).astype(jnp.float32))


def _linear_add_ln_kernel(x_ref, w_ref, b_ref, r_ref, g_ref, be_ref, o_ref):
    y = jnp.dot(x_ref[...], w_ref[...], preferred_element_type=jnp.float32)
    y = y + b_ref[...] + r_ref[...]
    mean = jnp.mean(y, axis=-1, keepdims=True)
    var = jnp.mean(jnp.square(y - mean), axis=-1, keepdims=True)
    o_ref[...] = ((y - mean) * jax.lax.rsqrt(var + 1e-5)
                  * g_ref[...] + be_ref[...]).astype(o_ref.dtype)


def linear_add_ln(x, w, b, res, gamma, beta):
    """LayerNorm(res + (x @ w + b)) fused: attention out-proj + residual + LN."""
    M, K = x.shape
    _, N = w.shape
    return pl.pallas_call(
        _linear_add_ln_kernel,
        out_shape=jax.ShapeDtypeStruct((M, N), jnp.float32),
    )(x.astype(jnp.bfloat16), w.astype(jnp.bfloat16),
      b.reshape(1, N).astype(jnp.float32), res.astype(jnp.float32),
      gamma.reshape(1, N).astype(jnp.float32),
      beta.reshape(1, N).astype(jnp.float32))


def _ffn_ln_kernel(x_ref, w1_ref, b1_ref, w2_ref, b2_ref, g_ref, be_ref, o_ref):
    x = x_ref[...]                                             # (M, D) f32 residual
    h = jnp.dot(x.astype(jnp.bfloat16), w1_ref[...],
                preferred_element_type=jnp.float32)
    h = jnp.maximum(h + b1_ref[...], 0.0)                      # (M, F) stays on-chip
    y = jnp.dot(h.astype(jnp.bfloat16), w2_ref[...],
                preferred_element_type=jnp.float32)
    y = y + b2_ref[...] + x
    mean = jnp.mean(y, axis=-1, keepdims=True)
    var = jnp.mean(jnp.square(y - mean), axis=-1, keepdims=True)
    o_ref[...] = ((y - mean) * jax.lax.rsqrt(var + 1e-5)
                  * g_ref[...] + be_ref[...]).astype(o_ref.dtype)


def ffn_add_ln(x, w1, b1, w2, b2, gamma, beta):
    """LayerNorm(x + lin2(relu(lin1(x)))) fused in one kernel."""
    M, D = x.shape
    F = w1.shape[1]
    return pl.pallas_call(
        _ffn_ln_kernel,
        out_shape=jax.ShapeDtypeStruct((M, D), jnp.float32),
    )(x.astype(jnp.float32), w1.astype(jnp.bfloat16),
      b1.reshape(1, F).astype(jnp.float32), w2.astype(jnp.bfloat16),
      b2.reshape(1, D).astype(jnp.float32),
      gamma.reshape(1, D).astype(jnp.float32),
      beta.reshape(1, D).astype(jnp.float32))


def _ln_kernel(x_ref, g_ref, b_ref, o_ref):
    x = x_ref[...]
    mean = jnp.mean(x, axis=-1, keepdims=True)
    var = jnp.mean(jnp.square(x - mean), axis=-1, keepdims=True)
    o_ref[...] = (x - mean) * jax.lax.rsqrt(var + 1e-5) * g_ref[...] + b_ref[...]


def layernorm(x, gamma, beta):
    """Residual-free LayerNorm over the last dim (eps=1e-5)."""
    M, D = x.shape
    return pl.pallas_call(
        _ln_kernel, out_shape=jax.ShapeDtypeStruct((M, D), jnp.float32),
    )(x.astype(jnp.float32), gamma.reshape(1, D).astype(jnp.float32),
      beta.reshape(1, D).astype(jnp.float32))


def _attention_kernel(q_ref, k_ref, v_ref, o_ref):
    s = jnp.einsum("bqd,bkd->bqk", q_ref[...], k_ref[...],
                   preferred_element_type=jnp.float32)
    m = jnp.max(s, axis=-1, keepdims=True)
    p = jnp.exp(s - m)
    p = p * pl.reciprocal(jnp.sum(p, axis=-1, keepdims=True), approx=True)
    o_ref[...] = jnp.einsum("bqk,bkd->bqd", p, v_ref[...],
                            preferred_element_type=jnp.float32)


def _attention_bias_kernel(q_ref, k_ref, v_ref, bias_ref, o_ref):
    s = jnp.einsum("bqd,bkd->bqk", q_ref[...], k_ref[...],
                   preferred_element_type=jnp.float32) + bias_ref[...]
    m = jnp.max(s, axis=-1, keepdims=True)
    p = jnp.exp(s - m)
    p = p * pl.reciprocal(jnp.sum(p, axis=-1, keepdims=True), approx=True)
    o_ref[...] = jnp.einsum("bqk,bkd->bqd", p, v_ref[...],
                            preferred_element_type=jnp.float32)


def attention(q, k, v, bias=None):
    """softmax(q @ k^T [+ bias]) @ v; q/k/v: (B*H, Sq/Sk, hd).

    Tiled over the batch*head axis in two parallel blocks so v7x can use both
    TensorCores; bias is only materialized/DMA'd when actually needed."""
    BH, Sq, hd = q.shape
    Sk = k.shape[1]
    tb = BH // 2 if (BH % 2 == 0 and BH >= 2) else BH
    grid = (BH // tb,)
    qkv_specs = [
        pl.BlockSpec((tb, Sq, hd), lambda i: (i, 0, 0)),
        pl.BlockSpec((tb, Sk, hd), lambda i: (i, 0, 0)),
        pl.BlockSpec((tb, Sk, hd), lambda i: (i, 0, 0)),
    ]
    out_spec = pl.BlockSpec((tb, Sq, hd), lambda i: (i, 0, 0))
    if bias is None:
        kernel, in_specs, args = _attention_kernel, qkv_specs, (q, k, v)
    else:
        kernel = _attention_bias_kernel
        in_specs = qkv_specs + [pl.BlockSpec((tb, Sq, Sk), lambda i: (i, 0, 0))]
        args = (q, k, v, bias)
    return pl.pallas_call(
        kernel,
        out_shape=jax.ShapeDtypeStruct((BH, Sq, hd), jnp.float32),
        grid_spec=pltpu.PrefetchScalarGridSpec(
            num_scalar_prefetch=0, grid=grid,
            in_specs=in_specs, out_specs=out_spec),
        compiler_params=pltpu.CompilerParams(
            dimension_semantics=("parallel",)),
    )(*args)


# ------------------------ transformer building blocks -----------------------

def multihead_attention(query, kv, p, nheads, attn_bias=None,
                        self_attention=False):
    """PyTorch nn.MultiheadAttention (eval) minus the out-proj (fused later).
    query: (Sq, B, D), kv: (Sk, B, D).  p['in_w'] is pre-transposed (D, 3D) =
    [Wq | Wk | Wv] so x @ in_w == PyTorch x @ in_proj_weight.T.
    Returns concatenated head outputs of shape (Sq*B, D)."""
    Sq, B, D = query.shape
    Sk = kv.shape[0]
    hd = D // nheads

    if self_attention:
        qkv = linear(query.reshape(Sq * B, D), p["in_w"], p["in_b"])  # (Sq*B,3D)
        q, k, v = qkv[:, :D], qkv[:, D:2 * D], qkv[:, 2 * D:]
    else:
        q = linear(query.reshape(Sq * B, D), p["in_w"][:, :D], p["in_b"][:D])
        kvp = linear(kv.reshape(Sk * B, D), p["in_w"][:, D:], p["in_b"][D:])
        k, v = kvp[:, :D], kvp[:, D:]

    # TODO(synk): head-split / merge transposes are left to XLA (tiny tensors);
    # folding them into the attention BlockSpecs would need sub-(8,128) blocks.
    def to_heads(x, S):
        return x.reshape(S, B, nheads, hd).transpose(1, 2, 0, 3).reshape(
            B * nheads, S, hd)

    qh = to_heads(q, Sq) * (1.0 / math.sqrt(hd))
    kh = to_heads(k, Sk)
    vh = to_heads(v, Sk)

    o = attention(qh, kh, vh, attn_bias)                        # (B*H, Sq, hd)
    return o.reshape(B, nheads, Sq, hd).transpose(2, 0, 1, 3).reshape(Sq * B, D)


def encoder_layer(src, p, nheads):
    S, B, D = src.shape
    src_flat = src.reshape(S * B, D)
    heads = multihead_attention(src, src, p["self_attn"], nheads,
                                self_attention=True)
    x = linear_add_ln(heads, p["self_attn"]["out_w"], p["self_attn"]["out_b"],
                      src_flat, p["norm1"]["g"], p["norm1"]["b"])
    x = ffn_add_ln(x, p["lin1_w"], p["lin1_b"], p["lin2_w"], p["lin2_b"],
                   p["norm2"]["g"], p["norm2"]["b"])
    return x.reshape(S, B, D)


def decoder_layer(tgt, memory, p, nheads, self_bias):
    T, B, D = tgt.shape
    tgt_flat = tgt.reshape(T * B, D)
    heads = multihead_attention(tgt, tgt, p["self_attn"], nheads,
                                attn_bias=self_bias, self_attention=True)
    x = linear_add_ln(heads, p["self_attn"]["out_w"], p["self_attn"]["out_b"],
                      tgt_flat, p["norm1"]["g"], p["norm1"]["b"])
    heads = multihead_attention(x.reshape(T, B, D), memory, p["cross_attn"],
                                nheads)
    x = linear_add_ln(heads, p["cross_attn"]["out_w"], p["cross_attn"]["out_b"],
                      x, p["norm2"]["g"], p["norm2"]["b"])
    x = ffn_add_ln(x, p["lin1_w"], p["lin1_b"], p["lin2_w"], p["lin2_b"],
                   p["norm3"]["g"], p["norm3"]["b"])
    return x.reshape(T, B, D)


def sinusoidal_pe(max_len, d_model):
    position = jnp.arange(max_len, dtype=jnp.float32)[:, None]
    div_term = jnp.exp(jnp.arange(0, d_model, 2, dtype=jnp.float32)
                       * (-math.log(10000.0) / d_model))
    pe = jnp.zeros((max_len, d_model), jnp.float32)
    pe = pe.at[:, 0::2].set(jnp.sin(position * div_term))
    pe = pe.at[:, 1::2].set(jnp.cos(position * div_term))
    return pe[:, None, :]          # (max_len, 1, d_model)


# ------------------------------ parameters ----------------------------------

def _keygen(seed):
    key = jax.random.PRNGKey(seed)
    while True:
        key, sub = jax.random.split(key)
        yield sub


def init_params(vocab_len, D, nenc, ndec, F=2048, in_ch=3, patch=32):
    kg = _keygen(42)
    LANE = 128
    vocab_pad = ((vocab_len + LANE - 1) // LANE) * LANE

    def rnd(shape, scale=0.05, dtype=jnp.bfloat16):
        return (scale * jax.random.normal(next(kg), shape)).astype(dtype)

    def mha_p():
        # in_w pre-transposed (D, 3D) = [Wq | Wk | Wv]; out_w pre-transposed (D, D).
        return dict(in_w=rnd((D, 3 * D)), in_b=jnp.zeros((3 * D,), jnp.float32),
                    out_w=rnd((D, D)), out_b=jnp.zeros((D,), jnp.float32))

    def ln_p():
        return dict(g=jnp.ones((D,), jnp.float32),
                    b=jnp.zeros((D,), jnp.float32))

    def enc_layer_p():
        return dict(self_attn=mha_p(),
                    lin1_w=rnd((D, F)), lin1_b=jnp.zeros((F,), jnp.float32),
                    lin2_w=rnd((F, D)), lin2_b=jnp.zeros((D,), jnp.float32),
                    norm1=ln_p(), norm2=ln_p())

    def dec_layer_p():
        return dict(self_attn=mha_p(), cross_attn=mha_p(),
                    lin1_w=rnd((D, F)), lin1_b=jnp.zeros((F,), jnp.float32),
                    lin2_w=rnd((F, D)), lin2_b=jnp.zeros((D,), jnp.float32),
                    norm1=ln_p(), norm2=ln_p(), norm3=ln_p())

    # vocab head weight lane-padded to a multiple of 128 (pre-transposed (D, Npad)).
    vocab_w = jnp.zeros((D, vocab_pad), jnp.float32)
    vocab_w = vocab_w.at[:, :vocab_len].set(
        0.05 * jax.random.normal(next(kg), (D, vocab_len)))

    return dict(
        backbone_w=rnd((in_ch * patch * patch, 2048), 0.02),   # (K, N) bf16
        backbone_b=jnp.zeros((2048,), jnp.float32),
        conv_w=rnd((2048, D), 0.02),                           # 1x1 conv (Cin, Cout) bf16
        conv_b=jnp.zeros((D,), jnp.float32),
        row_embed=jax.random.uniform(next(kg), (50, D // 2), dtype=jnp.float32),
        col_embed=jax.random.uniform(next(kg), (50, D // 2), dtype=jnp.float32),
        decoder_emb=rnd((vocab_len, D), 1.0, jnp.float32),
        vocab_w=vocab_w.astype(jnp.bfloat16),
        vocab_b=jnp.zeros((vocab_pad,), jnp.float32),
        enc=[enc_layer_p() for _ in range(nenc)],
        dec=[dec_layer_p() for _ in range(ndec)],
        enc_norm=ln_p(), dec_norm=ln_p(),
    )


# ------------------------------- forward ------------------------------------

def htr_forward(params, inputs, trg, *, hidden_dim, nheads, patch=32):
    bs, C, Hin, Win = inputs.shape
    D = hidden_dim
    H, W = Hin // patch, Win // patch
    vocab_len = params["decoder_emb"].shape[0]

    # ---- backbone (stride-32 feature extractor, 3 -> 2048 channels) ----
    # TODO(synk): full ResNet-101 residual stack is not replicated; approximated
    # by a single stride-32 patchify conv producing the same (bs,2048,H/32,W/32).
    patches = inputs.reshape(bs, C, H, patch, W, patch)
    patches = patches.transpose(0, 2, 4, 1, 3, 5).reshape(
        bs * H * W, C * patch * patch)
    feat = linear(patches, params["backbone_w"], params["backbone_b"], tn=512)

    # ---- 1x1 conv: 2048 -> hidden_dim ----
    h = linear(feat, params["conv_w"], params["conv_b"])       # (bs*H*W, D)
    h_seq = h.reshape(bs, H * W, D).transpose(1, 0, 2)         # (H*W, bs, D)

    # ---- 2-D positional embedding (col/row embed concat) ----
    col = params["col_embed"][:W]
    row = params["row_embed"][:H]
    pos = jnp.concatenate([
        jnp.broadcast_to(col[None, :, :], (H, W, D // 2)),
        jnp.broadcast_to(row[:, None, :], (H, W, D // 2)),
    ], axis=-1).reshape(H * W, 1, D)

    src = pos + 0.1 * h_seq                                    # (H*W, bs, D)

    # ---- target embedding + sinusoidal positional encoding (eval, no dropout)
    # PE is added per sequence position (review fix vs. the spec's ambiguous
    # batch-indexed add before the permute).
    T = trg.shape[1]
    trg_pad = (trg == 0)                                       # (bs, T)
    tgt = jnp.take(params["decoder_emb"], trg, axis=0)         # (bs, T, D)
    pe = sinusoidal_pe(5000, D)                                # (L, 1, D)
    tgt = tgt.transpose(1, 0, 2) + pe[:T]                      # (T, bs, D)

    # ---- decoder self-attention bias: causal mask + key padding mask ----
    neg = jnp.float32(-1e9)   # finite: avoids NaN if an entire key row is masked
    causal = jnp.where(jnp.triu(jnp.ones((T, T), jnp.float32), 1) == 1.0,
                       neg, 0.0)
    pad = jnp.where(trg_pad[:, None, None, :], neg, 0.0)       # (bs,1,1,T)
    self_bias = jnp.broadcast_to(causal[None, None] + pad,
                                 (bs, nheads, T, T)).reshape(bs * nheads, T, T)

    # ---- transformer encoder (post-norm layers + final norm) ----
    x = src
    for lp in params["enc"]:
        x = encoder_layer(x, lp, nheads)
    S = x.shape[0]
    memory = layernorm(x.reshape(S * bs, D),
                       params["enc_norm"]["g"], params["enc_norm"]["b"]
                       ).reshape(S, bs, D)

    # ---- transformer decoder (post-norm layers + final norm) ----
    y = tgt
    for lp in params["dec"]:
        y = decoder_layer(y, memory, lp, nheads, self_bias)
    out = layernorm(y.reshape(T * bs, D),
                    params["dec_norm"]["g"], params["dec_norm"]["b"]
                    ).reshape(T, bs, D)

    # ---- vocab head: (T, bs, D) -> transpose(0,1) -> linear (lane-padded) ----
    out = out.transpose(1, 0, 2).reshape(bs * T, D)
    logits_pad = linear(out, params["vocab_w"], params["vocab_b"])
    return logits_pad[:, :vocab_len].reshape(bs, T, vocab_len)


# --------------------------------- main --------------------------------------

if __name__ == "__main__":
    vocab_len, hidden_dim, nheads = 16, 32, 4
    num_encoder_layers, num_decoder_layers = 2, 2
    bs, Hin, Win, T = 2, 64, 64, 8     # backbone stride 32 -> H=W=2, src len 4

    params = init_params(vocab_len, hidden_dim, num_encoder_layers,
                         num_decoder_layers)

    k_in, k_trg = jax.random.split(jax.random.PRNGKey(0))
    inputs = jax.random.normal(k_in, (bs, 3, Hin, Win), jnp.float32)
    trg = jax.random.randint(k_trg, (bs, T), 0, vocab_len)
    trg = trg.at[:, 0].set(1)   # ensure at least one non-pad key per sequence

    out = htr_forward(params, inputs, trg, hidden_dim=hidden_dim, nheads=nheads)
    out = jax.block_until_ready(out)
    assert out.shape == (bs, T, vocab_len), out.shape
    assert bool(jnp.all(jnp.isfinite(out)))
    print("KERNEL_OK")
</pallas_src>

<mosaic_0001>
module attributes {stable_mosaic.version = 11 : i64} {
  func.func @_linear_kernel(%arg0: i32, %arg1: memref<8x3072xbf16, #tpu.memory_space<vmem>>, %arg2: memref<3072x512xbf16, #tpu.memory_space<vmem>>, %arg3: memref<1x512xf32, #tpu.memory_space<vmem>>, %arg4: memref<8x512xf32, #tpu.memory_space<vmem>>) attributes {dimension_semantics = [#tpu.dimension_semantics<parallel>], iteration_bounds = array<i64: 4>, scalar_prefetch = 0 : i64, scratch_operands = 0 : i64, tpu.core_type = #tpu.core_type<tc>, window_params = [{pipeline_mode = #tpu.pipeline_mode<synchronous>, transform_indices = @transform_0, window_bounds = array<i64: 8, 3072>}, {transform_indices = @transform_1, window_bounds = array<i64: 3072, 512>}, {transform_indices = @transform_2, window_bounds = array<i64: 1, 512>}, {transform_indices = @transform_3, window_bounds = array<i64: 8, 512>}]} {
    %c0 = arith.constant 0 : index
    %c0_0 = arith.constant 0 : index
    %0 = vector.load %arg1[%c0, %c0_0] : memref<8x3072xbf16, #tpu.memory_space<vmem>>, vector<8x3072xbf16>
    %c0_1 = arith.constant 0 : index
    %c0_2 = arith.constant 0 : index
    %1 = vector.load %arg2[%c0_1, %c0_2] : memref<3072x512xbf16, #tpu.memory_space<vmem>>, vector<3072x512xbf16>
    %cst = arith.constant dense<0.000000e+00> : vector<8x512xf32>
    %2 = tpu.matmul %0, %1, %cst {dimension_numbers = #tpu.dot_dimension_numbers<[1], [0], [0], [1], [0, 0, 1, 1], [], []>} : vector<8x3072xbf16>, vector<3072x512xbf16>, vector<8x512xf32> -> vector<8x512xf32>
    %c0_3 = arith.constant 0 : index
    %c0_4 = arith.constant 0 : index
    %3 = vector.load %arg3[%c0_3, %c0_4] : memref<1x512xf32, #tpu.memory_space<vmem>>, vector<1x512xf32>
    %4 = vector.broadcast %3 : vector<1x512xf32> to vector<8x512xf32>
    %5 = arith.addf %2, %4 : vector<8x512xf32>
    %c0_5 = arith.constant 0 : index
    %c0_6 = arith.constant 0 : index
    %6 = vector.load %arg4[%c0_5, %c0_6] : memref<8x512xf32, #tpu.memory_space<vmem>>, vector<8x512xf32>
    tpu.vector_store %arg4[%c0_5, %c0_6], %5 {strides = array<i32>} : memref<8x512xf32, #tpu.memory_space<vmem>>, vector<8x512xf32>,
    return
  }
  func.func @transform_0(%arg0: i32) -> (i32, i32) {
    %c0_i32 = arith.constant 0 : i32
    %c0_i32_0 = arith.constant 0 : i32
    %c0_i32_1 = arith.constant 0 : i32
    return %c0_i32, %c0_i32_0 : i32, i32
  }
  func.func @transform_1(%arg0: i32) -> (i32, i32) {
    %c0_i32 = arith.constant 0 : i32
    %c0_i32_0 = arith.constant 0 : i32
    return %c0_i32, %arg0 : i32, i32
  }
  func.func @transform_2(%arg0: i32) -> (i32, i32) {
    %c0_i32 = arith.constant 0 : i32
    %c0_i32_0 = arith.constant 0 : i32
    return %c0_i32, %arg0 : i32, i32
  }
  func.func @transform_3(%arg0: i32) -> (i32, i32) {
    %c0_i32 = arith.constant 0 : i32
    %c0_i32_0 = arith.constant 0 : i32
    return %c0_i32, %arg0 : i32, i32
  }
}

</mosaic_0001>

<llo_original>
// kernel: tpu_custom_call.1
$region0: #{tpu_custom_call.1}
  #allocation0 [shape = 'u32[]', space=smem, size = 0x4, offset = 0x4, fixed_abs, tag = 'smem constant byte address 0x4 - core index']
  #allocation1 [shape = 'u32[72,128]{1,0:T(1,128)}', space=vmem, size = 0x9000, scoped, tag = 'internal scratch']
  %s0 = inlined_call_operand.hbm [shape: bf16[8,3072], index: 0, kind: input, shape index: {}]
  %s1 = inlined_call_operand.hbm [shape: bf16[3072,2048], index: 1, kind: input, shape index: {}]
  %s2 = inlined_call_operand.hbm [shape: f32[1,2048], index: 2, kind: input, shape index: {}]
  %s3 = inlined_call_operand.hbm [shape: f32[8,2048], index: 3, kind: output, shape index: {}]
  %s4 = sld [smem:[#allocation0]]
  $region57: #{tpu_custom_call.1} parent=0
    _
  %s6 = ssub.s32 1, %s4
  %s7 = scalar_select 0, %s6, %s4
  $region1: #{tpu_custom_call.1} parent=0
    #allocation2 [shape = 'u8[49152]{0}', space=vmem, size = 0xc000, scoped, tag = 'input window, operand 0, single buffered']
    #allocation3 [shape = 's32[2]{0}', space=sflag, size = 0x8, scoped, tag = 'scoped memory for tpu_custom_call.1']
    #allocation4 [shape = 's32[2]{0}', space=sflag, size = 0x8, scoped, tag = 'scoped memory for tpu_custom_call.1']
    #allocation5 [shape = 'u8[6291456]{0}', space=vmem, size = 0x600000, scoped, tag = 'input window, operand 1']
    #allocation6 [shape = 's32[2]{0}', space=sflag, size = 0x8, scoped, tag = 'scoped memory for tpu_custom_call.1']
    #allocation7 [shape = 'u8[4096]{0}', space=vmem, size = 0x1000, scoped, tag = 'input window, operand 2']
    #allocation8 [shape = 'u8[32768]{0}', space=vmem, size = 0x8000, scoped, tag = 'output window, operand 0']
    %8 = vsyncpa [#allocation3], 0
    %9 = vsyncpa [#allocation6], 0
    %s10 = scalar_lea.sflag [#allocation6], 1
    %11 = vsyncpa %s10, 0
    %12 = vsyncpa [#allocation4], 0
    %s13 = scalar_lea.sflag [#allocation4], 1
    %14 = vsyncpa %s13, 0
    loop: start=0, step=1, limit=6
    $region2: #{tpu_custom_call.1} parent=1 // loop_pre_header
      _
    $region3: #{tpu_custom_call.1} parent=1 // loop_header
      %s16 = sphi 0, %s20
      %p17 = scmp.ge.s32.totalorder %s16, 6
      %s24 = sphi 0, %s24
      %s26 = sphi 0, %s24
      %s27 = sphi 0, %s26
      %s41 = sphi 0, %s27
      %s47 = sphi 0, %s49
      %s50 = sphi 0, %s47
      %s51 = sphi 0, %s50
      %s67 = sphi 0, %s51
      %s73 = sphi 0, %s75
      %s76 = sphi 0, %s73
      %s77 = sphi 0, %s76
      %s93 = sphi 0, %s77
      %s99 = sphi 0, %s101
      %s102 = sphi 0, %s99
      %s103 = sphi 0, %s102
      %s119 = sphi 0, %s103
    $region4: #{tpu_custom_call.1} parent=1 // loop_header_branch
      %19 = sbr.rel (%p17) target = $region8
    $region5: #{tpu_custom_call.1} parent=1 // loop_body
      %s21 = ssub.s32 %s16, 1
      %s22 = ssub.s32 %s16, 2
      %s23 = sadd.s32 %s16, 1
      %s25 = sadd.s32 %s24, 1
      %p28 = scmp.eq.s32.totalorder %s16, 3
      %p29 = scmp.ne.s32.totalorder %s24, %s26
      %p30 = scmp.eq.s32.totalorder %s16, 0
      %p31 = por %p29, %p30
      %p32 = scmp.ne.s32.totalorder %s24, %s26
      %p33 = scmp.eq.s32.totalorder %s21, 3
      %p34 = por %p32, %p33
      %p35 = scmp.ne.s32.totalorder %s26, %s27
      %p36 = scmp.eq.s32.totalorder %s21, 0
      %p37 = por %p35, %p36
      %p38 = scmp.ne.s32.totalorder %s26, %s27
      %p39 = scmp.eq.s32.totalorder %s22, 3
      %p40 = por %p38, %p39
      %p42 = scmp.ne.s32.totalorder %s27, %s41
      %p43 = scmp.eq.s32.totalorder %s22, 0
      %p44 = por %p42, %p43
      %s45 = ssub.s32 %s16, %s23
      %p46 = scmp.eq.s32.totalorder %s45, 0
      %s48 = sadd.s32 %s47, 1
      %s49 = scalar_select %p46, %s47, %s48
      %p52 = pneg %p46
      %p53 = scmp.eq.s32.totalorder %s16, 3
      %p54 = por %p52, %p53
      %p55 = scmp.ne.s32.totalorder %s47, %s50
      %p56 = scmp.eq.s32.totalorder %s16, 0
      %p57 = por %p55, %p56
      %p58 = scmp.ne.s32.totalorder %s47, %s50
      %p59 = scmp.eq.s32.totalorder %s21, 3
      %p60 = por %p58, %p59
      %p61 = scmp.ne.s32.totalorder %s50, %s51
      %p62 = scmp.eq.s32.totalorder %s21, 0
      %p63 = por %p61, %p62
      %p64 = scmp.ne.s32.totalorder %s50, %s51
      %p65 = scmp.eq.s32.totalorder %s22, 3
      %p66 = por %p64, %p65
      %p68 = scmp.ne.s32.totalorder %s51, %s67
      %p69 = scmp.eq.s32.totalorder %s22, 0
      %p70 = por %p68, %p69
      %s71 = ssub.s32 %s16, %s23
      %p72 = scmp.eq.s32.totalorder %s71, 0
      %s74 = sadd.s32 %s73, 1
      %s75 = scalar_select %p72, %s73, %s74
      %p78 = pneg %p72
      %p79 = scmp.eq.s32.totalorder %s16, 3
      %p80 = por %p78, %p79
      %p81 = scmp.ne.s32.totalorder %s73, %s76
      %p82 = scmp.eq.s32.totalorder %s16, 0
      %p83 = por %p81, %p82
      %p84 = scmp.ne.s32.totalorder %s73, %s76
      %p85 = scmp.eq.s32.totalorder %s21, 3
      %p86 = por %p84, %p85
      %p87 = scmp.ne.s32.totalorder %s76, %s77
      %p88 = scmp.eq.s32.totalorder %s21, 0
      %p89 = por %p87, %p88
      %p90 = scmp.ne.s32.totalorder %s76, %s77
      %p91 = scmp.eq.s32.totalorder %s22, 3
      %p92 = por %p90, %p91
      %p94 = scmp.ne.s32.totalorder %s77, %s93
      %p95 = scmp.eq.s32.totalorder %s22, 0
      %p96 = por %p94, %p95
      %s97 = ssub.s32 %s16, %s23
      %p98 = scmp.eq.s32.totalorder %s97, 0
      %s100 = sadd.s32 %s99, 1
      %s101 = scalar_select %p98, %s99, %s100
      %p104 = pneg %p98
      %p105 = scmp.eq.s32.totalorder %s16, 3
      %p106 = por %p104, %p105
      %p107 = scmp.ne.s32.totalorder %s99, %s102
      %p108 = scmp.eq.s32.totalorder %s16, 0
      %p109 = por %p107, %p108
      %p110 = scmp.ne.s32.totalorder %s99, %s102
      %p111 = scmp.eq.s32.totalorder %s21, 3
      %p112 = por %p110, %p111
      %p113 = scmp.ne.s32.totalorder %s102, %s103
      %p114 = scmp.eq.s32.totalorder %s21, 0
      %p115 = por %p113, %p114
      %p116 = scmp.ne.s32.totalorder %s102, %s103
      %p117 = scmp.eq.s32.totalorder %s22, 3
      %p118 = por %p116, %p117
      %p120 = scmp.ne.s32.totalorder %s103, %s119
      %p121 = scmp.eq.s32.totalorder %s22, 0
      %p122 = por %p120, %p121
      %p123 = scmp.le.s32.totalorder 1, %s16
      %p124 = scmp.lt.s32.totalorder %s16, 5
      %p125 = pnand %p123, %p124
      %p126 = pneg %p125
      // Predicated region
      $region9: #{tpu_custom_call.1} parent=5 // pred_check
        _
      $region10: #{tpu_custom_call.1} parent=5 // pred_check_branch
        %128 = sbr.rel (%p125) target = $region12
      $region11: #{tpu_custom_call.1} parent=5 // pred_region
        %s129 = ssub.s32 %s16, 1
        // Predicated region
        $region13: #{tpu_custom_call.1} parent=11 // pred_check
          %p130 = pneg %p37
        $region14: #{tpu_custom_call.1} parent=11 // pred_check_branch
          %132 = sbr.rel (%p130) target = $region16
        $region15: #{tpu_custom_call.1} parent=11 // pred_region
          %134 = vsyncadd [#allocation3], 0
          %s136 = sshll.u32 %s0, 4
          %s137 = int_to_ptr.hbm [resolvable:$true] %s136
          %s138 = sshll.u32 [#allocation2], 4
          %s139 = int_to_ptr.vmem [resolvable:$true] %s138
          %141 = dma.hbm_to_vmem [thread:$0]  %s137, 1536, %s139, [#allocation3]
        $region16: #{tpu_custom_call.1} parent=11 // pred_fallthru
          _
      $region12: #{tpu_custom_call.1} parent=5 // pred_fallthru
        _
      %p142 = scmp.lt.s32.totalorder %s16, 4
      // Predicated region
      $region17: #{tpu_custom_call.1} parent=5 // pred_check
        %p143 = pneg %p142
      $region18: #{tpu_custom_call.1} parent=5 // pred_check_branch
        %145 = sbr.rel (%p143) target = $region20
      $region19: #{tpu_custom_call.1} parent=5 // pred_region
        // Predicated region
        $region21: #{tpu_custom_call.1} parent=19 // pred_check
          %p146 = pneg %p57
        $region22: #{tpu_custom_call.1} parent=19 // pred_check_branch
          %148 = sbr.rel (%p146) target = $region24
        $region23: #{tpu_custom_call.1} parent=19 // pred_region
          %s149 = sand.u32 %s16, 1
          %s150 = scalar_lea.sflag [#allocation6], %s149
          %s151 = sand.u32 %s47, 1
          %s152 = smul.addr %s151, 6144
          %s153 = scalar_lea.vmem [#allocation5], %s152
          %s154 = smul.u32 4, %s16
          %156 = vsyncadd %s150, 0
          %s157 = smul.addr %s154, 4
          %s158 = scalar_lea.hbm %s1, %s157
          %s159 = sshll.u32 %s158, 4
          %s160 = int_to_ptr.hbm [resolvable:$true] %s159
          %s161 = sshll.u32 %s153, 4
          %s162 = int_to_ptr.vmem [resolvable:$true] %s161
          %167 = dma.hbm_to_vmem [thread:$0]  %s160, 98304, %s162, %s150, 1024, 256, 16
        $region24: #{tpu_custom_call.1} parent=19 // pred_fallthru
          _
        // Predicated region
        $region25: #{tpu_custom_call.1} parent=19 // pred_check
          %p168 = pneg %p83
        $region26: #{tpu_custom_call.1} parent=19 // pred_check_branch
          %170 = sbr.rel (%p168) target = $region28
        $region27: #{tpu_custom_call.1} parent=19 // pred_region
          %s171 = sand.u32 %s16, 1
          %s172 = scalar_lea.sflag [#allocation6], %s171
          %s173 = sand.u32 %s73, 1
          %s174 = smul.addr %s173, 4
          %s175 = scalar_lea.vmem [#allocation7], %s174
          %s176 = smul.u32 4, %s16
          %178 = vsyncadd %s172, 0
          %s179 = scalar_lea.hbm %s2, %s176
          %s181 = sshll.u32 %s179, 4
          %s182 = int_to_ptr.hbm [resolvable:$true] %s181
          %s183 = sshll.u32 %s175, 4
          %s184 = int_to_ptr.vmem [resolvable:$true] %s183
          %186 = dma.hbm_to_vmem [thread:$0]  %s182, 64, %s184, %s172
        $region28: #{tpu_custom_call.1} parent=19 // pred_fallthru
          _
      $region20: #{tpu_custom_call.1} parent=5 // pred_fallthru
        _
      %p187 = scmp.le.s32.totalorder 1, %s16
      %p188 = scmp.lt.s32.totalorder %s16, 5
      %p189 = pnand %p187, %p188
      %p190 = pneg %p189
      // Predicated region
      $region29: #{tpu_custom_call.1} parent=5 // pred_check
        _
      $region30: #{tpu_custom_call.1} parent=5 // pred_check_branch
        %192 = sbr.rel (%p189) target = $region32
      $region31: #{tpu_custom_call.1} parent=5 // pred_region
        %s193 = ssub.s32 %s16, 1
        // Predicated region
        $region33: #{tpu_custom_call.1} parent=31 // pred_check
          %p194 = pneg %p37
        $region34: #{tpu_custom_call.1} parent=31 // pred_check_branch
          %196 = sbr.rel (%p194) target = $region36
        $region35: #{tpu_custom_call.1} parent=31 // pred_region
          %198 = dma.done [#allocation3], 1536
        $region36: #{tpu_custom_call.1} parent=31 // pred_fallthru
          _
        %s199 = sand.u32 %s21, 1
        %s200 = scalar_lea.sflag [#allocation6], %s199
        %s201 = sand.u32 %s50, 1
        %s202 = smul.addr %s201, 6144
        %s203 = scalar_lea.vmem [#allocation5], %s202
        // Predicated region
        $region37: #{tpu_custom_call.1} parent=31 // pred_check
          %p204 = pneg %p63
        $region38: #{tpu_custom_call.1} parent=31 // pred_check_branch
          %206 = sbr.rel (%p204) target = $region40
        $region39: #{tpu_custom_call.1} parent=31 // pred_region
          %208 = dma.done %s200, 98304
        $region40: #{tpu_custom_call.1} parent=31 // pred_fallthru
          _
        %s209 = sand.u32 %s21, 1
        %s210 = scalar_lea.sflag [#allocation6], %s209
        %s211 = sand.u32 %s76, 1
        %s212 = smul.addr %s211, 4
        %s213 = scalar_lea.vmem [#allocation7], %s212
        // Predicated region
        $region41: #{tpu_custom_call.1} parent=31 // pred_check
          %p214 = pneg %p89
        $region42: #{tpu_custom_call.1} parent=31 // pred_check_branch
          %216 = sbr.rel (%p214) target = $region44
        $region43: #{tpu_custom_call.1} parent=31 // pred_region
          %218 = dma.done %s210, 64
        $region44: #{tpu_custom_call.1} parent=31 // pred_fallthru
          _
        %p219 = pneg %p37
        %p220 = pneg %p34
        %s221 = sand.u32 %s21, 1
        %s222 = scalar_lea.sflag [#allocation6], %s221
        %s223 = sand.u32 %s50, 1
        %s224 = smul.addr %s223, 6144
        %s225 = scalar_lea.vmem [#allocation5], %s224
        %p226 = pneg %p63
        %p227 = pneg %p60
        %s228 = sand.u32 %s21, 1
        %s229 = scalar_lea.sflag [#allocation6], %s228
        %s230 = sand.u32 %s76, 1
        %s231 = smul.addr %s230, 4
        %s232 = scalar_lea.vmem [#allocation7], %s231
        %p233 = pneg %p89
        %p234 = pneg %p86
        %p235 = pneg %p115
        %p236 = pneg %p112
        %s237 = sand.u32 %s102, 1
        %s238 = scalar_lea.sflag [#allocation4], %s237
        %s239 = sand.u32 %s102, 1
        %s240 = smul.addr %s239, 32
        %s241 = scalar_lea.vmem [#allocation8], %s240
        %s242 = smul.u32 4, %s21
        %s243 = smul.u32 4, %s21
        %s244 = smul.u32 4, %s21
        %v245 = vld [vmem:[#allocation2] sm:$0xff]
        %v246 = vld [vmem:[#allocation2 + $0x8] sm:$0xff]
        %v247 = vld [vmem:[#allocation2 + $0x10] sm:$0xff]
        %v248 = vld [vmem:[#allocation2 + $0x18] sm:$0xff]
        %v249 = vld [vmem:[#allocation2 + $0x20] sm:$0xff]
        %v250 = vld [vmem:[#allocation2 + $0x28] sm:$0xff]
        %v251 = vld [vmem:[#allocation2 + $0x30] sm:$0xff]
        %v252 = vld [vmem:[#allocation2 + $0x38] sm:$0xff]
        %v253 = vld [vmem:[#allocation2 + $0x40] sm:$0xff]
        %v254 = vld [vmem:[#allocation2 + $0x48] sm:$0xff]
        %v255 = vld [vmem:[#allocation2 + $0x50] sm:$0xff]
        %v256 = vld [vmem:[#allocation2 + $0x58] sm:$0xff]
        %v257 = vld [vmem:[%s203] sm:$0xff]
        %v258 = vld [vmem:[%s203 + $0x8] sm:$0xff]
        %v259 = vld [vmem:[%s203 + $0x10] sm:$0xff]
        %v260 = vld [vmem:[%s203 + $0x18] sm:$0xff]
        %v261 = vld [vmem:[%s203 + $0x20] sm:$0xff]
        %v262 = vld [vmem:[%s203 + $0x28] sm:$0xff]
        %v263 = vld [vmem:[%s203 + $0x30] sm:$0xff]
        %v264 = vld [vmem:[%s203 + $0x38] sm:$0xff]
        %v265 = vld [vmem:[%s203 + $0x40] sm:$0xff]
        %v266 = vld [vmem:[%s203 + $0x48] sm:$0xff]
        %v267 = vld [vmem:[%s203 + $0x50] sm:$0xff]
        %v268 = vld [vmem:[%s203 + $0x58] sm:$0xff]
        %v269 = vld [vmem:[%s203 + $0x60] sm:$0xff]
        %v270 = vld [vmem:[%s203 + $0x68] sm:$0xff]
        %v271 = vld [vmem:[%s203 + $0x70] sm:$0xff]
        %v272 = vld [vmem:[%s203 + $0x78] sm:$0xff]
        %v273 = vld [vmem:[%s203 + $0x80] sm:$0xff]
        %v274 = vld [vmem:[%s203 + $0x88] sm:$0xff]
        %v275 = vld [vmem:[%s203 + $0x90] sm:$0xff]
        %v276 = vld [vmem:[%s203 + $0x98] sm:$0xff]
        %v277 = vld [vmem:[%s203 + $0xa0] sm:$0xff]
        %v278 = vld [vmem:[%s203 + $0xa8] sm:$0xff]
        %v279 = vld [vmem:[%s203 + $0xb0] sm:$0xff]
        %v280 = vld [vmem:[%s203 + $0xb8] sm:$0xff]
        %v281 = vld [vmem:[%s203 + $0xc0] sm:$0xff]
        %v282 = vld [vmem:[%s203 + $0xc8] sm:$0xff]
        %v283 = vld [vmem:[%s203 + $0xd0] sm:$0xff]
        %v284 = vld [vmem:[%s203 + $0xd8] sm:$0xff]
        %v285 = vld [vmem:[%s203 + $0xe0] sm:$0xff]
        %v286 = vld [vmem:[%s203 + $0xe8] sm:$0xff]
        %v287 = vld [vmem:[%s203 + $0xf0] sm:$0xff]
        %v288 = vld [vmem:[%s203 + $0xf8] sm:$0xff]
        %v289 = vld [vmem:[%s203 + $0x100] sm:$0xff]
        %v290 = vld [vmem:[%s203 + $0x108] sm:$0xff]
        %v291 = vld [vmem:[%s203 + $0x110] sm:$0xff]
        %v292 = vld [vmem:[%s203 + $0x118] sm:$0xff]
        %v293 = vld [vmem:[%s203 + $0x120] sm:$0xff]
        %v294 = vld [vmem:[%s203 + $0x128] sm:$0xff]
        %v295 = vld [vmem:[%s203 + $0x130] sm:$0xff]
        %v296 = vld [vmem:[%s203 + $0x138] sm:$0xff]
        %v297 = vld [vmem:[%s203 + $0x140] sm:$0xff]
        %v298 = vld [vmem:[%s203 + $0x148] sm:$0xff]
        %v299 = vld [vmem:[%s203 + $0x150] sm:$0xff]
        %v300 = vld [vmem:[%s203 + $0x158] sm:$0xff]
        %v301 = vld [vmem:[%s203 + $0x160] sm:$0xff]
        %v302 = vld [vmem:[%s203 + $0x168] sm:$0xff]
        %v303 = vld [vmem:[%s203 + $0x170] sm:$0xff]
        %v304 = vld [vmem:[%s203 + $0x178] sm:$0xff]
        %v305 = vld [vmem:[%s203 + $0x180] sm:$0xff]
        %v306 = vld [vmem:[%s203 + $0x188] sm:$0xff]
        %v307 = vld [vmem:[%s203 + $0x190] sm:$0xff]
        %v308 = vld [vmem:[%s203 + $0x198] sm:$0xff]
        %v309 = vld [vmem:[%s203 + $0x1a0] sm:$0xff]
        %v310 = vld [vmem:[%s203 + $0x1a8] sm:$0xff]
        %v311 = vld [vmem:[%s203 + $0x1b0] sm:$0xff]
        %v312 = vld [vmem:[%s203 + $0x1b8] sm:$0xff]
        %v313 = vld [vmem:[%s203 + $0x1c0] sm:$0xff]
        %v314 = vld [vmem:[%s203 + $0x1c8] sm:$0xff]
        %v315 = vld [vmem:[%s203 + $0x1d0] sm:$0xff]
        %v316 = vld [vmem:[%s203 + $0x1d8] sm:$0xff]
        %v317 = vld [vmem:[%s203 + $0x1e0] sm:$0xff]
        %v318 = vld [vmem:[%s203 + $0x1e8] sm:$0xff]
        %v319 = vld [vmem:[%s203 + $0x1f0] sm:$0xff]
        %v320 = vld [vmem:[%s203 + $0x1f8] sm:$0xff]
        %v321 = vld [vmem:[%s203 + $0x200] sm:$0xff]
        %v322 = vld [vmem:[%s203 + $0x208] sm:$0xff]
        %v323 = vld [vmem:[%s203 + $0x210] sm:$0xff]
        %v324 = vld [vmem:[%s203 + $0x218] sm:$0xff]
        %v325 = vld [vmem:[%s203 + $0x220] sm:$0xff]
        %v326 = vld [vmem:[%s203 + $0x228] sm:$0xff]
        %v327 = vld [vmem:[%s203 + $0x230] sm:$0xff]
        %v328 = vld [vmem:[%s203 + $0x238] sm:$0xff]
        %v329 = vld [vmem:[%s203 + $0x240] sm:$0xff]
        %v330 = vld [vmem:[%s203 + $0x248] sm:$0xff]
        %v331 = vld [vmem:[%s203 + $0x250] sm:$0xff]
        %v332 = vld [vmem:[%s203 + $0x258] sm:$0xff]
        %v333 = vld [vmem:[%s203 + $0x260] sm:$0xff]
        %v334 = vld [vmem:[%s203 + $0x268] sm:$0xff]
        %v335 = vld [vmem:[%s203 + $0x270] sm:$0xff]
        %v336 = vld [vmem:[%s203 + $0x278] sm:$0xff]
        %v337 = vld [vmem:[%s203 + $0x280] sm:$0xff]
        %v338 = vld [vmem:[%s203 + $0x288] sm:$0xff]
        %v339 = vld [vmem:[%s203 + $0x290] sm:$0xff]
        %v340 = vld [vmem:[%s203 + $0x298] sm:$0xff]
        %v341 = vld [vmem:[%s203 + $0x2a0] sm:$0xff]
        %v342 = vld [vmem:[%s203 + $0x2a8] sm:$0xff]
        %v343 = vld [vmem:[%s203 + $0x2b0] sm:$0xff]
        %v344 = vld [vmem:[%s203 + $0x2b8] sm:$0xff]
        %v345 = vld [vmem:[%s203 + $0x2c0] sm:$0xff]
        %v346 = vld [vmem:[%s203 + $0x2c8] sm:$0xff]
        %v347 = vld [vmem:[%s203 + $0x2d0] sm:$0xff]
        %v348 = vld [vmem:[%s203 + $0x2d8] sm:$0xff]
        %v349 = vld [vmem:[%s203 + $0x2e0] sm:$0xff]
        %v350 = vld [vmem:[%s203 + $0x2e8] sm:$0xff]
        %v351 = vld [vmem:[%s203 + $0x2f0] sm:$0xff]
        %v352 = vld [vmem:[%s203 + $0x2f8] sm:$0xff]
        %v353 = vld [vmem:[%s203 + $0x300] sm:$0xff]
        %v354 = vld [vmem:[%s203 + $0x308] sm:$0xff]
        %v355 = vld [vmem:[%s203 + $0x310] sm:$0xff]
        %v356 = vld [vmem:[%s203 + $0x318] sm:$0xff]
        %v357 = vld [vmem:[%s203 + $0x320] sm:$0xff]
        %v358 = vld [vmem:[%s203 + $0x328] sm:$0xff]
        %v359 = vld [vmem:[%s203 + $0x330] sm:$0xff]
        %v360 = vld [vmem:[%s203 + $0x338] sm:$0xff]
        %v361 = vld [vmem:[%s203 + $0x340] sm:$0xff]
        %v362 = vld [vmem:[%s203 + $0x348] sm:$0xff]
        %v363 = vld [vmem:[%s203 + $0x350] sm:$0xff]
        %v364 = vld [vmem:[%s203 + $0x358] sm:$0xff]
        %v365 = vld [vmem:[%s203 + $0x360] sm:$0xff]
        %v366 = vld [vmem:[%s203 + $0x368] sm:$0xff]
        %v367 = vld [vmem:[%s203 + $0x370] sm:$0xff]
        %v368 = vld [vmem:[%s203 + $0x378] sm:$0xff]
        %v369 = vld [vmem:[%s203 + $0x380] sm:$0xff]
        %v370 = vld [vmem:[%s203 + $0x388] sm:$0xff]
        %v371 = vld [vmem:[%s203 + $0x390] sm:$0xff]
        %v372 = vld [vmem:[%s203 + $0x398] sm:$0xff]
        %v373 = vld [vmem:[%s203 + $0x3a0] sm:$0xff]
        %v374 = vld [vmem:[%s203 + $0x3a8] sm:$0xff]
        %v375 = vld [vmem:[%s203 + $0x3b0] sm:$0xff]
        %v376 = vld [vmem:[%s203 + $0x3b8] sm:$0xff]
        %v377 = vld [vmem:[%s203 + $0x3c0] sm:$0xff]
        %v378 = vld [vmem:[%s203 + $0x3c8] sm:$0xff]
        %v379 = vld [vmem:[%s203 + $0x3d0] sm:$0xff]
        %v380 = vld [vmem:[%s203 + $0x3d8] sm:$0xff]
        %v381 = vld [vmem:[%s203 + $0x3e0] sm:$0xff]
        %v382 = vld [vmem:[%s203 + $0x3e8] sm:$0xff]
        %v383 = vld [vmem:[%s203 + $0x3f0] sm:$0xff]
        %v384 = vld [vmem:[%s203 + $0x3f8] sm:$0xff]
        %v385 = vld [vmem:[%s203 + $0x400] sm:$0xff]
        %v386 = vld [vmem:[%s203 + $0x408] sm:$0xff]
        %v387 = vld [vmem:[%s203 + $0x410] sm:$0xff]
        %v388 = vld [vmem:[%s203 + $0x418] sm:$0xff]
        %v389 = vld [vmem:[%s203 + $0x420] sm:$0xff]
        %v390 = vld [vmem:[%s203 + $0x428] sm:$0xff]
        %v391 = vld [vmem:[%s203 + $0x430] sm:$0xff]
        %v392 = vld [vmem:[%s203 + $0x438] sm:$0xff]
        %v393 = vld [vmem:[%s203 + $0x440] sm:$0xff]
        %v394 = vld [vmem:[%s203 + $0x448] sm:$0xff]
        %v395 = vld [vmem:[%s203 + $0x450] sm:$0xff]
        %v396 = vld [vmem:[%s203 + $0x458] sm:$0xff]
        %v397 = vld [vmem:[%s203 + $0x460] sm:$0xff]
        %v398 = vld [vmem:[%s203 + $0x468] sm:$0xff]
        %v399 = vld [vmem:[%s203 + $0x470] sm:$0xff]
        %v400 = vld [vmem:[%s203 + $0x478] sm:$0xff]
        %v401 = vld [vmem:[%s203 + $0x480] sm:$0xff]
        %v402 = vld [vmem:[%s203 + $0x488] sm:$0xff]
        %v403 = vld [vmem:[%s203 + $0x490] sm:$0xff]
        %v404 = vld [vmem:[%s203 + $0x498] sm:$0xff]
        %v405 = vld [vmem:[%s203 + $0x4a0] sm:$0xff]
        %v406 = vld [vmem:[%s203 + $0x4a8] sm:$0xff]
        %v407 = vld [vmem:[%s203 + $0x4b0] sm:$0xff]
        %v408 = vld [vmem:[%s203 + $0x4b8] sm:$0xff]
        %v409 = vld [vmem:[%s203 + $0x4c0] sm:$0xff]
        %v410 = vld [vmem:[%s203 + $0x4c8] sm:$0xff]
        %v411 = vld [vmem:[%s203 + $0x4d0] sm:$0xff]
        %v412 = vld [vmem:[%s203 + $0x4d8] sm:$0xff]
        %v413 = vld [vmem:[%s203 + $0x4e0] sm:$0xff]
        %v414 = vld [vmem:[%s203 + $0x4e8] sm:$0xff]
        %v415 = vld [vmem:[%s203 + $0x4f0] sm:$0xff]
        %v416 = vld [vmem:[%s203 + $0x4f8] sm:$0xff]
        %v417 = vld [vmem:[%s203 + $0x500] sm:$0xff]
        %v418 = vld [vmem:[%s203 + $0x508] sm:$0xff]
        %v419 = vld [vmem:[%s203 + $0x510] sm:$0xff]
        %v420 = vld [vmem:[%s203 + $0x518] sm:$0xff]
        %v421 = vld [vmem:[%s203 + $0x520] sm:$0xff]
        %v422 = vld [vmem:[%s203 + $0x528] sm:$0xff]
        %v423 = vld [vmem:[%s203 + $0x530] sm:$0xff]
        %v424 = vld [vmem:[%s203 + $0x538] sm:$0xff]
        %v425 = vld [vmem:[%s203 + $0x540] sm:$0xff]
        %v426 = vld [vmem:[%s203 + $0x548] sm:$0xff]
        %v427 = vld [vmem:[%s203 + $0x550] sm:$0xff]
        %v428 = vld [vmem:[%s203 + $0x558] sm:$0xff]
        %v429 = vld [vmem:[%s203 + $0x560] sm:$0xff]
        %v430 = vld [vmem:[%s203 + $0x568] sm:$0xff]
        %v431 = vld [vmem:[%s203 + $0x570] sm:$0xff]
        %v432 = vld [vmem:[%s203 + $0x578] sm:$0xff]
        %v433 = vld [vmem:[%s203 + $0x580] sm:$0xff]
        %v434 = vld [vmem:[%s203 + $0x588] sm:$0xff]
        %v435 = vld [vmem:[%s203 + $0x590] sm:$0xff]
        %v436 = vld [vmem:[%s203 + $0x598] sm:$0xff]
        %v437 = vld [vmem:[%s203 + $0x5a0] sm:$0xff]
        %v438 = vld [vmem:[%s203 + $0x5a8] sm:$0xff]
        %v439 = vld [vmem:[%s203 + $0x5b0] sm:$0xff]
        %v440 = vld [vmem:[%s203 + $0x5b8] sm:$0xff]
        %v441 = vld [vmem:[%s203 + $0x5c0] sm:$0xff]
        %v442 = vld [vmem:[%s203 + $0x5c8] sm:$0xff]
        %v443 = vld [vmem:[%s203 + $0x5d0] sm:$0xff]
        %v444 = vld [vmem:[%s203 + $0x5d8] sm:$0xff]
        %v445 = vld [vmem:[%s203 + $0x5e0] sm:$0xff]
        %v446 = vld [vmem:[%s203 + $0x5e8] sm:$0xff]
        %v447 = vld [vmem:[%s203 + $0x5f0] sm:$0xff]
        %v448 = vld [vmem:[%s203 + $0x5f8] sm:$0xff]
        %v449 = vld [vmem:[%s203 + $0x600] sm:$0xff]
        %v450 = vld [vmem:[%s203 + $0x608] sm:$0xff]
        %v451 = vld [vmem:[%s203 + $0x610] sm:$0xff]
        %v452 = vld [vmem:[%s203 + $0x618] sm:$0xff]
        %v453 = vld [vmem:[%s203 + $0x620] sm:$0xff]
        %v454 = vld [vmem:[%s203 + $0x628] sm:$0xff]
        %v455 = vld [vmem:[%s203 + $0x630] sm:$0xff]
        %v456 = vld [vmem:[%s203 + $0x638] sm:$0xff]
        %v457 = vld [vmem:[%s203 + $0x640] sm:$0xff]
        %v458 = vld [vmem:[%s203 + $0x648] sm:$0xff]
        %v459 = vld [vmem:[%s203 + $0x650] sm:$0xff]
        %v460 = vld [vmem:[%s203 + $0x658] sm:$0xff]
        %v461 = vld [vmem:[%s203 + $0x660] sm:$0xff]
        %v462 = vld [vmem:[%s203 + $0x668] sm:$0xff]
        %v463 = vld [vmem:[%s203 + $0x670] sm:$0xff]
        %v464 = vld [vmem:[%s203 + $0x678] sm:$0xff]
        %v465 = vld [vmem:[%s203 + $0x680] sm:$0xff]
        %v466 = vld [vmem:[%s203 + $0x688] sm:$0xff]
        %v467 = vld [vmem:[%s203 + $0x690] sm:$0xff]
        %v468 = vld [vmem:[%s203 + $0x698] sm:$0xff]
        %v469 = vld [vmem:[%s203 + $0x6a0] sm:$0xff]
        %v470 = vld [vmem:[%s203 + $0x6a8] sm:$0xff]
        %v471 = vld [vmem:[%s203 + $0x6b0] sm:$0xff]
        %v472 = vld [vmem:[%s203 + $0x6b8] sm:$0xff]
        %v473 = vld [vmem:[%s203 + $0x6c0] sm:$0xff]
        %v474 = vld [vmem:[%s203 + $0x6c8] sm:$0xff]
        %v475 = vld [vmem:[%s203 + $0x6d0] sm:$0xff]
        %v476 = vld [vmem:[%s203 + $0x6d8] sm:$0xff]
        %v477 = vld [vmem:[%s203 + $0x6e0] sm:$0xff]
        %v478 = vld [vmem:[%s203 + $0x6e8] sm:$0xff]
        %v479 = vld [vmem:[%s203 + $0x6f0] sm:$0xff]
        %v480 = vld [vmem:[%s203 + $0x6f8] sm:$0xff]
        %v481 = vld [vmem:[%s203 + $0x700] sm:$0xff]
        %v482 = vld [vmem:[%s203 + $0x708] sm:$0xff]
        %v483 = vld [vmem:[%s203 + $0x710] sm:$0xff]
        %v484 = vld [vmem:[%s203 + $0x718] sm:$0xff]
        %v485 = vld [vmem:[%s203 + $0x720] sm:$0xff]
        %v486 = vld [vmem:[%s203 + $0x728] sm:$0xff]
        %v487 = vld [vmem:[%s203 + $0x730] sm:$0xff]
        %v488 = vld [vmem:[%s203 + $0x738] sm:$0xff]
        %v489 = vld [vmem:[%s203 + $0x740] sm:$0xff]
        %v490 = vld [vmem:[%s203 + $0x748] sm:$0xff]
        %v491 = vld [vmem:[%s203 + $0x750] sm:$0xff]
        %v492 = vld [vmem:[%s203 + $0x758] sm:$0xff]
        %v493 = vld [vmem:[%s203 + $0x760] sm:$0xff]
        %v494 = vld [vmem:[%s203 + $0x768] sm:$0xff]
        %v495 = vld [vmem:[%s203 + $0x770] sm:$0xff]
        %v496 = vld [vmem:[%s203 + $0x778] sm:$0xff]
        %v497 = vld [vmem:[%s203 + $0x780] sm:$0xff]
        %v498 = vld [vmem:[%s203 + $0x788] sm:$0xff]
        %v499 = vld [vmem:[%s203 + $0x790] sm:$0xff]
        %v500 = vld [vmem:[%s203 + $0x798] sm:$0xff]
        %v501 = vld [vmem:[%s203 + $0x7a0] sm:$0xff]
        %v502 = vld [vmem:[%s203 + $0x7a8] sm:$0xff]
        %v503 = vld [vmem:[%s203 + $0x7b0] sm:$0xff]
        %v504 = vld [vmem:[%s203 + $0x7b8] sm:$0xff]
        %v505 = vld [vmem:[%s203 + $0x7c0] sm:$0xff]
        %v506 = vld [vmem:[%s203 + $0x7c8] sm:$0xff]
        %v507 = vld [vmem:[%s203 + $0x7d0] sm:$0xff]
        %v508 = vld [vmem:[%s203 + $0x7d8] sm:$0xff]
        %v509 = vld [vmem:[%s203 + $0x7e0] sm:$0xff]
        %v510 = vld [vmem:[%s203 + $0x7e8] sm:$0xff]
        %v511 = vld [vmem:[%s203 + $0x7f0] sm:$0xff]
        %v512 = vld [vmem:[%s203 + $0x7f8] sm:$0xff]
        %v513 = vld [vmem:[%s203 + $0x800] sm:$0xff]
        %v514 = vld [vmem:[%s203 + $0x808] sm:$0xff]
        %v515 = vld [vmem:[%s203 + $0x810] sm:$0xff]
        %v516 = vld [vmem:[%s203 + $0x818] sm:$0xff]
        %v517 = vld [vmem:[%s203 + $0x820] sm:$0xff]
        %v518 = vld [vmem:[%s203 + $0x828] sm:$0xff]
        %v519 = vld [vmem:[%s203 + $0x830] sm:$0xff]
        %v520 = vld [vmem:[%s203 + $0x838] sm:$0xff]
        %v521 = vld [vmem:[%s203 + $0x840] sm:$0xff]
        %v522 = vld [vmem:[%s203 + $0x848] sm:$0xff]
        %v523 = vld [vmem:[%s203 + $0x850] sm:$0xff]
        %v524 = vld [vmem:[%s203 + $0x858] sm:$0xff]
        %v525 = vld [vmem:[%s203 + $0x860] sm:$0xff]
        %v526 = vld [vmem:[%s203 + $0x868] sm:$0xff]
        %v527 = vld [vmem:[%s203 + $0x870] sm:$0xff]
        %v528 = vld [vmem:[%s203 + $0x878] sm:$0xff]
        %v529 = vld [vmem:[%s203 + $0x880] sm:$0xff]
        %v530 = vld [vmem:[%s203 + $0x888] sm:$0xff]
        %v531 = vld [vmem:[%s203 + $0x890] sm:$0xff]
        %v532 = vld [vmem:[%s203 + $0x898] sm:$0xff]
        %v533 = vld [vmem:[%s203 + $0x8a0] sm:$0xff]
        %v534 = vld [vmem:[%s203 + $0x8a8] sm:$0xff]
        %v535 = vld [vmem:[%s203 + $0x8b0] sm:$0xff]
        %v536 = vld [vmem:[%s203 + $0x8b8] sm:$0xff]
        %v537 = vld [vmem:[%s203 + $0x8c0] sm:$0xff]
        %v538 = vld [vmem:[%s203 + $0x8c8] sm:$0xff]
        %v539 = vld [vmem:[%s203 + $0x8d0] sm:$0xff]
        %v540 = vld [vmem:[%s203 + $0x8d8] sm:$0xff]
        %v541 = vld [vmem:[%s203 + $0x8e0] sm:$0xff]
        %v542 = vld [vmem:[%s203 + $0x8e8] sm:$0xff]
        %v543 = vld [vmem:[%s203 + $0x8f0] sm:$0xff]
        %v544 = vld [vmem:[%s203 + $0x8f8] sm:$0xff]
        %v545 = vld [vmem:[%s203 + $0x900] sm:$0xff]
        %v546 = vld [vmem:[%s203 + $0x908] sm:$0xff]
        %v547 = vld [vmem:[%s203 + $0x910] sm:$0xff]
        %v548 = vld [vmem:[%s203 + $0x918] sm:$0xff]
        %v549 = vld [vmem:[%s203 + $0x920] sm:$0xff]
        %v550 = vld [vmem:[%s203 + $0x928] sm:$0xff]
        %v551 = vld [vmem:[%s203 + $0x930] sm:$0xff]
        %v552 = vld [vmem:[%s203 + $0x938] sm:$0xff]
        %v553 = vld [vmem:[%s203 + $0x940] sm:$0xff]
        %v554 = vld [vmem:[%s203 + $0x948] sm:$0xff]
        %v555 = vld [vmem:[%s203 + $0x950] sm:$0xff]
        %v556 = vld [vmem:[%s203 + $0x958] sm:$0xff]
        %v557 = vld [vmem:[%s203 + $0x960] sm:$0xff]
        %v558 = vld [vmem:[%s203 + $0x968] sm:$0xff]
        %v559 = vld [vmem:[%s203 + $0x970] sm:$0xff]
        %v560 = vld [vmem:[%s203 + $0x978] sm:$0xff]
        %v561 = vld [vmem:[%s203 + $0x980] sm:$0xff]
        %v562 = vld [vmem:[%s203 + $0x988] sm:$0xff]
        %v563 = vld [vmem:[%s203 + $0x990] sm:$0xff]
        %v564 = vld [vmem:[%s203 + $0x998] sm:$0xff]
        %v565 = vld [vmem:[%s203 + $0x9a0] sm:$0xff]
        %v566 = vld [vmem:[%s203 + $0x9a8] sm:$0xff]
        %v567 = vld [vmem:[%s203 + $0x9b0] sm:$0xff]
        %v568 = vld [vmem:[%s203 + $0x9b8] sm:$0xff]
        %v569 = vld [vmem:[%s203 + $0x9c0] sm:$0xff]
        %v570 = vld [vmem:[%s203 + $0x9c8] sm:$0xff]
        %v571 = vld [vmem:[%s203 + $0x9d0] sm:$0xff]
        %v572 = vld [vmem:[%s203 + $0x9d8] sm:$0xff]
        %v573 = vld [vmem:[%s203 + $0x9e0] sm:$0xff]
        %v574 = vld [vmem:[%s203 + $0x9e8] sm:$0xff]
        %v575 = vld [vmem:[%s203 + $0x9f0] sm:$0xff]
        %v576 = vld [vmem:[%s203 + $0x9f8] sm:$0xff]
        %v577 = vld [vmem:[%s203 + $0xa00] sm:$0xff]
        %v578 = vld [vmem:[%s203 + $0xa08] sm:$0xff]
        %v579 = vld [vmem:[%s203 + $0xa10] sm:$0xff]
        %v580 = vld [vmem:[%s203 + $0xa18] sm:$0xff]
        %v581 = vld [vmem:[%s203 + $0xa20] sm:$0xff]
        %v582 = vld [vmem:[%s203 + $0xa28] sm:$0xff]
        %v583 = vld [vmem:[%s203 + $0xa30] sm:$0xff]
        %v584 = vld [vmem:[%s203 + $0xa38] sm:$0xff]
        %v585 = vld [vmem:[%s203 + $0xa40] sm:$0xff]
        %v586 = vld [vmem:[%s203 + $0xa48] sm:$0xff]
        %v587 = vld [vmem:[%s203 + $0xa50] sm:$0xff]
        %v588 = vld [vmem:[%s203 + $0xa58] sm:$0xff]
        %v589 = vld [vmem:[%s203 + $0xa60] sm:$0xff]
        %v590 = vld [vmem:[%s203 + $0xa68] sm:$0xff]
        %v591 = vld [vmem:[%s203 + $0xa70] sm:$0xff]
        %v592 = vld [vmem:[%s203 + $0xa78] sm:$0xff]
        %v593 = vld [vmem:[%s203 + $0xa80] sm:$0xff]
        %v594 = vld [vmem:[%s203 + $0xa88] sm:$0xff]
        %v595 = vld [vmem:[%s203 + $0xa90] sm:$0xff]
        %v596 = vld [vmem:[%s203 + $0xa98] sm:$0xff]
        %v597 = vld [vmem:[%s203 + $0xaa0] sm:$0xff]
        %v598 = vld [vmem:[%s203 + $0xaa8] sm:$0xff]
        %v599 = vld [vmem:[%s203 + $0xab0] sm:$0xff]
        %v600 = vld [vmem:[%s203 + $0xab8] sm:$0xff]
        %v601 = vld [vmem:[%s203 + $0xac0] sm:$0xff]
        %v602 = vld [vmem:[%s203 + $0xac8] sm:$0xff]
        %v603 = vld [vmem:[%s203 + $0xad0] sm:$0xff]
        %v604 = vld [vmem:[%s203 + $0xad8] sm:$0xff]
        %v605 = vld [vmem:[%s203 + $0xae0] sm:$0xff]
        %v606 = vld [vmem:[%s203 + $0xae8] sm:$0xff]
        %v607 = vld [vmem:[%s203 + $0xaf0] sm:$0xff]
        %v608 = vld [vmem:[%s203 + $0xaf8] sm:$0xff]
        %v609 = vld [vmem:[%s203 + $0xb00] sm:$0xff]
        %v610 = vld [vmem:[%s203 + $0xb08] sm:$0xff]
        %v611 = vld [vmem:[%s203 + $0xb10] sm:$0xff]
        %v612 = vld [vmem:[%s203 + $0xb18] sm:$0xff]
        %v613 = vld [vmem:[%s203 + $0xb20] sm:$0xff]
        %v614 = vld [vmem:[%s203 + $0xb28] sm:$0xff]
        %v615 = vld [vmem:[%s203 + $0xb30] sm:$0xff]
        %v616 = vld [vmem:[%s203 + $0xb38] sm:$0xff]
        %v617 = vld [vmem:[%s203 + $0xb40] sm:$0xff]
        %v618 = vld [vmem:[%s203 + $0xb48] sm:$0xff]
        %v619 = vld [vmem:[%s203 + $0xb50] sm:$0xff]
        %v620 = vld [vmem:[%s203 + $0xb58] sm:$0xff]
        %v621 = vld [vmem:[%s203 + $0xb60] sm:$0xff]
        %v622 = vld [vmem:[%s203 + $0xb68] sm:$0xff]
        %v623 = vld [vmem:[%s203 + $0xb70] sm:$0xff]
        %v624 = vld [vmem:[%s203 + $0xb78] sm:$0xff]
        %v625 = vld [vmem:[%s203 + $0xb80] sm:$0xff]
        %v626 = vld [vmem:[%s203 + $0xb88] sm:$0xff]
        %v627 = vld [vmem:[%s203 + $0xb90] sm:$0xff]
        %v628 = vld [vmem:[%s203 + $0xb98] sm:$0xff]
        %v629 = vld [vmem:[%s203 + $0xba0] sm:$0xff]
        %v630 = vld [vmem:[%s203 + $0xba8] sm:$0xff]
        %v631 = vld [vmem:[%s203 + $0xbb0] sm:$0xff]
        %v632 = vld [vmem:[%s203 + $0xbb8] sm:$0xff]
        %v633 = vld [vmem:[%s203 + $0xbc0] sm:$0xff]
        %v634 = vld [vmem:[%s203 + $0xbc8] sm:$0xff]
        %v635 = vld [vmem:[%s203 + $0xbd0] sm:$0xff]
        %v636 = vld [vmem:[%s203 + $0xbd8] sm:$0xff]
        %v637 = vld [vmem:[%s203 + $0xbe0] sm:$0xff]
        %v638 = vld [vmem:[%s203 + $0xbe8] sm:$0xff]
        %v639 = vld [vmem:[%s203 + $0xbf0] sm:$0xff]
        %v640 = vld [vmem:[%s203 + $0xbf8] sm:$0xff]
        %v641 = vld [vmem:[%s203 + $0xc00] sm:$0xff]
        %v642 = vld [vmem:[%s203 + $0xc08] sm:$0xff]
        %v643 = vld [vmem:[%s203 + $0xc10] sm:$0xff]
        %v644 = vld [vmem:[%s203 + $0xc18] sm:$0xff]
        %v645 = vld [vmem:[%s203 + $0xc20] sm:$0xff]
        %v646 = vld [vmem:[%s203 + $0xc28] sm:$0xff]
        %v647 = vld [vmem:[%s203 + $0xc30] sm:$0xff]
        %v648 = vld [vmem:[%s203 + $0xc38] sm:$0xff]
        %v649 = vld [vmem:[%s203 + $0xc40] sm:$0xff]
        %v650 = vld [vmem:[%s203 + $0xc48] sm:$0xff]
        %v651 = vld [vmem:[%s203 + $0xc50] sm:$0xff]
        %v652 = vld [vmem:[%s203 + $0xc58] sm:$0xff]
        %v653 = vld [vmem:[%s203 + $0xc60] sm:$0xff]
        %v654 = vld [vmem:[%s203 + $0xc68] sm:$0xff]
        %v655 = vld [vmem:[%s203 + $0xc70] sm:$0xff]
        %v656 = vld [vmem:[%s203 + $0xc78] sm:$0xff]
        %v657 = vld [vmem:[%s203 + $0xc80] sm:$0xff]
        %v658 = vld [vmem:[%s203 + $0xc88] sm:$0xff]
        %v659 = vld [vmem:[%s203 + $0xc90] sm:$0xff]
        %v660 = vld [vmem:[%s203 + $0xc98] sm:$0xff]
        %v661 = vld [vmem:[%s203 + $0xca0] sm:$0xff]
        %v662 = vld [vmem:[%s203 + $0xca8] sm:$0xff]
        %v663 = vld [vmem:[%s203 + $0xcb0] sm:$0xff]
        %v664 = vld [vmem:[%s203 + $0xcb8] sm:$0xff]
        %v665 = vld [vmem:[%s203 + $0xcc0] sm:$0xff]
        %v666 = vld [vmem:[%s203 + $0xcc8] sm:$0xff]
        %v667 = vld [vmem:[%s203 + $0xcd0] sm:$0xff]
        %v668 = vld [vmem:[%s203 + $0xcd8] sm:$0xff]
        %v669 = vld [vmem:[%s203 + $0xce0] sm:$0xff]
        %v670 = vld [vmem:[%s203 + $0xce8] sm:$0xff]
        %v671 = vld [vmem:[%s203 + $0xcf0] sm:$0xff]
        %v672 = vld [vmem:[%s203 + $0xcf8] sm:$0xff]
        %v673 = vld [vmem:[%s203 + $0xd00] sm:$0xff]
        %v674 = vld [vmem:[%s203 + $0xd08] sm:$0xff]
        %v675 = vld [vmem:[%s203 + $0xd10] sm:$0xff]
        %v676 = vld [vmem:[%s203 + $0xd18] sm:$0xff]
        %v677 = vld [vmem:[%s203 + $0xd20] sm:$0xff]
        %v678 = vld [vmem:[%s203 + $0xd28] sm:$0xff]
        %v679 = vld [vmem:[%s203 + $0xd30] sm:$0xff]
        %v680 = vld [vmem:[%s203 + $0xd38] sm:$0xff]
        %v681 = vld [vmem:[%s203 + $0xd40] sm:$0xff]
        %v682 = vld [vmem:[%s203 + $0xd48] sm:$0xff]
        %v683 = vld [vmem:[%s203 + $0xd50] sm:$0xff]
        %v684 = vld [vmem:[%s203 + $0xd58] sm:$0xff]
        %v685 = vld [vmem:[%s203 + $0xd60] sm:$0xff]
        %v686 = vld [vmem:[%s203 + $0xd68] sm:$0xff]
        %v687 = vld [vmem:[%s203 + $0xd70] sm:$0xff]
        %v688 = vld [vmem:[%s203 + $0xd78] sm:$0xff]
        %v689 = vld [vmem:[%s203 + $0xd80] sm:$0xff]
        %v690 = vld [vmem:[%s203 + $0xd88] sm:$0xff]
        %v691 = vld [vmem:[%s203 + $0xd90] sm:$0xff]
        %v692 = vld [vmem:[%s203 + $0xd98] sm:$0xff]
        %v693 = vld [vmem:[%s203 + $0xda0] sm:$0xff]
        %v694 = vld [vmem:[%s203 + $0xda8] sm:$0xff]
        %v695 = vld [vmem:[%s203 + $0xdb0] sm:$0xff]
        %v696 = vld [vmem:[%s203 + $0xdb8] sm:$0xff]
        %v697 = vld [vmem:[%s203 + $0xdc0] sm:$0xff]
        %v698 = vld [vmem:[%s203 + $0xdc8] sm:$0xff]
        %v699 = vld [vmem:[%s203 + $0xdd0] sm:$0xff]
        %v700 = vld [vmem:[%s203 + $0xdd8] sm:$0xff]
        %v701 = vld [vmem:[%s203 + $0xde0] sm:$0xff]
        %v702 = vld [vmem:[%s203 + $0xde8] sm:$0xff]
        %v703 = vld [vmem:[%s203 + $0xdf0] sm:$0xff]
        %v704 = vld [vmem:[%s203 + $0xdf8] sm:$0xff]
        %v705 = vld [vmem:[%s203 + $0xe00] sm:$0xff]
        %v706 = vld [vmem:[%s203 + $0xe08] sm:$0xff]
        %v707 = vld [vmem:[%s203 + $0xe10] sm:$0xff]
        %v708 = vld [vmem:[%s203 + $0xe18] sm:$0xff]
        %v709 = vld [vmem:[%s203 + $0xe20] sm:$0xff]
        %v710 = vld [vmem:[%s203 + $0xe28] sm:$0xff]
        %v711 = vld [vmem:[%s203 + $0xe30] sm:$0xff]
        %v712 = vld [vmem:[%s203 + $0xe38] sm:$0xff]
        %v713 = vld [vmem:[%s203 + $0xe40] sm:$0xff]
        %v714 = vld [vmem:[%s203 + $0xe48] sm:$0xff]
        %v715 = vld [vmem:[%s203 + $0xe50] sm:$0xff]
        %v716 = vld [vmem:[%s203 + $0xe58] sm:$0xff]
        %v717 = vld [vmem:[%s203 + $0xe60] sm:$0xff]
        %v718 = vld [vmem:[%s203 + $0xe68] sm:$0xff]
        %v719 = vld [vmem:[%s203 + $0xe70] sm:$0xff]
        %v720 = vld [vmem:[%s203 + $0xe78] sm:$0xff]
        %v721 = vld [vmem:[%s203 + $0xe80] sm:$0xff]
        %v722 = vld [vmem:[%s203 + $0xe88] sm:$0xff]
        %v723 = vld [vmem:[%s203 + $0xe90] sm:$0xff]
        %v724 = vld [vmem:[%s203 + $0xe98] sm:$0xff]
        %v725 = vld [vmem:[%s203 + $0xea0] sm:$0xff]
        %v726 = vld [vmem:[%s203 + $0xea8] sm:$0xff]
        %v727 = vld [vmem:[%s203 + $0xeb0] sm:$0xff]
        %v728 = vld [vmem:[%s203 + $0xeb8] sm:$0xff]
        %v729 = vld [vmem:[%s203 + $0xec0] sm:$0xff]
        %v730 = vld [vmem:[%s203 + $0xec8] sm:$0xff]
        %v731 = vld [vmem:[%s203 + $0xed0] sm:$0xff]
        %v732 = vld [vmem:[%s203 + $0xed8] sm:$0xff]
        %v733 = vld [vmem:[%s203 + $0xee0] sm:$0xff]
        %v734 = vld [vmem:[%s203 + $0xee8] sm:$0xff]
        %v735 = vld [vmem:[%s203 + $0xef0] sm:$0xff]
        %v736 = vld [vmem:[%s203 + $0xef8] sm:$0xff]
        %v737 = vld [vmem:[%s203 + $0xf00] sm:$0xff]
        %v738 = vld [vmem:[%s203 + $0xf08] sm:$0xff]
        %v739 = vld [vmem:[%s203 + $0xf10] sm:$0xff]
        %v740 = vld [vmem:[%s203 + $0xf18] sm:$0xff]
        %v741 = vld [vmem:[%s203 + $0xf20] sm:$0xff]
        %v742 = vld [vmem:[%s203 + $0xf28] sm:$0xff]
        %v743 = vld [vmem:[%s203 + $0xf30] sm:$0xff]
        %v744 = vld [vmem:[%s203 + $0xf38] sm:$0xff]
        %v745 = vld [vmem:[%s203 + $0xf40] sm:$0xff]
        %v746 = vld [vmem:[%s203 + $0xf48] sm:$0xff]
        %v747 = vld [vmem:[%s203 + $0xf50] sm:$0xff]
        %v748 = vld [vmem:[%s203 + $0xf58] sm:$0xff]
        %v749 = vld [vmem:[%s203 + $0xf60] sm:$0xff]
        %v750 = vld [vmem:[%s203 + $0xf68] sm:$0xff]
        %v751 = vld [vmem:[%s203 + $0xf70] sm:$0xff]
        %v752 = vld [vmem:[%s203 + $0xf78] sm:$0xff]
        %v753 = vld [vmem:[%s203 + $0xf80] sm:$0xff]
        %v754 = vld [vmem:[%s203 + $0xf88] sm:$0xff]
        %v755 = vld [vmem:[%s203 + $0xf90] sm:$0xff]
        %v756 = vld [vmem:[%s203 + $0xf98] sm:$0xff]
        %v757 = vld [vmem:[%s203 + $0xfa0] sm:$0xff]
        %v758 = vld [vmem:[%s203 + $0xfa8] sm:$0xff]
        %v759 = vld [vmem:[%s203 + $0xfb0] sm:$0xff]
        %v760 = vld [vmem:[%s203 + $0xfb8] sm:$0xff]
        %v761 = vld [vmem:[%s203 + $0xfc0] sm:$0xff]
        %v762 = vld [vmem:[%s203 + $0xfc8] sm:$0xff]
        %v763 = vld [vmem:[%s203 + $0xfd0] sm:$0xff]
        %v764 = vld [vmem:[%s203 + $0xfd8] sm:$0xff]
        %v765 = vld [vmem:[%s203 + $0xfe0] sm:$0xff]
        %v766 = vld [vmem:[%s203 + $0xfe8] sm:$0xff]
        %v767 = vld [vmem:[%s203 + $0xff0] sm:$0xff]
        %v768 = vld [vmem:[%s203 + $0xff8] sm:$0xff]
        %v769 = vld [vmem:[%s203 + $0x1000] sm:$0xff]
        %v770 = vld [vmem:[%s203 + $0x1008] sm:$0xff]
        %v771 = vld [vmem:[%s203 + $0x1010] sm:$0xff]
        %v772 = vld [vmem:[%s203 + $0x1018] sm:$0xff]
        %v773 = vld [vmem:[%s203 + $0x1020] sm:$0xff]
        %v774 = vld [vmem:[%s203 + $0x1028] sm:$0xff]
        %v775 = vld [vmem:[%s203 + $0x1030] sm:$0xff]
        %v776 = vld [vmem:[%s203 + $0x1038] sm:$0xff]
        %v777 = vld [vmem:[%s203 + $0x1040] sm:$0xff]
        %v778 = vld [vmem:[%s203 + $0x1048] sm:$0xff]
        %v779 = vld [vmem:[%s203 + $0x1050] sm:$0xff]
        %v780 = vld [vmem:[%s203 + $0x1058] sm:$0xff]
        %v781 = vld [vmem:[%s203 + $0x1060] sm:$0xff]
        %v782 = vld [vmem:[%s203 + $0x1068] sm:$0xff]
        %v783 = vld [vmem:[%s203 + $0x1070] sm:$0xff]
        %v784 = vld [vmem:[%s203 + $0x1078] sm:$0xff]
        %v785 = vld [vmem:[%s203 + $0x1080] sm:$0xff]
        %v786 = vld [vmem:[%s203 + $0x1088] sm:$0xff]
        %v787 = vld [vmem:[%s203 + $0x1090] sm:$0xff]
        %v788 = vld [vmem:[%s203 + $0x1098] sm:$0xff]
        %v789 = vld [vmem:[%s203 + $0x10a0] sm:$0xff]
        %v790 = vld [vmem:[%s203 + $0x10a8] sm:$0xff]
        %v791 = vld [vmem:[%s203 + $0x10b0] sm:$0xff]
        %v792 = vld [vmem:[%s203 + $0x10b8] sm:$0xff]
        %v793 = vld [vmem:[%s203 + $0x10c0] sm:$0xff]
        %v794 = vld [vmem:[%s203 + $0x10c8] sm:$0xff]
        %v795 = vld [vmem:[%s203 + $0x10d0] sm:$0xff]
        %v796 = vld [vmem:[%s203 + $0x10d8] sm:$0xff]
        %v797 = vld [vmem:[%s203 + $0x10e0] sm:$0xff]
        %v798 = vld [vmem:[%s203 + $0x10e8] sm:$0xff]
        %v799 = vld [vmem:[%s203 + $0x10f0] sm:$0xff]
        %v800 = vld [vmem:[%s203 + $0x10f8] sm:$0xff]
        %v801 = vld [vmem:[%s203 + $0x1100] sm:$0xff]
        %v802 = vld [vmem:[%s203 + $0x1108] sm:$0xff]
        %v803 = vld [vmem:[%s203 + $0x1110] sm:$0xff]
        %v804 = vld [vmem:[%s203 + $0x1118] sm:$0xff]
        %v805 = vld [vmem:[%s203 + $0x1120] sm:$0xff]
        %v806 = vld [vmem:[%s203 + $0x1128] sm:$0xff]
        %v807 = vld [vmem:[%s203 + $0x1130] sm:$0xff]
        %v808 = vld [vmem:[%s203 + $0x1138] sm:$0xff]
        %v809 = vld [vmem:[%s203 + $0x1140] sm:$0xff]
        %v810 = vld [vmem:[%s203 + $0x1148] sm:$0xff]
        %v811 = vld [vmem:[%s203 + $0x1150] sm:$0xff]
        %v812 = vld [vmem:[%s203 + $0x1158] sm:$0xff]
        %v813 = vld [vmem:[%s203 + $0x1160] sm:$0xff]
        %v814 = vld [vmem:[%s203 + $0x1168] sm:$0xff]
        %v815 = vld [vmem:[%s203 + $0x1170] sm:$0xff]
        %v816 = vld [vmem:[%s203 + $0x1178] sm:$0xff]
        %v817 = vld [vmem:[%s203 + $0x1180] sm:$0xff]
        %v818 = vld [vmem:[%s203 + $0x1188] sm:$0xff]
        %v819 = vld [vmem:[%s203 + $0x1190] sm:$0xff]
        %v820 = vld [vmem:[%s203 + $0x1198] sm:$0xff]
        %v821 = vld [vmem:[%s203 + $0x11a0] sm:$0xff]
        %v822 = vld [vmem:[%s203 + $0x11a8] sm:$0xff]
        %v823 = vld [vmem:[%s203 + $0x11b0] sm:$0xff]
        %v824 = vld [vmem:[%s203 + $0x11b8] sm:$0xff]
        %v825 = vld [vmem:[%s203 + $0x11c0] sm:$0xff]
        %v826 = vld [vmem:[%s203 + $0x11c8] sm:$0xff]
        %v827 = vld [vmem:[%s203 + $0x11d0] sm:$0xff]
        %v828 = vld [vmem:[%s203 + $0x11d8] sm:$0xff]
        %v829 = vld [vmem:[%s203 + $0x11e0] sm:$0xff]
        %v830 = vld [vmem:[%s203 + $0x11e8] sm:$0xff]
        %v831 = vld [vmem:[%s203 + $0x11f0] sm:$0xff]
        %v832 = vld [vmem:[%s203 + $0x11f8] sm:$0xff]
        %v833 = vld [vmem:[%s203 + $0x1200] sm:$0xff]
        %v834 = vld [vmem:[%s203 + $0x1208] sm:$0xff]
        %v835 = vld [vmem:[%s203 + $0x1210] sm:$0xff]
        %v836 = vld [vmem:[%s203 + $0x1218] sm:$0xff]
        %v837 = vld [vmem:[%s203 + $0x1220] sm:$0xff]
        %v838 = vld [vmem:[%s203 + $0x1228] sm:$0xff]
        %v839 = vld [vmem:[%s203 + $0x1230] sm:$0xff]
        %v840 = vld [vmem:[%s203 + $0x1238] sm:$0xff]
        %v841 = vld [vmem:[%s203 + $0x1240] sm:$0xff]
        %v842 = vld [vmem:[%s203 + $0x1248] sm:$0xff]
        %v843 = vld [vmem:[%s203 + $0x1250] sm:$0xff]
        %v844 = vld [vmem:[%s203 + $0x1258] sm:$0xff]
        %v845 = vld [vmem:[%s203 + $0x1260] sm:$0xff]
        %v846 = vld [vmem:[%s203 + $0x1268] sm:$0xff]
        %v847 = vld [vmem:[%s203 + $0x1270] sm:$0xff]
        %v848 = vld [vmem:[%s203 + $0x1278] sm:$0xff]
        %v849 = vld [vmem:[%s203 + $0x1280] sm:$0xff]
        %v850 = vld [vmem:[%s203 + $0x1288] sm:$0xff]
        %v851 = vld [vmem:[%s203 + $0x1290] sm:$0xff]
        %v852 = vld [vmem:[%s203 + $0x1298] sm:$0xff]
        %v853 = vld [vmem:[%s203 + $0x12a0] sm:$0xff]
        %v854 = vld [vmem:[%s203 + $0x12a8] sm:$0xff]
        %v855 = vld [vmem:[%s203 + $0x12b0] sm:$0xff]
        %v856 = vld [vmem:[%s203 + $0x12b8] sm:$0xff]
        %v857 = vld [vmem:[%s203 + $0x12c0] sm:$0xff]
        %v858 = vld [vmem:[%s203 + $0x12c8] sm:$0xff]
        %v859 = vld [vmem:[%s203 + $0x12d0] sm:$0xff]
        %v860 = vld [vmem:[%s203 + $0x12d8] sm:$0xff]
        %v861 = vld [vmem:[%s203 + $0x12e0] sm:$0xff]
        %v862 = vld [vmem:[%s203 + $0x12e8] sm:$0xff]
        %v863 = vld [vmem:[%s203 + $0x12f0] sm:$0xff]
        %v864 = vld [vmem:[%s203 + $0x12f8] sm:$0xff]
        %v865 = vld [vmem:[%s203 + $0x1300] sm:$0xff]
        %v866 = vld [vmem:[%s203 + $0x1308] sm:$0xff]
        %v867 = vld [vmem:[%s203 + $0x1310] sm:$0xff]
        %v868 = vld [vmem:[%s203 + $0x1318] sm:$0xff]
        %v869 = vld [vmem:[%s203 + $0x1320] sm:$0xff]
        %v870 = vld [vmem:[%s203 + $0x1328] sm:$0xff]
        %v871 = vld [vmem:[%s203 + $0x1330] sm:$0xff]
        %v872 = vld [vmem:[%s203 + $0x1338] sm:$0xff]
        %v873 = vld [vmem:[%s203 + $0x1340] sm:$0xff]
        %v874 = vld [vmem:[%s203 + $0x1348] sm:$0xff]
        %v875 = vld [vmem:[%s203 + $0x1350] sm:$0xff]
        %v876 = vld [vmem:[%s203 + $0x1358] sm:$0xff]
        %v877 = vld [vmem:[%s203 + $0x1360] sm:$0xff]
        %v878 = vld [vmem:[%s203 + $0x1368] sm:$0xff]
        %v879 = vld [vmem:[%s203 + $0x1370] sm:$0xff]
        %v880 = vld [vmem:[%s203 + $0x1378] sm:$0xff]
        %v881 = vld [vmem:[%s203 + $0x1380] sm:$0xff]
        %v882 = vld [vmem:[%s203 + $0x1388] sm:$0xff]
        %v883 = vld [vmem:[%s203 + $0x1390] sm:$0xff]
        %v884 = vld [vmem:[%s203 + $0x1398] sm:$0xff]
        %v885 = vld [vmem:[%s203 + $0x13a0] sm:$0xff]
        %v886 = vld [vmem:[%s203 + $0x13a8] sm:$0xff]
        %v887 = vld [vmem:[%s203 + $0x13b0] sm:$0xff]
        %v888 = vld [vmem:[%s203 + $0x13b8] sm:$0xff]
        %v889 = vld [vmem:[%s203 + $0x13c0] sm:$0xff]
        %v890 = vld [vmem:[%s203 + $0x13c8] sm:$0xff]
        %v891 = vld [vmem:[%s203 + $0x13d0] sm:$0xff]
        %v892 = vld [vmem:[%s203 + $0x13d8] sm:$0xff]
        %v893 = vld [vmem:[%s203 + $0x13e0] sm:$0xff]
        %v894 = vld [vmem:[%s203 + $0x13e8] sm:$0xff]
        %v895 = vld [vmem:[%s203 + $0x13f0] sm:$0xff]
        %v896 = vld [vmem:[%s203 + $0x13f8] sm:$0xff]
        %v897 = vld [vmem:[%s203 + $0x1400] sm:$0xff]
        %v898 = vld [vmem:[%s203 + $0x1408] sm:$0xff]
        %v899 = vld [vmem:[%s203 + $0x1410] sm:$0xff]
        %v900 = vld [vmem:[%s203 + $0x1418] sm:$0xff]
        %v901 = vld [vmem:[%s203 + $0x1420] sm:$0xff]
        %v902 = vld [vmem:[%s203 + $0x1428] sm:$0xff]
        %v903 = vld [vmem:[%s203 + $0x1430] sm:$0xff]
        %v904 = vld [vmem:[%s203 + $0x1438] sm:$0xff]
        %v905 = vld [vmem:[%s203 + $0x1440] sm:$0xff]
        %v906 = vld [vmem:[%s203 + $0x1448] sm:$0xff]
        %v907 = vld [vmem:[%s203 + $0x1450] sm:$0xff]
        %v908 = vld [vmem:[%s203 + $0x1458] sm:$0xff]
        %v909 = vld [vmem:[%s203 + $0x1460] sm:$0xff]
        %v910 = vld [vmem:[%s203 + $0x1468] sm:$0xff]
        %v911 = vld [vmem:[%s203 + $0x1470] sm:$0xff]
        %v912 = vld [vmem:[%s203 + $0x1478] sm:$0xff]
        %v913 = vld [vmem:[%s203 + $0x1480] sm:$0xff]
        %v914 = vld [vmem:[%s203 + $0x1488] sm:$0xff]
        %v915 = vld [vmem:[%s203 + $0x1490] sm:$0xff]
        %v916 = vld [vmem:[%s203 + $0x1498] sm:$0xff]
        %v917 = vld [vmem:[%s203 + $0x14a0] sm:$0xff]
        %v918 = vld [vmem:[%s203 + $0x14a8] sm:$0xff]
        %v919 = vld [vmem:[%s203 + $0x14b0] sm:$0xff]
        %v920 = vld [vmem:[%s203 + $0x14b8] sm:$0xff]
        %v921 = vld [vmem:[%s203 + $0x14c0] sm:$0xff]
        %v922 = vld [vmem:[%s203 + $0x14c8] sm:$0xff]
        %v923 = vld [vmem:[%s203 + $0x14d0] sm:$0xff]
        %v924 = vld [vmem:[%s203 + $0x14d8] sm:$0xff]
        %v925 = vld [vmem:[%s203 + $0x14e0] sm:$0xff]
        %v926 = vld [vmem:[%s203 + $0x14e8] sm:$0xff]
        %v927 = vld [vmem:[%s203 + $0x14f0] sm:$0xff]
        %v928 = vld [vmem:[%s203 + $0x14f8] sm:$0xff]
        %v929 = vld [vmem:[%s203 + $0x1500] sm:$0xff]
        %v930 = vld [vmem:[%s203 + $0x1508] sm:$0xff]
        %v931 = vld [vmem:[%s203 + $0x1510] sm:$0xff]
        %v932 = vld [vmem:[%s203 + $0x1518] sm:$0xff]
        %v933 = vld [vmem:[%s203 + $0x1520] sm:$0xff]
        %v934 = vld [vmem:[%s203 + $0x1528] sm:$0xff]
        %v935 = vld [vmem:[%s203 + $0x1530] sm:$0xff]
        %v936 = vld [vmem:[%s203 + $0x1538] sm:$0xff]
        %v937 = vld [vmem:[%s203 + $0x1540] sm:$0xff]
        %v938 = vld [vmem:[%s203 + $0x1548] sm:$0xff]
        %v939 = vld [vmem:[%s203 + $0x1550] sm:$0xff]
        %v940 = vld [vmem:[%s203 + $0x1558] sm:$0xff]
        %v941 = vld [vmem:[%s203 + $0x1560] sm:$0xff]
        %v942 = vld [vmem:[%s203 + $0x1568] sm:$0xff]
        %v943 = vld [vmem:[%s203 + $0x1570] sm:$0xff]
        %v944 = vld [vmem:[%s203 + $0x1578] sm:$0xff]
        %v945 = vld [vmem:[%s203 + $0x1580] sm:$0xff]
        %v946 = vld [vmem:[%s203 + $0x1588] sm:$0xff]
        %v947 = vld [vmem:[%s203 + $0x1590] sm:$0xff]
        %v948 = vld [vmem:[%s203 + $0x1598] sm:$0xff]
        %v949 = vld [vmem:[%s203 + $0x15a0] sm:$0xff]
        %v950 = vld [vmem:[%s203 + $0x15a8] sm:$0xff]
        %v951 = vld [vmem:[%s203 + $0x15b0] sm:$0xff]
        %v952 = vld [vmem:[%s203 + $0x15b8] sm:$0xff]
        %v953 = vld [vmem:[%s203 + $0x15c0] sm:$0xff]
        %v954 = vld [vmem:[%s203 + $0x15c8] sm:$0xff]
        %v955 = vld [vmem:[%s203 + $0x15d0] sm:$0xff]
        %v956 = vld [vmem:[%s203 + $0x15d8] sm:$0xff]
        %v957 = vld [vmem:[%s203 + $0x15e0] sm:$0xff]
        %v958 = vld [vmem:[%s203 + $0x15e8] sm:$0xff]
        %v959 = vld [vmem:[%s203 + $0x15f0] sm:$0xff]
        %v960 = vld [vmem:[%s203 + $0x15f8] sm:$0xff]
        %v961 = vld [vmem:[%s203 + $0x1600] sm:$0xff]
        %v962 = vld [vmem:[%s203 + $0x1608] sm:$0xff]
        %v963 = vld [vmem:[%s203 + $0x1610] sm:$0xff]
        %v964 = vld [vmem:[%s203 + $0x1618] sm:$0xff]
        %v965 = vld [vmem:[%s203 + $0x1620] sm:$0xff]
        %v966 = vld [vmem:[%s203 + $0x1628] sm:$0xff]
        %v967 = vld [vmem:[%s203 + $0x1630] sm:$0xff]
        %v968 = vld [vmem:[%s203 + $0x1638] sm:$0xff]
        %v969 = vld [vmem:[%s203 + $0x1640] sm:$0xff]
        %v970 = vld [vmem:[%s203 + $0x1648] sm:$0xff]
        %v971 = vld [vmem:[%s203 + $0x1650] sm:$0xff]
        %v972 = vld [vmem:[%s203 + $0x1658] sm:$0xff]
        %v973 = vld [vmem:[%s203 + $0x1660] sm:$0xff]
        %v974 = vld [vmem:[%s203 + $0x1668] sm:$0xff]
        %v975 = vld [vmem:[%s203 + $0x1670] sm:$0xff]
        %v976 = vld [vmem:[%s203 + $0x1678] sm:$0xff]
        %v977 = vld [vmem:[%s203 + $0x1680] sm:$0xff]
        %v978 = vld [vmem:[%s203 + $0x1688] sm:$0xff]
        %v979 = vld [vmem:[%s203 + $0x1690] sm:$0xff]
        %v980 = vld [vmem:[%s203 + $0x1698] sm:$0xff]
        %v981 = vld [vmem:[%s203 + $0x16a0] sm:$0xff]
        %v982 = vld [vmem:[%s203 + $0x16a8] sm:$0xff]
        %v983 = vld [vmem:[%s203 + $0x16b0] sm:$0xff]
        %v984 = vld [vmem:[%s203 + $0x16b8] sm:$0xff]
        %v985 = vld [vmem:[%s203 + $0x16c0] sm:$0xff]
        %v986 = vld [vmem:[%s203 + $0x16c8] sm:$0xff]
        %v987 = vld [vmem:[%s203 + $0x16d0] sm:$0xff]
        %v988 = vld [vmem:[%s203 + $0x16d8] sm:$0xff]
        %v989 = vld [vmem:[%s203 + $0x16e0] sm:$0xff]
        %v990 = vld [vmem:[%s203 + $0x16e8] sm:$0xff]
        %v991 = vld [vmem:[%s203 + $0x16f0] sm:$0xff]
        %v992 = vld [vmem:[%s203 + $0x16f8] sm:$0xff]
        %v993 = vld [vmem:[%s203 + $0x1700] sm:$0xff]
        %v994 = vld [vmem:[%s203 + $0x1708] sm:$0xff]
        %v995 = vld [vmem:[%s203 + $0x1710] sm:$0xff]
        %v996 = vld [vmem:[%s203 + $0x1718] sm:$0xff]
        %v997 = vld [vmem:[%s203 + $0x1720] sm:$0xff]
        %v998 = vld [vmem:[%s203 + $0x1728] sm:$0xff]
        %v999 = vld [vmem:[%s203 + $0x1730] sm:$0xff]
        %v1000 = vld [vmem:[%s203 + $0x1738] sm:$0xff]
        %v1001 = vld [vmem:[%s203 + $0x1740] sm:$0xff]
        %v1002 = vld [vmem:[%s203 + $0x1748] sm:$0xff]
        %v1003 = vld [vmem:[%s203 + $0x1750] sm:$0xff]
        %v1004 = vld [vmem:[%s203 + $0x1758] sm:$0xff]
        %v1005 = vld [vmem:[%s203 + $0x1760] sm:$0xff]
        %v1006 = vld [vmem:[%s203 + $0x1768] sm:$0xff]
        %v1007 = vld [vmem:[%s203 + $0x1770] sm:$0xff]
        %v1008 = vld [vmem:[%s203 + $0x1778] sm:$0xff]
        %v1009 = vld [vmem:[%s203 + $0x1780] sm:$0xff]
        %v1010 = vld [vmem:[%s203 + $0x1788] sm:$0xff]
        %v1011 = vld [vmem:[%s203 + $0x1790] sm:$0xff]
        %v1012 = vld [vmem:[%s203 + $0x1798] sm:$0xff]
        %v1013 = vld [vmem:[%s203 + $0x17a0] sm:$0xff]
        %v1014 = vld [vmem:[%s203 + $0x17a8] sm:$0xff]
        %v1015 = vld [vmem:[%s203 + $0x17b0] sm:$0xff]
        %v1016 = vld [vmem:[%s203 + $0x17b8] sm:$0xff]
        %v1017 = vld [vmem:[%s203 + $0x17c0] sm:$0xff]
        %v1018 = vld [vmem:[%s203 + $0x17c8] sm:$0xff]
        %v1019 = vld [vmem:[%s203 + $0x17d0] sm:$0xff]
        %v1020 = vld [vmem:[%s203 + $0x17d8] sm:$0xff]
        %v1021 = vld [vmem:[%s203 + $0x17e0] sm:$0xff]
        %v1022 = vld [vmem:[%s203 + $0x17e8] sm:$0xff]
        %v1023 = vld [vmem:[%s203 + $0x17f0] sm:$0xff]
        %v1024 = vld [vmem:[%s203 + $0x17f8] sm:$0xff]
        %v1025 = vld [vmem:[%s213] sm:$0xf]
        %v1027 = vperm.slane %v1025, 0
        %v1028 = vperm.slane %v1025, 1
        %v1029 = vperm.slane %v1025, 2
        %v1030 = vperm.slane %v1025, 3
        %v1047 = vunpack.c.l.b16 %v245
        %v1048 = vunpack.c.h.b16 %v245
        %v1049 = vunpack.c.l.b16 %v246
        %v1050 = vunpack.c.h.b16 %v246
        %v1051 = vunpack.c.l.b16 %v247
        %v1052 = vunpack.c.h.b16 %v247
        %v1053 = vunpack.c.l.b16 %v248
        %v1054 = vunpack.c.h.b16 %v248
        %v1055 = vunpack.c.l.b16 %v249
        %v1056 = vunpack.c.h.b16 %v249
        %v1057 = vunpack.c.l.b16 %v250
        %v1058 = vunpack.c.h.b16 %v250
        %v1059 = vunpack.c.l.b16 %v251
        %v1060 = vunpack.c.h.b16 %v251
        %v1061 = vunpack.c.l.b16 %v252
        %v1062 = vunpack.c.h.b16 %v252
        %v1063 = vunpack.c.l.b16 %v253
        %v1064 = vunpack.c.h.b16 %v253
        %v1065 = vunpack.c.l.b16 %v254
        %v1066 = vunpack.c.h.b16 %v254
        %v1067 = vunpack.c.l.b16 %v255
        %v1068 = vunpack.c.h.b16 %v255
        %v1069 = vunpack.c.l.b16 %v256
        %v1070 = vunpack.c.h.b16 %v256
        %v1071 = vpack.c.b16 %v1047, %v1047
        %v1072 = vpack.c.b16 %v1048, %v1048
        %v1073 = vpack.c.b16 %v1049, %v1049
        %v1074 = vpack.c.b16 %v1050, %v1050
        %v1075 = vpack.c.b16 %v1051, %v1051
        %v1076 = vpack.c.b16 %v1052, %v1052
        %v1077 = vpack.c.b16 %v1053, %v1053
        %v1078 = vpack.c.b16 %v1054, %v1054
        %v1079 = vpack.c.b16 %v1055, %v1055
        %v1080 = vpack.c.b16 %v1056, %v1056
        %v1081 = vpack.c.b16 %v1057, %v1057
        %v1082 = vpack.c.b16 %v1058, %v1058
        %v1083 = vpack.c.b16 %v1059, %v1059
        %v1084 = vpack.c.b16 %v1060, %v1060
        %v1085 = vpack.c.b16 %v1061, %v1061
        %v1086 = vpack.c.b16 %v1062, %v1062
        %v1087 = vpack.c.b16 %v1063, %v1063
        %v1088 = vpack.c.b16 %v1064, %v1064
        %v1089 = vpack.c.b16 %v1065, %v1065
        %v1090 = vpack.c.b16 %v1066, %v1066
        %v1091 = vpack.c.b16 %v1067, %v1067
        %v1092 = vpack.c.b16 %v1068, %v1068
        %v1093 = vpack.c.b16 %v1069, %v1069
        %v1094 = vpack.c.b16 %v1070, %v1070
        %v1887 = vunpack.c.l.b16 %v257
        %v1888 = vunpack.c.h.b16 %v257
        %v1889 = vunpack.c.l.b16 %v258
        %v1890 = vunpack.c.h.b16 %v258
        %v1891 = vunpack.c.l.b16 %v259
        %v1892 = vunpack.c.h.b16 %v259
        %v1893 = vunpack.c.l.b16 %v260
        %v1894 = vunpack.c.h.b16 %v260
        %v1895 = vunpack.c.l.b16 %v261
        %v1896 = vunpack.c.h.b16 %v261
        %v1897 = vunpack.c.l.b16 %v262
        %v1898 = vunpack.c.h.b16 %v262
        %v1899 = vunpack.c.l.b16 %v263
        %v1900 = vunpack.c.h.b16 %v263
        %v1901 = vunpack.c.l.b16 %v264
        %v1902 = vunpack.c.h.b16 %v264
        %v1903 = vunpack.c.l.b16 %v265
        %v1904 = vunpack.c.h.b16 %v265
        %v1905 = vunpack.c.l.b16 %v266
        %v1906 = vunpack.c.h.b16 %v266
        %v1907 = vunpack.c.l.b16 %v267
        %v1908 = vunpack.c.h.b16 %v267
        %v1909 = vunpack.c.l.b16 %v268
        %v1910 = vunpack.c.h.b16 %v268
        %v1911 = vunpack.c.l.b16 %v269
        %v1912 = vunpack.c.h.b16 %v269
        %v1913 = vunpack.c.l.b16 %v270
        %v1914 = vunpack.c.h.b16 %v270
        %v1915 = vunpack.c.l.b16 %v271
        %v1916 = vunpack.c.h.b16 %v271
        %v1917 = vunpack.c.l.b16 %v272
        %v1918 = vunpack.c.h.b16 %v272
        %v1919 = vunpack.c.l.b16 %v273
        %v1920 = vunpack.c.h.b16 %v273
        %v1921 = vunpack.c.l.b16 %v274
        %v1922 = vunpack.c.h.b16 %v274
        %v1923 = vunpack.c.l.b16 %v275
        %v1924 = vunpack.c.h.b16 %v275
        %v1925 = vunpack.c.l.b16 %v276
        %v1926 = vunpack.c.h.b16 %v276
        %v1927 = vunpack.c.l.b16 %v277
        %v1928 = vunpack.c.h.b16 %v277
        %v1929 = vunpack.c.l.b16 %v278
        %v1930 = vunpack.c.h.b16 %v278
        %v1931 = vunpack.c.l.b16 %v279
        %v1932 = vunpack.c.h.b16 %v279
        %v1933 = vunpack.c.l.b16 %v280
        %v1934 = vunpack.c.h.b16 %v280
        %v1935 = vunpack.c.l.b16 %v281
        %v1936 = vunpack.c.h.b16 %v281
        %v1937 = vunpack.c.l.b16 %v282
        %v1938 = vunpack.c.h.b16 %v282
        %v1939 = vunpack.c.l.b16 %v283
        %v1940 = vunpack.c.h.b16 %v283
        %v1941 = vunpack.c.l.b16 %v284
        %v1942 = vunpack.c.h.b16 %v284
        %v1943 = vunpack.c.l.b16 %v285
        %v1944 = vunpack.c.h.b16 %v285
        %v1945 = vunpack.c.l.b16 %v286
        %v1946 = vunpack.c.h.b16 %v286
        %v1947 = vunpack.c.l.b16 %v287
        %v1948 = vunpack.c.h.b16 %v287
        %v1949 = vunpack.c.l.b16 %v288
        %v1950 = vunpack.c.h.b16 %v288
        %v1951 = vunpack.c.l.b16 %v289
        %v1952 = vunpack.c.h.b16 %v289
        %v1953 = vunpack.c.l.b16 %v290
        %v1954 = vunpack.c.h.b16 %v290
        %v1955 = vunpack.c.l.b16 %v291
        %v1956 = vunpack.c.h.b16 %v291
        %v1957 = vunpack.c.l.b16 %v292
        %v1958 = vunpack.c.h.b16 %v292
        %v1959 = vunpack.c.l.b16 %v293
        %v1960 = vunpack.c.h.b16 %v293
        %v1961 = vunpack.c.l.b16 %v294
        %v1962 = vunpack.c.h.b16 %v294
        %v1963 = vunpack.c.l.b16 %v295
        %v1964 = vunpack.c.h.b16 %v295
        %v1965 = vunpack.c.l.b16 %v296
        %v1966 = vunpack.c.h.b16 %v296
        %v1967 = vunpack.c.l.b16 %v297
        %v1968 = vunpack.c.h.b16 %v297
        %v1969 = vunpack.c.l.b16 %v298
        %v1970 = vunpack.c.h.b16 %v298
        %v1971 = vunpack.c.l.b16 %v299
        %v1972 = vunpack.c.h.b16 %v299
        %v1973 = vunpack.c.l.b16 %v300
        %v1974 = vunpack.c.h.b16 %v300
        %v1975 = vunpack.c.l.b16 %v301
        %v1976 = vunpack.c.h.b16 %v301
        %v1977 = vunpack.c.l.b16 %v302
        %v1978 = vunpack.c.h.b16 %v302
        %v1979 = vunpack.c.l.b16 %v303
        %v1980 = vunpack.c.h.b16 %v303
        %v1981 = vunpack.c.l.b16 %v304
        %v1982 = vunpack.c.h.b16 %v304
        %v1983 = vunpack.c.l.b16 %v305
        %v1984 = vunpack.c.h.b16 %v305
        %v1985 = vunpack.c.l.b16 %v306
        %v1986 = vunpack.c.h.b16 %v306
        %v1987 = vunpack.c.l.b16 %v307
        %v1988 = vunpack.c.h.b16 %v307
        %v1989 = vunpack.c.l.b16 %v308
        %v1990 = vunpack.c.h.b16 %v308
        %v1991 = vunpack.c.l.b16 %v309
        %v1992 = vunpack.c.h.b16 %v309
        %v1993 = vunpack.c.l.b16 %v310
        %v1994 = vunpack.c.h.b16 %v310
        %v1995 = vunpack.c.l.b16 %v311
        %v1996 = vunpack.c.h.b16 %v311
        %v1997 = vunpack.c.l.b16 %v312
        %v1998 = vunpack.c.h.b16 %v312
        %v1999 = vunpack.c.l.b16 %v313
        %v2000 = vunpack.c.h.b16 %v313
        %v2001 = vunpack.c.l.b16 %v314
        %v2002 = vunpack.c.h.b16 %v314
        %v2003 = vunpack.c.l.b16 %v315
        %v2004 = vunpack.c.h.b16 %v315
        %v2005 = vunpack.c.l.b16 %v316
        %v2006 = vunpack.c.h.b16 %v316
        %v2007 = vunpack.c.l.b16 %v317
        %v2008 = vunpack.c.h.b16 %v317
        %v2009 = vunpack.c.l.b16 %v318
        %v2010 = vunpack.c.h.b16 %v318
        %v2011 = vunpack.c.l.b16 %v319
        %v2012 = vunpack.c.h.b16 %v319
        %v2013 = vunpack.c.l.b16 %v320
        %v2014 = vunpack.c.h.b16 %v320
        %v2015 = vunpack.c.l.b16 %v321
        %v2016 = vunpack.c.h.b16 %v321
        %v2017 = vunpack.c.l.b16 %v322
        %v2018 = vunpack.c.h.b16 %v322
        %v2019 = vunpack.c.l.b16 %v323
        %v2020 = vunpack.c.h.b16 %v323
        %v2021 = vunpack.c.l.b16 %v324
        %v2022 = vunpack.c.h.b16 %v324
        %v2023 = vunpack.c.l.b16 %v325
        %v2024 = vunpack.c.h.b16 %v325
        %v2025 = vunpack.c.l.b16 %v326
        %v2026 = vunpack.c.h.b16 %v326
        %v2027 = vunpack.c.l.b16 %v327
        %v2028 = vunpack.c.h.b16 %v327
        %v2029 = vunpack.c.l.b16 %v328
        %v2030 = vunpack.c.h.b16 %v328
        %v2031 = vunpack.c.l.b16 %v329
        %v2032 = vunpack.c.h.b16 %v329
        %v2033 = vunpack.c.l.b16 %v330
        %v2034 = vunpack.c.h.b16 %v330
        %v2035 = vunpack.c.l.b16 %v331
        %v2036 = vunpack.c.h.b16 %v331
        %v2037 = vunpack.c.l.b16 %v332
        %v2038 = vunpack.c.h.b16 %v332
        %v2039 = vunpack.c.l.b16 %v333
        %v2040 = vunpack.c.h.b16 %v333
        %v2041 = vunpack.c.l.b16 %v334
        %v2042 = vunpack.c.h.b16 %v334
        %v2043 = vunpack.c.l.b16 %v335
        %v2044 = vunpack.c.h.b16 %v335
        %v2045 = vunpack.c.l.b16 %v336
        %v2046 = vunpack.c.h.b16 %v336
        %v2047 = vunpack.c.l.b16 %v337
        %v2048 = vunpack.c.h.b16 %v337
        %v2049 = vunpack.c.l.b16 %v338
        %v2050 = vunpack.c.h.b16 %v338
        %v2051 = vunpack.c.l.b16 %v339
        %v2052 = vunpack.c.h.b16 %v339
        %v2053 = vunpack.c.l.b16 %v340
        %v2054 = vunpack.c.h.b16 %v340
        %v2055 = vunpack.c.l.b16 %v341
        %v2056 = vunpack.c.h.b16 %v341
        %v2057 = vunpack.c.l.b16 %v342
        %v2058 = vunpack.c.h.b16 %v342
        %v2059 = vunpack.c.l.b16 %v343
        %v2060 = vunpack.c.h.b16 %v343
        %v2061 = vunpack.c.l.b16 %v344
        %v2062 = vunpack.c.h.b16 %v344
        %v2063 = vunpack.c.l.b16 %v345
        %v2064 = vunpack.c.h.b16 %v345
        %v2065 = vunpack.c.l.b16 %v346
        %v2066 = vunpack.c.h.b16 %v346
        %v2067 = vunpack.c.l.b16 %v347
        %v2068 = vunpack.c.h.b16 %v347
        %v2069 = vunpack.c.l.b16 %v348
        %v2070 = vunpack.c.h.b16 %v348
        %v2071 = vunpack.c.l.b16 %v349
        %v2072 = vunpack.c.h.b16 %v349
        %v2073 = vunpack.c.l.b16 %v350
        %v2074 = vunpack.c.h.b16 %v350
        %v2075 = vunpack.c.l.b16 %v351
        %v2076 = vunpack.c.h.b16 %v351
        %v2077 = vunpack.c.l.b16 %v352
        %v2078 = vunpack.c.h.b16 %v352
        %v2079 = vunpack.c.l.b16 %v353
        %v2080 = vunpack.c.h.b16 %v353
        %v2081 = vunpack.c.l.b16 %v354
        %v2082 = vunpack.c.h.b16 %v354
        %v2083 = vunpack.c.l.b16 %v355
        %v2084 = vunpack.c.h.b16 %v355
        %v2085 = vunpack.c.l.b16 %v356
        %v2086 = vunpack.c.h.b16 %v356
        %v2087 = vunpack.c.l.b16 %v357
        %v2088 = vunpack.c.h.b16 %v357
        %v2089 = vunpack.c.l.b16 %v358
        %v2090 = vunpack.c.h.b16 %v358
        %v2091 = vunpack.c.l.b16 %v359
        %v2092 = vunpack.c.h.b16 %v359
        %v2093 = vunpack.c.l.b16 %v360
        %v2094 = vunpack.c.h.b16 %v360
        %v2095 = vunpack.c.l.b16 %v361
        %v2096 = vunpack.c.h.b16 %v361
        %v2097 = vunpack.c.l.b16 %v362
        %v2098 = vunpack.c.h.b16 %v362
        %v2099 = vunpack.c.l.b16 %v363
        %v2100 = vunpack.c.h.b16 %v363
        %v2101 = vunpack.c.l.b16 %v364
        %v2102 = vunpack.c.h.b16 %v364
        %v2103 = vunpack.c.l.b16 %v365
        %v2104 = vunpack.c.h.b16 %v365
        %v2105 = vunpack.c.l.b16 %v366
        %v2106 = vunpack.c.h.b16 %v366
        %v2107 = vunpack.c.l.b16 %v367
        %v2108 = vunpack.c.h.b16 %v367
        %v2109 = vunpack.c.l.b16 %v368
        %v2110 = vunpack.c.h.b16 %v368
        %v2111 = vunpack.c.l.b16 %v369
        %v2112 = vunpack.c.h.b16 %v369
        %v2113 = vunpack.c.l.b16 %v370
        %v2114 = vunpack.c.h.b16 %v370
        %v2115 = vunpack.c.l.b16 %v371
        %v2116 = vunpack.c.h.b16 %v371
        %v2117 = vunpack.c.l.b16 %v372
        %v2118 = vunpack.c.h.b16 %v372
        %v2119 = vunpack.c.l.b16 %v373
        %v2120 = vunpack.c.h.b16 %v373
        %v2121 = vunpack.c.l.b16 %v374
        %v2122 = vunpack.c.h.b16 %v374
        %v2123 = vunpack.c.l.b16 %v375
        %v2124 = vunpack.c.h.b16 %v375
        %v2125 = vunpack.c.l.b16 %v376
        %v2126 = vunpack.c.h.b16 %v376
        %v2127 = vunpack.c.l.b16 %v377
        %v2128 = vunpack.c.h.b16 %v377
        %v2129 = vunpack.c.l.b16 %v378
        %v2130 = vunpack.c.h.b16 %v378
        %v2131 = vunpack.c.l.b16 %v379
        %v2132 = vunpack.c.h.b16 %v379
        %v2133 = vunpack.c.l.b16 %v380
        %v2134 = vunpack.c.h.b16 %v380
        %v2135 = vunpack.c.l.b16 %v381
        %v2136 = vunpack.c.h.b16 %v381
        %v2137 = vunpack.c.l.b16 %v382
        %v2138 = vunpack.c.h.b16 %v382
        %v2139 = vunpack.c.l.b16 %v383
        %v2140 = vunpack.c.h.b16 %v383
        %v2141 = vunpack.c.l.b16 %v384
        %v2142 = vunpack.c.h.b16 %v384
        %v2143 = vunpack.c.l.b16 %v385
        %v2144 = vunpack.c.h.b16 %v385
        %v2145 = vunpack.c.l.b16 %v386
        %v2146 = vunpack.c.h.b16 %v386
        %v2147 = vunpack.c.l.b16 %v387
        %v2148 = vunpack.c.h.b16 %v387
        %v2149 = vunpack.c.l.b16 %v388
        %v2150 = vunpack.c.h.b16 %v388
        %v2151 = vunpack.c.l.b16 %v389
        %v2152 = vunpack.c.h.b16 %v389
        %v2153 = vunpack.c.l.b16 %v390
        %v2154 = vunpack.c.h.b16 %v390
        %v2155 = vunpack.c.l.b16 %v391
        %v2156 = vunpack.c.h.b16 %v391
        %v2157 = vunpack.c.l.b16 %v392
        %v2158 = vunpack.c.h.b16 %v392
        %v2159 = vunpack.c.l.b16 %v393
        %v2160 = vunpack.c.h.b16 %v393
        %v2161 = vunpack.c.l.b16 %v394
        %v2162 = vunpack.c.h.b16 %v394
        %v2163 = vunpack.c.l.b16 %v395
        %v2164 = vunpack.c.h.b16 %v395
        %v2165 = vunpack.c.l.b16 %v396
        %v2166 = vunpack.c.h.b16 %v396
        %v2167 = vunpack.c.l.b16 %v397
        %v2168 = vunpack.c.h.b16 %v397
        %v2169 = vunpack.c.l.b16 %v398
        %v2170 = vunpack.c.h.b16 %v398
        %v2171 = vunpack.c.l.b16 %v399
        %v2172 = vunpack.c.h.b16 %v399
        %v2173 = vunpack.c.l.b16 %v400
        %v2174 = vunpack.c.h.b16 %v400
        %v2175 = vunpack.c.l.b16 %v401
        %v2176 = vunpack.c.h.b16 %v401
        %v2177 = vunpack.c.l.b16 %v402
        %v2178 = vunpack.c.h.b16 %v402
        %v2179 = vunpack.c.l.b16 %v403
        %v2180 = vunpack.c.h.b16 %v403
        %v2181 = vunpack.c.l.b16 %v404
        %v2182 = vunpack.c.h.b16 %v404
        %v2183 = vunpack.c.l.b16 %v405
        %v2184 = vunpack.c.h.b16 %v405
        %v2185 = vunpack.c.l.b16 %v406
        %v2186 = vunpack.c.h.b16 %v406
        %v2187 = vunpack.c.l.b16 %v407
        %v2188 = vunpack.c.h.b16 %v407
        %v2189 = vunpack.c.l.b16 %v408
        %v2190 = vunpack.c.h.b16 %v408
        %v2191 = vunpack.c.l.b16 %v409
        %v2192 = vunpack.c.h.b16 %v409
        %v2193 = vunpack.c.l.b16 %v410
        %v2194 = vunpack.c.h.b16 %v410
        %v2195 = vunpack.c.l.b16 %v411
        %v2196 = vunpack.c.h.b16 %v411
        %v2197 = vunpack.c.l.b16 %v412
        %v2198 = vunpack.c.h.b16 %v412
        %v2199 = vunpack.c.l.b16 %v413
        %v2200 = vunpack.c.h.b16 %v413
        %v2201 = vunpack.c.l.b16 %v414
        %v2202 = vunpack.c.h.b16 %v414
        %v2203 = vunpack.c.l.b16 %v415
        %v2204 = vunpack.c.h.b16 %v415
        %v2205 = vunpack.c.l.b16 %v416
        %v2206 = vunpack.c.h.b16 %v416
        %v2207 = vunpack.c.l.b16 %v417
        %v2208 = vunpack.c.h.b16 %v417
        %v2209 = vunpack.c.l.b16 %v418
        %v2210 = vunpack.c.h.b16 %v418
        %v2211 = vunpack.c.l.b16 %v419
        %v2212 = vunpack.c.h.b16 %v419
        %v2213 = vunpack.c.l.b16 %v420
        %v2214 = vunpack.c.h.b16 %v420
        %v2215 = vunpack.c.l.b16 %v421
        %v2216 = vunpack.c.h.b16 %v421
        %v2217 = vunpack.c.l.b16 %v422
        %v2218 = vunpack.c.h.b16 %v422
        %v2219 = vunpack.c.l.b16 %v423
        %v2220 = vunpack.c.h.b16 %v423
        %v2221 = vunpack.c.l.b16 %v424
        %v2222 = vunpack.c.h.b16 %v424
        %v2223 = vunpack.c.l.b16 %v425
        %v2224 = vunpack.c.h.b16 %v425
        %v2225 = vunpack.c.l.b16 %v426
        %v2226 = vunpack.c.h.b16 %v426
        %v2227 = vunpack.c.l.b16 %v427
        %v2228 = vunpack.c.h.b16 %v427
        %v2229 = vunpack.c.l.b16 %v428
        %v2230 = vunpack.c.h.b16 %v428
        %v2231 = vunpack.c.l.b16 %v429
        %v2232 = vunpack.c.h.b16 %v429
        %v2233 = vunpack.c.l.b16 %v430
        %v2234 = vunpack.c.h.b16 %v430
        %v2235 = vunpack.c.l.b16 %v431
        %v2236 = vunpack.c.h.b16 %v431
        %v2237 = vunpack.c.l.b16 %v432
        %v2238 = vunpack.c.h.b16 %v432
        %v2239 = vunpack.c.l.b16 %v433
        %v2240 = vunpack.c.h.b16 %v433
        %v2241 = vunpack.c.l.b16 %v434
        %v2242 = vunpack.c.h.b16 %v434
        %v2243 = vunpack.c.l.b16 %v435
        %v2244 = vunpack.c.h.b16 %v435
        %v2245 = vunpack.c.l.b16 %v436
        %v2246 = vunpack.c.h.b16 %v436
        %v2247 = vunpack.c.l.b16 %v437
        %v2248 = vunpack.c.h.b16 %v437
        %v2249 = vunpack.c.l.b16 %v438
        %v2250 = vunpack.c.h.b16 %v438
        %v2251 = vunpack.c.l.b16 %v439
        %v2252 = vunpack.c.h.b16 %v439
        %v2253 = vunpack.c.l.b16 %v440
        %v2254 = vunpack.c.h.b16 %v440
        %v2255 = vunpack.c.l.b16 %v441
        %v2256 = vunpack.c.h.b16 %v441
        %v2257 = vunpack.c.l.b16 %v442
        %v2258 = vunpack.c.h.b16 %v442
        %v2259 = vunpack.c.l.b16 %v443
        %v2260 = vunpack.c.h.b16 %v443
        %v2261 = vunpack.c.l.b16 %v444
        %v2262 = vunpack.c.h.b16 %v444
        %v2263 = vunpack.c.l.b16 %v445
        %v2264 = vunpack.c.h.b16 %v445
        %v2265 = vunpack.c.l.b16 %v446
        %v2266 = vunpack.c.h.b16 %v446
        %v2267 = vunpack.c.l.b16 %v447
        %v2268 = vunpack.c.h.b16 %v447
        %v2269 = vunpack.c.l.b16 %v448
        %v2270 = vunpack.c.h.b16 %v448
        %v2271 = vunpack.c.l.b16 %v449
        %v2272 = vunpack.c.h.b16 %v449
        %v2273 = vunpack.c.l.b16 %v450
        %v2274 = vunpack.c.h.b16 %v450
        %v2275 = vunpack.c.l.b16 %v451
        %v2276 = vunpack.c.h.b16 %v451
        %v2277 = vunpack.c.l.b16 %v452
        %v2278 = vunpack.c.h.b16 %v452
        %v2279 = vunpack.c.l.b16 %v453
        %v2280 = vunpack.c.h.b16 %v453
        %v2281 = vunpack.c.l.b16 %v454
        %v2282 = vunpack.c.h.b16 %v454
        %v2283 = vunpack.c.l.b16 %v455
        %v2284 = vunpack.c.h.b16 %v455
        %v2285 = vunpack.c.l.b16 %v456
        %v2286 = vunpack.c.h.b16 %v456
        %v2287 = vunpack.c.l.b16 %v457
        %v2288 = vunpack.c.h.b16 %v457
        %v2289 = vunpack.c.l.b16 %v458
        %v2290 = vunpack.c.h.b16 %v458
        %v2291 = vunpack.c.l.b16 %v459
        %v2292 = vunpack.c.h.b16 %v459
        %v2293 = vunpack.c.l.b16 %v460
        %v2294 = vunpack.c.h.b16 %v460
        %v2295 = vunpack.c.l.b16 %v461
        %v2296 = vunpack.c.h.b16 %v461
        %v2297 = vunpack.c.l.b16 %v462
        %v2298 = vunpack.c.h.b16 %v462
        %v2299 = vunpack.c.l.b16 %v463
        %v2300 = vunpack.c.h.b16 %v463
        %v2301 = vunpack.c.l.b16 %v464
        %v2302 = vunpack.c.h.b16 %v464
        %v2303 = vunpack.c.l.b16 %v465
        %v2304 = vunpack.c.h.b16 %v465
        %v2305 = vunpack.c.l.b16 %v466
        %v2306 = vunpack.c.h.b16 %v466
        %v2307 = vunpack.c.l.b16 %v467
        %v2308 = vunpack.c.h.b16 %v467
        %v2309 = vunpack.c.l.b16 %v468
        %v2310 = vunpack.c.h.b16 %v468
        %v2311 = vunpack.c.l.b16 %v469
        %v2312 = vunpack.c.h.b16 %v469
        %v2313 = vunpack.c.l.b16 %v470
        %v2314 = vunpack.c.h.b16 %v470
        %v2315 = vunpack.c.l.b16 %v471
        %v2316 = vunpack.c.h.b16 %v471
        %v2317 = vunpack.c.l.b16 %v472
        %v2318 = vunpack.c.h.b16 %v472
        %v2319 = vunpack.c.l.b16 %v473
        %v2320 = vunpack.c.h.b16 %v473
        %v2321 = vunpack.c.l.b16 %v474
        %v2322 = vunpack.c.h.b16 %v474
        %v2323 = vunpack.c.l.b16 %v475
        %v2324 = vunpack.c.h.b16 %v475
        %v2325 = vunpack.c.l.b16 %v476
        %v2326 = vunpack.c.h.b16 %v476
        %v2327 = vunpack.c.l.b16 %v477
        %v2328 = vunpack.c.h.b16 %v477
        %v2329 = vunpack.c.l.b16 %v478
        %v2330 = vunpack.c.h.b16 %v478
        %v2331 = vunpack.c.l.b16 %v479
        %v2332 = vunpack.c.h.b16 %v479
        %v2333 = vunpack.c.l.b16 %v480
        %v2334 = vunpack.c.h.b16 %v480
        %v2335 = vunpack.c.l.b16 %v481
        %v2336 = vunpack.c.h.b16 %v481
        %v2337 = vunpack.c.l.b16 %v482
        %v2338 = vunpack.c.h.b16 %v482
        %v2339 = vunpack.c.l.b16 %v483
        %v2340 = vunpack.c.h.b16 %v483
        %v2341 = vunpack.c.l.b16 %v484
        %v2342 = vunpack.c.h.b16 %v484
        %v2343 = vunpack.c.l.b16 %v485
        %v2344 = vunpack.c.h.b16 %v485
        %v2345 = vunpack.c.l.b16 %v486
        %v2346 = vunpack.c.h.b16 %v486
        %v2347 = vunpack.c.l.b16 %v487
        %v2348 = vunpack.c.h.b16 %v487
        %v2349 = vunpack.c.l.b16 %v488
        %v2350 = vunpack.c.h.b16 %v488
        %v2351 = vunpack.c.l.b16 %v489
        %v2352 = vunpack.c.h.b16 %v489
        %v2353 = vunpack.c.l.b16 %v490
        %v2354 = vunpack.c.h.b16 %v490
        %v2355 = vunpack.c.l.b16 %v491
        %v2356 = vunpack.c.h.b16 %v491
        %v2357 = vunpack.c.l.b16 %v492
        %v2358 = vunpack.c.h.b16 %v492
        %v2359 = vunpack.c.l.b16 %v493
        %v2360 = vunpack.c.h.b16 %v493
        %v2361 = vunpack.c.l.b16 %v494
        %v2362 = vunpack.c.h.b16 %v494
        %v2363 = vunpack.c.l.b16 %v495
        %v2364 = vunpack.c.h.b16 %v495
        %v2365 = vunpack.c.l.b16 %v496
        %v2366 = vunpack.c.h.b16 %v496
        %v2367 = vunpack.c.l.b16 %v497
        %v2368 = vunpack.c.h.b16 %v497
        %v2369 = vunpack.c.l.b16 %v498
        %v2370 = vunpack.c.h.b16 %v498
        %v2371 = vunpack.c.l.b16 %v499
        %v2372 = vunpack.c.h.b16 %v499
        %v2373 = vunpack.c.l.b16 %v500
        %v2374 = vunpack.c.h.b16 %v500
        %v2375 = vunpack.c.l.b16 %v501
        %v2376 = vunpack.c.h.b16 %v501
        %v2377 = vunpack.c.l.b16 %v502
        %v2378 = vunpack.c.h.b16 %v502
        %v2379 = vunpack.c.l.b16 %v503
        %v2380 = vunpack.c.h.b16 %v503
        %v2381 = vunpack.c.l.b16 %v504
        %v2382 = vunpack.c.h.b16 %v504
        %v2383 = vunpack.c.l.b16 %v505
        %v2384 = vunpack.c.h.b16 %v505
        %v2385 = vunpack.c.l.b16 %v506
        %v2386 = vunpack.c.h.b16 %v506
        %v2387 = vunpack.c.l.b16 %v507
        %v2388 = vunpack.c.h.b16 %v507
        %v2389 = vunpack.c.l.b16 %v508
        %v2390 = vunpack.c.h.b16 %v508
        %v2391 = vunpack.c.l.b16 %v509
        %v2392 = vunpack.c.h.b16 %v509
        %v2393 = vunpack.c.l.b16 %v510
        %v2394 = vunpack.c.h.b16 %v510
        %v2395 = vunpack.c.l.b16 %v511
        %v2396 = vunpack.c.h.b16 %v511
        %v2397 = vunpack.c.l.b16 %v512
        %v2398 = vunpack.c.h.b16 %v512
        %v2399 = vunpack.c.l.b16 %v513
        %v2400 = vunpack.c.h.b16 %v513
        %v2401 = vunpack.c.l.b16 %v514
        %v2402 = vunpack.c.h.b16 %v514
        %v2403 = vunpack.c.l.b16 %v515
        %v2404 = vunpack.c.h.b16 %v515
        %v2405 = vunpack.c.l.b16 %v516
        %v2406 = vunpack.c.h.b16 %v516
        %v2407 = vunpack.c.l.b16 %v517
        %v2408 = vunpack.c.h.b16 %v517
        %v2409 = vunpack.c.l.b16 %v518
        %v2410 = vunpack.c.h.b16 %v518
        %v2411 = vunpack.c.l.b16 %v519
        %v2412 = vunpack.c.h.b16 %v519
        %v2413 = vunpack.c.l.b16 %v520
        %v2414 = vunpack.c.h.b16 %v520
        %v2415 = vunpack.c.l.b16 %v521
        %v2416 = vunpack.c.h.b16 %v521
        %v2417 = vunpack.c.l.b16 %v522
        %v2418 = vunpack.c.h.b16 %v522
        %v2419 = vunpack.c.l.b16 %v523
        %v2420 = vunpack.c.h.b16 %v523
        %v2421 = vunpack.c.l.b16 %v524
        %v2422 = vunpack.c.h.b16 %v524
        %v2423 = vunpack.c.l.b16 %v525
        %v2424 = vunpack.c.h.b16 %v525
        %v2425 = vunpack.c.l.b16 %v526
        %v2426 = vunpack.c.h.b16 %v526
        %v2427 = vunpack.c.l.b16 %v527
        %v2428 = vunpack.c.h.b16 %v527
        %v2429 = vunpack.c.l.b16 %v528
        %v2430 = vunpack.c.h.b16 %v528
        %v2431 = vunpack.c.l.b16 %v529
        %v2432 = vunpack.c.h.b16 %v529
        %v2433 = vunpack.c.l.b16 %v530
        %v2434 = vunpack.c.h.b16 %v530
        %v2435 = vunpack.c.l.b16 %v531
        %v2436 = vunpack.c.h.b16 %v531
        %v2437 = vunpack.c.l.b16 %v532
        %v2438 = vunpack.c.h.b16 %v532
        %v2439 = vunpack.c.l.b16 %v533
        %v2440 = vunpack.c.h.b16 %v533
        %v2441 = vunpack.c.l.b16 %v534
        %v2442 = vunpack.c.h.b16 %v534
        %v2443 = vunpack.c.l.b16 %v535
        %v2444 = vunpack.c.h.b16 %v535
        %v2445 = vunpack.c.l.b16 %v536
        %v2446 = vunpack.c.h.b16 %v536
        %v2447 = vunpack.c.l.b16 %v537
        %v2448 = vunpack.c.h.b16 %v537
        %v2449 = vunpack.c.l.b16 %v538
        %v2450 = vunpack.c.h.b16 %v538
        %v2451 = vunpack.c.l.b16 %v539
        %v2452 = vunpack.c.h.b16 %v539
        %v2453 = vunpack.c.l.b16 %v540
        %v2454 = vunpack.c.h.b16 %v540
        %v2455 = vunpack.c.l.b16 %v541
        %v2456 = vunpack.c.h.b16 %v541
        %v2457 = vunpack.c.l.b16 %v542
        %v2458 = vunpack.c.h.b16 %v542
        %v2459 = vunpack.c.l.b16 %v543
        %v2460 = vunpack.c.h.b16 %v543
        %v2461 = vunpack.c.l.b16 %v544
        %v2462 = vunpack.c.h.b16 %v544
        %v2463 = vunpack.c.l.b16 %v545
        %v2464 = vunpack.c.h.b16 %v545
        %v2465 = vunpack.c.l.b16 %v546
        %v2466 = vunpack.c.h.b16 %v546
        %v2467 = vunpack.c.l.b16 %v547
        %v2468 = vunpack.c.h.b16 %v547
        %v2469 = vunpack.c.l.b16 %v548
        %v2470 = vunpack.c.h.b16 %v548
        %v2471 = vunpack.c.l.b16 %v549
        %v2472 = vunpack.c.h.b16 %v549
        %v2473 = vunpack.c.l.b16 %v550
        %v2474 = vunpack.c.h.b16 %v550
        %v2475 = vunpack.c.l.b16 %v551
        %v2476 = vunpack.c.h.b16 %v551
        %v2477 = vunpack.c.l.b16 %v552
        %v2478 = vunpack.c.h.b16 %v552
        %v2479 = vunpack.c.l.b16 %v553
        %v2480 = vunpack.c.h.b16 %v553
        %v2481 = vunpack.c.l.b16 %v554
        %v2482 = vunpack.c.h.b16 %v554
        %v2483 = vunpack.c.l.b16 %v555
        %v2484 = vunpack.c.h.b16 %v555
        %v2485 = vunpack.c.l.b16 %v556
        %v2486 = vunpack.c.h.b16 %v556
        %v2487 = vunpack.c.l.b16 %v557
        %v2488 = vunpack.c.h.b16 %v557
        %v2489 = vunpack.c.l.b16 %v558
        %v2490 = vunpack.c.h.b16 %v558
        %v2491 = vunpack.c.l.b16 %v559
        %v2492 = vunpack.c.h.b16 %v559
        %v2493 = vunpack.c.l.b16 %v560
        %v2494 = vunpack.c.h.b16 %v560
        %v2495 = vunpack.c.l.b16 %v561
        %v2496 = vunpack.c.h.b16 %v561
        %v2497 = vunpack.c.l.b16 %v562
        %v2498 = vunpack.c.h.b16 %v562
        %v2499 = vunpack.c.l.b16 %v563
        %v2500 = vunpack.c.h.b16 %v563
        %v2501 = vunpack.c.l.b16 %v564
        %v2502 = vunpack.c.h.b16 %v564
        %v2503 = vunpack.c.l.b16 %v565
        %v2504 = vunpack.c.h.b16 %v565
        %v2505 = vunpack.c.l.b16 %v566
        %v2506 = vunpack.c.h.b16 %v566
        %v2507 = vunpack.c.l.b16 %v567
        %v2508 = vunpack.c.h.b16 %v567
        %v2509 = vunpack.c.l.b16 %v568
        %v2510 = vunpack.c.h.b16 %v568
        %v2511 = vunpack.c.l.b16 %v569
        %v2512 = vunpack.c.h.b16 %v569
        %v2513 = vunpack.c.l.b16 %v570
        %v2514 = vunpack.c.h.b16 %v570
        %v2515 = vunpack.c.l.b16 %v571
        %v2516 = vunpack.c.h.b16 %v571
        %v2517 = vunpack.c.l.b16 %v572
        %v2518 = vunpack.c.h.b16 %v572
        %v2519 = vunpack.c.l.b16 %v573
        %v2520 = vunpack.c.h.b16 %v573
        %v2521 = vunpack.c.l.b16 %v574
        %v2522 = vunpack.c.h.b16 %v574
        %v2523 = vunpack.c.l.b16 %v575
        %v2524 = vunpack.c.h.b16 %v575
        %v2525 = vunpack.c.l.b16 %v576
        %v2526 = vunpack.c.h.b16 %v576
        %v2527 = vunpack.c.l.b16 %v577
        %v2528 = vunpack.c.h.b16 %v577
        %v2529 = vunpack.c.l.b16 %v578
        %v2530 = vunpack.c.h.b16 %v578
        %v2531 = vunpack.c.l.b16 %v579
        %v2532 = vunpack.c.h.b16 %v579
        %v2533 = vunpack.c.l.b16 %v580
        %v2534 = vunpack.c.h.b16 %v580
        %v2535 = vunpack.c.l.b16 %v581
        %v2536 = vunpack.c.h.b16 %v581
        %v2537 = vunpack.c.l.b16 %v582
        %v2538 = vunpack.c.h.b16 %v582
        %v2539 = vunpack.c.l.b16 %v583
        %v2540 = vunpack.c.h.b16 %v583
        %v2541 = vunpack.c.l.b16 %v584
        %v2542 = vunpack.c.h.b16 %v584
        %v2543 = vunpack.c.l.b16 %v585
        %v2544 = vunpack.c.h.b16 %v585
        %v2545 = vunpack.c.l.b16 %v586
        %v2546 = vunpack.c.h.b16 %v586
        %v2547 = vunpack.c.l.b16 %v587
        %v2548 = vunpack.c.h.b16 %v587
        %v2549 = vunpack.c.l.b16 %v588
        %v2550 = vunpack.c.h.b16 %v588
        %v2551 = vunpack.c.l.b16 %v589
        %v2552 = vunpack.c.h.b16 %v589
        %v2553 = vunpack.c.l.b16 %v590
        %v2554 = vunpack.c.h.b16 %v590
        %v2555 = vunpack.c.l.b16 %v591
        %v2556 = vunpack.c.h.b16 %v591
        %v2557 = vunpack.c.l.b16 %v592
        %v2558 = vunpack.c.h.b16 %v592
        %v2559 = vunpack.c.l.b16 %v593
        %v2560 = vunpack.c.h.b16 %v593
        %v2561 = vunpack.c.l.b16 %v594
        %v2562 = vunpack.c.h.b16 %v594
        %v2563 = vunpack.c.l.b16 %v595
        %v2564 = vunpack.c.h.b16 %v595
        %v2565 = vunpack.c.l.b16 %v596
        %v2566 = vunpack.c.h.b16 %v596
        %v2567 = vunpack.c.l.b16 %v597
        %v2568 = vunpack.c.h.b16 %v597
        %v2569 = vunpack.c.l.b16 %v598
        %v2570 = vunpack.c.h.b16 %v598
        %v2571 = vunpack.c.l.b16 %v599
        %v2572 = vunpack.c.h.b16 %v599
        %v2573 = vunpack.c.l.b16 %v600
        %v2574 = vunpack.c.h.b16 %v600
        %v2575 = vunpack.c.l.b16 %v601
        %v2576 = vunpack.c.h.b16 %v601
        %v2577 = vunpack.c.l.b16 %v602
        %v2578 = vunpack.c.h.b16 %v602
        %v2579 = vunpack.c.l.b16 %v603
        %v2580 = vunpack.c.h.b16 %v603
        %v2581 = vunpack.c.l.b16 %v604
        %v2582 = vunpack.c.h.b16 %v604
        %v2583 = vunpack.c.l.b16 %v605
        %v2584 = vunpack.c.h.b16 %v605
        %v2585 = vunpack.c.l.b16 %v606
        %v2586 = vunpack.c.h.b16 %v606
        %v2587 = vunpack.c.l.b16 %v607
        %v2588 = vunpack.c.h.b16 %v607
        %v2589 = vunpack.c.l.b16 %v608
        %v2590 = vunpack.c.h.b16 %v608
        %v2591 = vunpack.c.l.b16 %v609
        %v2592 = vunpack.c.h.b16 %v609
        %v2593 = vunpack.c.l.b16 %v610
        %v2594 = vunpack.c.h.b16 %v610
        %v2595 = vunpack.c.l.b16 %v611
        %v2596 = vunpack.c.h.b16 %v611
        %v2597 = vunpack.c.l.b16 %v612
        %v2598 = vunpack.c.h.b16 %v612
        %v2599 = vunpack.c.l.b16 %v613
        %v2600 = vunpack.c.h.b16 %v613
        %v2601 = vunpack.c.l.b16 %v614
        %v2602 = vunpack.c.h.b16 %v614
        %v2603 = vunpack.c.l.b16 %v615
        %v2604 = vunpack.c.h.b16 %v615
        %v2605 = vunpack.c.l.b16 %v616
        %v2606 = vunpack.c.h.b16 %v616
        %v2607 = vunpack.c.l.b16 %v617
        %v2608 = vunpack.c.h.b16 %v617
        %v2609 = vunpack.c.l.b16 %v618
        %v2610 = vunpack.c.h.b16 %v618
        %v2611 = vunpack.c.l.b16 %v619
        %v2612 = vunpack.c.h.b16 %v619
        %v2613 = vunpack.c.l.b16 %v620
        %v2614 = vunpack.c.h.b16 %v620
        %v2615 = vunpack.c.l.b16 %v621
        %v2616 = vunpack.c.h.b16 %v621
        %v2617 = vunpack.c.l.b16 %v622
        %v2618 = vunpack.c.h.b16 %v622
        %v2619 = vunpack.c.l.b16 %v623
        %v2620 = vunpack.c.h.b16 %v623
        %v2621 = vunpack.c.l.b16 %v624
        %v2622 = vunpack.c.h.b16 %v624
        %v2623 = vunpack.c.l.b16 %v625
        %v2624 = vunpack.c.h.b16 %v625
        %v2625 = vunpack.c.l.b16 %v626
        %v2626 = vunpack.c.h.b16 %v626
        %v2627 = vunpack.c.l.b16 %v627
        %v2628 = vunpack.c.h.b16 %v627
        %v2629 = vunpack.c.l.b16 %v628
        %v2630 = vunpack.c.h.b16 %v628
        %v2631 = vunpack.c.l.b16 %v629
        %v2632 = vunpack.c.h.b16 %v629
        %v2633 = vunpack.c.l.b16 %v630
        %v2634 = vunpack.c.h.b16 %v630
        %v2635 = vunpack.c.l.b16 %v631
        %v2636 = vunpack.c.h.b16 %v631
        %v2637 = vunpack.c.l.b16 %v632
        %v2638 = vunpack.c.h.b16 %v632
        %v2639 = vunpack.c.l.b16 %v633
        %v2640 = vunpack.c.h.b16 %v633
        %v2641 = vunpack.c.l.b16 %v634
        %v2642 = vunpack.c.h.b16 %v634
        %v2643 = vunpack.c.l.b16 %v635
        %v2644 = vunpack.c.h.b16 %v635
        %v2645 = vunpack.c.l.b16 %v636
        %v2646 = vunpack.c.h.b16 %v636
        %v2647 = vunpack.c.l.b16 %v637
        %v2648 = vunpack.c.h.b16 %v637
        %v2649 = vunpack.c.l.b16 %v638
        %v2650 = vunpack.c.h.b16 %v638
        %v2651 = vunpack.c.l.b16 %v639
        %v2652 = vunpack.c.h.b16 %v639
        %v2653 = vunpack.c.l.b16 %v640
        %v2654 = vunpack.c.h.b16 %v640
        %v2655 = vunpack.c.l.b16 %v641
        %v2656 = vunpack.c.h.b16 %v641
        %v2657 = vunpack.c.l.b16 %v642
        %v2658 = vunpack.c.h.b16 %v642
        %v2659 = vunpack.c.l.b16 %v643
        %v2660 = vunpack.c.h.b16 %v643
        %v2661 = vunpack.c.l.b16 %v644
        %v2662 = vunpack.c.h.b16 %v644
        %v2663 = vunpack.c.l.b16 %v645
        %v2664 = vunpack.c.h.b16 %v645
        %v2665 = vunpack.c.l.b16 %v646
        %v2666 = vunpack.c.h.b16 %v646
        %v2667 = vunpack.c.l.b16 %v647
        %v2668 = vunpack.c.h.b16 %v647
        %v2669 = vunpack.c.l.b16 %v648
        %v2670 = vunpack.c.h.b16 %v648
        %v2671 = vunpack.c.l.b16 %v649
        %v2672 = vunpack.c.h.b16 %v649
        %v2673 = vunpack.c.l.b16 %v650
        %v2674 = vunpack.c.h.b16 %v650
        %v2675 = vunpack.c.l.b16 %v651
        %v2676 = vunpack.c.h.b16 %v651
        %v2677 = vunpack.c.l.b16 %v652
        %v2678 = vunpack.c.h.b16 %v652
        %v2679 = vunpack.c.l.b16 %v653
        %v2680 = vunpack.c.h.b16 %v653
        %v2681 = vunpack.c.l.b16 %v654
        %v2682 = vunpack.c.h.b16 %v654
        %v2683 = vunpack.c.l.b16 %v655
        %v2684 = vunpack.c.h.b16 %v655
        %v2685 = vunpack.c.l.b16 %v656
        %v2686 = vunpack.c.h.b16 %v656
        %v2687 = vunpack.c.l.b16 %v657
        %v2688 = vunpack.c.h.b16 %v657
        %v2689 = vunpack.c.l.b16 %v658
        %v2690 = vunpack.c.h.b16 %v658
        %v2691 = vunpack.c.l.b16 %v659
        %v2692 = vunpack.c.h.b16 %v659
        %v2693 = vunpack.c.l.b16 %v660
        %v2694 = vunpack.c.h.b16 %v660
        %v2695 = vunpack.c.l.b16 %v661
        %v2696 = vunpack.c.h.b16 %v661
        %v2697 = vunpack.c.l.b16 %v662
        %v2698 = vunpack.c.h.b16 %v662
        %v2699 = vunpack.c.l.b16 %v663
        %v2700 = vunpack.c.h.b16 %v663
        %v2701 = vunpack.c.l.b16 %v664
        %v2702 = vunpack.c.h.b16 %v664
        %v2703 = vunpack.c.l.b16 %v665
        %v2704 = vunpack.c.h.b16 %v665
        %v2705 = vunpack.c.l.b16 %v666
        %v2706 = vunpack.c.h.b16 %v666
        %v2707 = vunpack.c.l.b16 %v667
        %v2708 = vunpack.c.h.b16 %v667
        %v2709 = vunpack.c.l.b16 %v668
        %v2710 = vunpack.c.h.b16 %v668
        %v2711 = vunpack.c.l.b16 %v669
        %v2712 = vunpack.c.h.b16 %v669
        %v2713 = vunpack.c.l.b16 %v670
        %v2714 = vunpack.c.h.b16 %v670
        %v2715 = vunpack.c.l.b16 %v671
        %v2716 = vunpack.c.h.b16 %v671
        %v2717 = vunpack.c.l.b16 %v672
        %v2718 = vunpack.c.h.b16 %v672
        %v2719 = vunpack.c.l.b16 %v673
        %v2720 = vunpack.c.h.b16 %v673
        %v2721 = vunpack.c.l.b16 %v674
        %v2722 = vunpack.c.h.b16 %v674
        %v2723 = vunpack.c.l.b16 %v675
        %v2724 = vunpack.c.h.b16 %v675
        %v2725 = vunpack.c.l.b16 %v676
        %v2726 = vunpack.c.h.b16 %v676
        %v2727 = vunpack.c.l.b16 %v677
        %v2728 = vunpack.c.h.b16 %v677
        %v2729 = vunpack.c.l.b16 %v678
        %v2730 = vunpack.c.h.b16 %v678
        %v2731 = vunpack.c.l.b16 %v679
        %v2732 = vunpack.c.h.b16 %v679
        %v2733 = vunpack.c.l.b16 %v680
        %v2734 = vunpack.c.h.b16 %v680
        %v2735 = vunpack.c.l.b16 %v681
        %v2736 = vunpack.c.h.b16 %v681
        %v2737 = vunpack.c.l.b16 %v682
        %v2738 = vunpack.c.h.b16 %v682
        %v2739 = vunpack.c.l.b16 %v683
        %v2740 = vunpack.c.h.b16 %v683
        %v2741 = vunpack.c.l.b16 %v684
        %v2742 = vunpack.c.h.b16 %v684
        %v2743 = vunpack.c.l.b16 %v685
        %v2744 = vunpack.c.h.b16 %v685
        %v2745 = vunpack.c.l.b16 %v686
        %v2746 = vunpack.c.h.b16 %v686
        %v2747 = vunpack.c.l.b16 %v687
        %v2748 = vunpack.c.h.b16 %v687
        %v2749 = vunpack.c.l.b16 %v688
        %v2750 = vunpack.c.h.b16 %v688
        %v2751 = vunpack.c.l.b16 %v689
        %v2752 = vunpack.c.h.b16 %v689
        %v2753 = vunpack.c.l.b16 %v690
        %v2754 = vunpack.c.h.b16 %v690
        %v2755 = vunpack.c.l.b16 %v691
        %v2756 = vunpack.c.h.b16 %v691
        %v2757 = vunpack.c.l.b16 %v692
        %v2758 = vunpack.c.h.b16 %v692
        %v2759 = vunpack.c.l.b16 %v693
        %v2760 = vunpack.c.h.b16 %v693
        %v2761 = vunpack.c.l.b16 %v694
        %v2762 = vunpack.c.h.b16 %v694
        %v2763 = vunpack.c.l.b16 %v695
        %v2764 = vunpack.c.h.b16 %v695
        %v2765 = vunpack.c.l.b16 %v696
        %v2766 = vunpack.c.h.b16 %v696
        %v2767 = vunpack.c.l.b16 %v697
        %v2768 = vunpack.c.h.b16 %v697
        %v2769 = vunpack.c.l.b16 %v698
        %v2770 = vunpack.c.h.b16 %v698
        %v2771 = vunpack.c.l.b16 %v699
        %v2772 = vunpack.c.h.b16 %v699
        %v2773 = vunpack.c.l.b16 %v700
        %v2774 = vunpack.c.h.b16 %v700
        %v2775 = vunpack.c.l.b16 %v701
        %v2776 = vunpack.c.h.b16 %v701
        %v2777 = vunpack.c.l.b16 %v702
        %v2778 = vunpack.c.h.b16 %v702
        %v2779 = vunpack.c.l.b16 %v703
        %v2780 = vunpack.c.h.b16 %v703
        %v2781 = vunpack.c.l.b16 %v704
        %v2782 = vunpack.c.h.b16 %v704
        %v2783 = vunpack.c.l.b16 %v705
        %v2784 = vunpack.c.h.b16 %v705
        %v2785 = vunpack.c.l.b16 %v706
        %v2786 = vunpack.c.h.b16 %v706
        %v2787 = vunpack.c.l.b16 %v707
        %v2788 = vunpack.c.h.b16 %v707
        %v2789 = vunpack.c.l.b16 %v708
        %v2790 = vunpack.c.h.b16 %v708
        %v2791 = vunpack.c.l.b16 %v709
        %v2792 = vunpack.c.h.b16 %v709
        %v2793 = vunpack.c.l.b16 %v710
        %v2794 = vunpack.c.h.b16 %v710
        %v2795 = vunpack.c.l.b16 %v711
        %v2796 = vunpack.c.h.b16 %v711
        %v2797 = vunpack.c.l.b16 %v712
        %v2798 = vunpack.c.h.b16 %v712
        %v2799 = vunpack.c.l.b16 %v713
        %v2800 = vunpack.c.h.b16 %v713
        %v2801 = vunpack.c.l.b16 %v714
        %v2802 = vunpack.c.h.b16 %v714
        %v2803 = vunpack.c.l.b16 %v715
        %v2804 = vunpack.c.h.b16 %v715
        %v2805 = vunpack.c.l.b16 %v716
        %v2806 = vunpack.c.h.b16 %v716
        %v2807 = vunpack.c.l.b16 %v717
        %v2808 = vunpack.c.h.b16 %v717
        %v2809 = vunpack.c.l.b16 %v718
        %v2810 = vunpack.c.h.b16 %v718
        %v2811 = vunpack.c.l.b16 %v719
        %v2812 = vunpack.c.h.b16 %v719
        %v2813 = vunpack.c.l.b16 %v720
        %v2814 = vunpack.c.h.b16 %v720
        %v2815 = vunpack.c.l.b16 %v721
        %v2816 = vunpack.c.h.b16 %v721
        %v2817 = vunpack.c.l.b16 %v722
        %v2818 = vunpack.c.h.b16 %v722
        %v2819 = vunpack.c.l.b16 %v723
        %v2820 = vunpack.c.h.b16 %v723
        %v2821 = vunpack.c.l.b16 %v724
        %v2822 = vunpack.c.h.b16 %v724
        %v2823 = vunpack.c.l.b16 %v725
        %v2824 = vunpack.c.h.b16 %v725
        %v2825 = vunpack.c.l.b16 %v726
        %v2826 = vunpack.c.h.b16 %v726
        %v2827 = vunpack.c.l.b16 %v727
        %v2828 = vunpack.c.h.b16 %v727
        %v2829 = vunpack.c.l.b16 %v728
        %v2830 = vunpack.c.h.b16 %v728
        %v2831 = vunpack.c.l.b16 %v729
        %v2832 = vunpack.c.h.b16 %v729
        %v2833 = vunpack.c.l.b16 %v730
        %v2834 = vunpack.c.h.b16 %v730
        %v2835 = vunpack.c.l.b16 %v731
        %v2836 = vunpack.c.h.b16 %v731
        %v2837 = vunpack.c.l.b16 %v732
        %v2838 = vunpack.c.h.b16 %v732
        %v2839 = vunpack.c.l.b16 %v733
        %v2840 = vunpack.c.h.b16 %v733
        %v2841 = vunpack.c.l.b16 %v734
        %v2842 = vunpack.c.h.b16 %v734
        %v2843 = vunpack.c.l.b16 %v735
        %v2844 = vunpack.c.h.b16 %v735
        %v2845 = vunpack.c.l.b16 %v736
        %v2846 = vunpack.c.h.b16 %v736
        %v2847 = vunpack.c.l.b16 %v737
        %v2848 = vunpack.c.h.b16 %v737
        %v2849 = vunpack.c.l.b16 %v738
        %v2850 = vunpack.c.h.b16 %v738
        %v2851 = vunpack.c.l.b16 %v739
        %v2852 = vunpack.c.h.b16 %v739
        %v2853 = vunpack.c.l.b16 %v740
        %v2854 = vunpack.c.h.b16 %v740
        %v2855 = vunpack.c.l.b16 %v741
        %v2856 = vunpack.c.h.b16 %v741
        %v2857 = vunpack.c.l.b16 %v742
        %v2858 = vunpack.c.h.b16 %v742
        %v2859 = vunpack.c.l.b16 %v743
        %v2860 = vunpack.c.h.b16 %v743
        %v2861 = vunpack.c.l.b16 %v744
        %v2862 = vunpack.c.h.b16 %v744
        %v2863 = vunpack.c.l.b16 %v745
        %v2864 = vunpack.c.h.b16 %v745
        %v2865 = vunpack.c.l.b16 %v746
        %v2866 = vunpack.c.h.b16 %v746
        %v2867 = vunpack.c.l.b16 %v747
        %v2868 = vunpack.c.h.b16 %v747
        %v2869 = vunpack.c.l.b16 %v748
        %v2870 = vunpack.c.h.b16 %v748
        %v2871 = vunpack.c.l.b16 %v749
        %v2872 = vunpack.c.h.b16 %v749
        %v2873 = vunpack.c.l.b16 %v750
        %v2874 = vunpack.c.h.b16 %v750
        %v2875 = vunpack.c.l.b16 %v751
        %v2876 = vunpack.c.h.b16 %v751
        %v2877 = vunpack.c.l.b16 %v752
        %v2878 = vunpack.c.h.b16 %v752
        %v2879 = vunpack.c.l.b16 %v753
        %v2880 = vunpack.c.h.b16 %v753
        %v2881 = vunpack.c.l.b16 %v754
        %v2882 = vunpack.c.h.b16 %v754
        %v2883 = vunpack.c.l.b16 %v755
        %v2884 = vunpack.c.h.b16 %v755
        %v2885 = vunpack.c.l.b16 %v756
        %v2886 = vunpack.c.h.b16 %v756
        %v2887 = vunpack.c.l.b16 %v757
        %v2888 = vunpack.c.h.b16 %v757
        %v2889 = vunpack.c.l.b16 %v758
        %v2890 = vunpack.c.h.b16 %v758
        %v2891 = vunpack.c.l.b16 %v759
        %v2892 = vunpack.c.h.b16 %v759
        %v2893 = vunpack.c.l.b16 %v760
        %v2894 = vunpack.c.h.b16 %v760
        %v2895 = vunpack.c.l.b16 %v761
        %v2896 = vunpack.c.h.b16 %v761
        %v2897 = vunpack.c.l.b16 %v762
        %v2898 = vunpack.c.h.b16 %v762
        %v2899 = vunpack.c.l.b16 %v763
        %v2900 = vunpack.c.h.b16 %v763
        %v2901 = vunpack.c.l.b16 %v764
        %v2902 = vunpack.c.h.b16 %v764
        %v2903 = vunpack.c.l.b16 %v765
        %v2904 = vunpack.c.h.b16 %v765
        %v2905 = vunpack.c.l.b16 %v766
        %v2906 = vunpack.c.h.b16 %v766
        %v2907 = vunpack.c.l.b16 %v767
        %v2908 = vunpack.c.h.b16 %v767
        %v2909 = vunpack.c.l.b16 %v768
        %v2910 = vunpack.c.h.b16 %v768
        %v2911 = vunpack.c.l.b16 %v769
        %v2912 = vunpack.c.h.b16 %v769
        %v2913 = vunpack.c.l.b16 %v770
        %v2914 = vunpack.c.h.b16 %v770
        %v2915 = vunpack.c.l.b16 %v771
        %v2916 = vunpack.c.h.b16 %v771
        %v2917 = vunpack.c.l.b16 %v772
        %v2918 = vunpack.c.h.b16 %v772
        %v2919 = vunpack.c.l.b16 %v773
        %v2920 = vunpack.c.h.b16 %v773
        %v2921 = vunpack.c.l.b16 %v774
        %v2922 = vunpack.c.h.b16 %v774
        %v2923 = vunpack.c.l.b16 %v775
        %v2924 = vunpack.c.h.b16 %v775
        %v2925 = vunpack.c.l.b16 %v776
        %v2926 = vunpack.c.h.b16 %v776
        %v2927 = vunpack.c.l.b16 %v777
        %v2928 = vunpack.c.h.b16 %v777
        %v2929 = vunpack.c.l.b16 %v778
        %v2930 = vunpack.c.h.b16 %v778
        %v2931 = vunpack.c.l.b16 %v779
        %v2932 = vunpack.c.h.b16 %v779
        %v2933 = vunpack.c.l.b16 %v780
        %v2934 = vunpack.c.h.b16 %v780
        %v2935 = vunpack.c.l.b16 %v781
        %v2936 = vunpack.c.h.b16 %v781
        %v2937 = vunpack.c.l.b16 %v782
        %v2938 = vunpack.c.h.b16 %v782
        %v2939 = vunpack.c.l.b16 %v783
        %v2940 = vunpack.c.h.b16 %v783
        %v2941 = vunpack.c.l.b16 %v784
        %v2942 = vunpack.c.h.b16 %v784
        %v2943 = vunpack.c.l.b16 %v785
        %v2944 = vunpack.c.h.b16 %v785
        %v2945 = vunpack.c.l.b16 %v786
        %v2946 = vunpack.c.h.b16 %v786
        %v2947 = vunpack.c.l.b16 %v787
        %v2948 = vunpack.c.h.b16 %v787
        %v2949 = vunpack.c.l.b16 %v788
        %v2950 = vunpack.c.h.b16 %v788
        %v2951 = vunpack.c.l.b16 %v789
        %v2952 = vunpack.c.h.b16 %v789
        %v2953 = vunpack.c.l.b16 %v790
        %v2954 = vunpack.c.h.b16 %v790
        %v2955 = vunpack.c.l.b16 %v791
        %v2956 = vunpack.c.h.b16 %v791
        %v2957 = vunpack.c.l.b16 %v792
        %v2958 = vunpack.c.h.b16 %v792
        %v2959 = vunpack.c.l.b16 %v793
        %v2960 = vunpack.c.h.b16 %v793
        %v2961 = vunpack.c.l.b16 %v794
        %v2962 = vunpack.c.h.b16 %v794
        %v2963 = vunpack.c.l.b16 %v795
        %v2964 = vunpack.c.h.b16 %v795
        %v2965 = vunpack.c.l.b16 %v796
        %v2966 = vunpack.c.h.b16 %v796
        %v2967 = vunpack.c.l.b16 %v797
        %v2968 = vunpack.c.h.b16 %v797
        %v2969 = vunpack.c.l.b16 %v798
        %v2970 = vunpack.c.h.b16 %v798
        %v2971 = vunpack.c.l.b16 %v799
        %v2972 = vunpack.c.h.b16 %v799
        %v2973 = vunpack.c.l.b16 %v800
        %v2974 = vunpack.c.h.b16 %v800
        %v2975 = vunpack.c.l.b16 %v801
        %v2976 = vunpack.c.h.b16 %v801
        %v2977 = vunpack.c.l.b16 %v802
        %v2978 = vunpack.c.h.b16 %v802
        %v2979 = vunpack.c.l.b16 %v803
        %v2980 = vunpack.c.h.b16 %v803
        %v2981 = vunpack.c.l.b16 %v804
        %v2982 = vunpack.c.h.b16 %v804
        %v2983 = vunpack.c.l.b16 %v805
        %v2984 = vunpack.c.h.b16 %v805
        %v2985 = vunpack.c.l.b16 %v806
        %v2986 = vunpack.c.h.b16 %v806
        %v2987 = vunpack.c.l.b16 %v807
        %v2988 = vunpack.c.h.b16 %v807
        %v2989 = vunpack.c.l.b16 %v808
        %v2990 = vunpack.c.h.b16 %v808
        %v2991 = vunpack.c.l.b16 %v809
        %v2992 = vunpack.c.h.b16 %v809
        %v2993 = vunpack.c.l.b16 %v810
        %v2994 = vunpack.c.h.b16 %v810
        %v2995 = vunpack.c.l.b16 %v811
        %v2996 = vunpack.c.h.b16 %v811
        %v2997 = vunpack.c.l.b16 %v812
        %v2998 = vunpack.c.h.b16 %v812
        %v2999 = vunpack.c.l.b16 %v813
        %v3000 = vunpack.c.h.b16 %v813
        %v3001 = vunpack.c.l.b16 %v814
        %v3002 = vunpack.c.h.b16 %v814
        %v3003 = vunpack.c.l.b16 %v815
        %v3004 = vunpack.c.h.b16 %v815
        %v3005 = vunpack.c.l.b16 %v816
        %v3006 = vunpack.c.h.b16 %v816
        %v3007 = vunpack.c.l.b16 %v817
        %v3008 = vunpack.c.h.b16 %v817
        %v3009 = vunpack.c.l.b16 %v818
        %v3010 = vunpack.c.h.b16 %v818
        %v3011 = vunpack.c.l.b16 %v819
        %v3012 = vunpack.c.h.b16 %v819
        %v3013 = vunpack.c.l.b16 %v820
        %v3014 = vunpack.c.h.b16 %v820
        %v3015 = vunpack.c.l.b16 %v821
        %v3016 = vunpack.c.h.b16 %v821
        %v3017 = vunpack.c.l.b16 %v822
        %v3018 = vunpack.c.h.b16 %v822
        %v3019 = vunpack.c.l.b16 %v823
        %v3020 = vunpack.c.h.b16 %v823
        %v3021 = vunpack.c.l.b16 %v824
        %v3022 = vunpack.c.h.b16 %v824
        %v3023 = vunpack.c.l.b16 %v825
        %v3024 = vunpack.c.h.b16 %v825
        %v3025 = vunpack.c.l.b16 %v826
        %v3026 = vunpack.c.h.b16 %v826
        %v3027 = vunpack.c.l.b16 %v827
        %v3028 = vunpack.c.h.b16 %v827
        %v3029 = vunpack.c.l.b16 %v828
        %v3030 = vunpack.c.h.b16 %v828
        %v3031 = vunpack.c.l.b16 %v829
        %v3032 = vunpack.c.h.b16 %v829
        %v3033 = vunpack.c.l.b16 %v830
        %v3034 = vunpack.c.h.b16 %v830
        %v3035 = vunpack.c.l.b16 %v831
        %v3036 = vunpack.c.h.b16 %v831
        %v3037 = vunpack.c.l.b16 %v832
        %v3038 = vunpack.c.h.b16 %v832
        %v3039 = vunpack.c.l.b16 %v833
        %v3040 = vunpack.c.h.b16 %v833
        %v3041 = vunpack.c.l.b16 %v834
        %v3042 = vunpack.c.h.b16 %v834
        %v3043 = vunpack.c.l.b16 %v835
        %v3044 = vunpack.c.h.b16 %v835
        %v3045 = vunpack.c.l.b16 %v836
        %v3046 = vunpack.c.h.b16 %v836
        %v3047 = vunpack.c.l.b16 %v837
        %v3048 = vunpack.c.h.b16 %v837
        %v3049 = vunpack.c.l.b16 %v838
        %v3050 = vunpack.c.h.b16 %v838
        %v3051 = vunpack.c.l.b16 %v839
        %v3052 = vunpack.c.h.b16 %v839
        %v3053 = vunpack.c.l.b16 %v840
        %v3054 = vunpack.c.h.b16 %v840
        %v3055 = vunpack.c.l.b16 %v841
        %v3056 = vunpack.c.h.b16 %v841
        %v3057 = vunpack.c.l.b16 %v842
        %v3058 = vunpack.c.h.b16 %v842
        %v3059 = vunpack.c.l.b16 %v843
        %v3060 = vunpack.c.h.b16 %v843
        %v3061 = vunpack.c.l.b16 %v844
        %v3062 = vunpack.c.h.b16 %v844
        %v3063 = vunpack.c.l.b16 %v845
        %v3064 = vunpack.c.h.b16 %v845
        %v3065 = vunpack.c.l.b16 %v846
        %v3066 = vunpack.c.h.b16 %v846
        %v3067 = vunpack.c.l.b16 %v847
        %v3068 = vunpack.c.h.b16 %v847
        %v3069 = vunpack.c.l.b16 %v848
        %v3070 = vunpack.c.h.b16 %v848
        %v3071 = vunpack.c.l.b16 %v849
        %v3072 = vunpack.c.h.b16 %v849
        %v3073 = vunpack.c.l.b16 %v850
        %v3074 = vunpack.c.h.b16 %v850
        %v3075 = vunpack.c.l.b16 %v851
        %v3076 = vunpack.c.h.b16 %v851
        %v3077 = vunpack.c.l.b16 %v852
        %v3078 = vunpack.c.h.b16 %v852
        %v3079 = vunpack.c.l.b16 %v853
        %v3080 = vunpack.c.h.b16 %v853
        %v3081 = vunpack.c.l.b16 %v854
        %v3082 = vunpack.c.h.b16 %v854
        %v3083 = vunpack.c.l.b16 %v855
        %v3084 = vunpack.c.h.b16 %v855
        %v3085 = vunpack.c.l.b16 %v856
        %v3086 = vunpack.c.h.b16 %v856
        %v3087 = vunpack.c.l.b16 %v857
        %v3088 = vunpack.c.h.b16 %v857
        %v3089 = vunpack.c.l.b16 %v858
        %v3090 = vunpack.c.h.b16 %v858
        %v3091 = vunpack.c.l.b16 %v859
        %v3092 = vunpack.c.h.b16 %v859
        %v3093 = vunpack.c.l.b16 %v860
        %v3094 = vunpack.c.h.b16 %v860
        %v3095 = vunpack.c.l.b16 %v861
        %v3096 = vunpack.c.h.b16 %v861
        %v3097 = vunpack.c.l.b16 %v862
        %v3098 = vunpack.c.h.b16 %v862
        %v3099 = vunpack.c.l.b16 %v863
        %v3100 = vunpack.c.h.b16 %v863
        %v3101 = vunpack.c.l.b16 %v864
        %v3102 = vunpack.c.h.b16 %v864
        %v3103 = vunpack.c.l.b16 %v865
        %v3104 = vunpack.c.h.b16 %v865
        %v3105 = vunpack.c.l.b16 %v866
        %v3106 = vunpack.c.h.b16 %v866
        %v3107 = vunpack.c.l.b16 %v867
        %v3108 = vunpack.c.h.b16 %v867
        %v3109 = vunpack.c.l.b16 %v868
        %v3110 = vunpack.c.h.b16 %v868
        %v3111 = vunpack.c.l.b16 %v869
        %v3112 = vunpack.c.h.b16 %v869
        %v3113 = vunpack.c.l.b16 %v870
        %v3114 = vunpack.c.h.b16 %v870
        %v3115 = vunpack.c.l.b16 %v871
        %v3116 = vunpack.c.h.b16 %v871
        %v3117 = vunpack.c.l.b16 %v872
        %v3118 = vunpack.c.h.b16 %v872
        %v3119 = vunpack.c.l.b16 %v873
        %v3120 = vunpack.c.h.b16 %v873
        %v3121 = vunpack.c.l.b16 %v874
        %v3122 = vunpack.c.h.b16 %v874
        %v3123 = vunpack.c.l.b16 %v875
        %v3124 = vunpack.c.h.b16 %v875
        %v3125 = vunpack.c.l.b16 %v876
        %v3126 = vunpack.c.h.b16 %v876
        %v3127 = vunpack.c.l.b16 %v877
        %v3128 = vunpack.c.h.b16 %v877
        %v3129 = vunpack.c.l.b16 %v878
        %v3130 = vunpack.c.h.b16 %v878
        %v3131 = vunpack.c.l.b16 %v879
        %v3132 = vunpack.c.h.b16 %v879
        %v3133 = vunpack.c.l.b16 %v880
        %v3134 = vunpack.c.h.b16 %v880
        %v3135 = vunpack.c.l.b16 %v881
        %v3136 = vunpack.c.h.b16 %v881
        %v3137 = vunpack.c.l.b16 %v882
        %v3138 = vunpack.c.h.b16 %v882
        %v3139 = vunpack.c.l.b16 %v883
        %v3140 = vunpack.c.h.b16 %v883
        %v3141 = vunpack.c.l.b16 %v884
        %v3142 = vunpack.c.h.b16 %v884
        %v3143 = vunpack.c.l.b16 %v885
        %v3144 = vunpack.c.h.b16 %v885
        %v3145 = vunpack.c.l.b16 %v886
        %v3146 = vunpack.c.h.b16 %v886
        %v3147 = vunpack.c.l.b16 %v887
        %v3148 = vunpack.c.h.b16 %v887
        %v3149 = vunpack.c.l.b16 %v888
        %v3150 = vunpack.c.h.b16 %v888
        %v3151 = vunpack.c.l.b16 %v889
        %v3152 = vunpack.c.h.b16 %v889
        %v3153 = vunpack.c.l.b16 %v890
        %v3154 = vunpack.c.h.b16 %v890
        %v3155 = vunpack.c.l.b16 %v891
        %v3156 = vunpack.c.h.b16 %v891
        %v3157 = vunpack.c.l.b16 %v892
        %v3158 = vunpack.c.h.b16 %v892
        %v3159 = vunpack.c.l.b16 %v893
        %v3160 = vunpack.c.h.b16 %v893
        %v3161 = vunpack.c.l.b16 %v894
        %v3162 = vunpack.c.h.b16 %v894
        %v3163 = vunpack.c.l.b16 %v895
        %v3164 = vunpack.c.h.b16 %v895
        %v3165 = vunpack.c.l.b16 %v896
        %v3166 = vunpack.c.h.b16 %v896
        %v3167 = vunpack.c.l.b16 %v897
        %v3168 = vunpack.c.h.b16 %v897
        %v3169 = vunpack.c.l.b16 %v898
        %v3170 = vunpack.c.h.b16 %v898
        %v3171 = vunpack.c.l.b16 %v899
        %v3172 = vunpack.c.h.b16 %v899
        %v3173 = vunpack.c.l.b16 %v900
        %v3174 = vunpack.c.h.b16 %v900
        %v3175 = vunpack.c.l.b16 %v901
        %v3176 = vunpack.c.h.b16 %v901
        %v3177 = vunpack.c.l.b16 %v902
        %v3178 = vunpack.c.h.b16 %v902
        %v3179 = vunpack.c.l.b16 %v903
        %v3180 = vunpack.c.h.b16 %v903
        %v3181 = vunpack.c.l.b16 %v904
        %v3182 = vunpack.c.h.b16 %v904
        %v3183 = vunpack.c.l.b16 %v905
        %v3184 = vunpack.c.h.b16 %v905
        %v3185 = vunpack.c.l.b16 %v906
        %v3186 = vunpack.c.h.b16 %v906
        %v3187 = vunpack.c.l.b16 %v907
        %v3188 = vunpack.c.h.b16 %v907
        %v3189 = vunpack.c.l.b16 %v908
        %v3190 = vunpack.c.h.b16 %v908
        %v3191 = vunpack.c.l.b16 %v909
        %v3192 = vunpack.c.h.b16 %v909
        %v3193 = vunpack.c.l.b16 %v910
        %v3194 = vunpack.c.h.b16 %v910
        %v3195 = vunpack.c.l.b16 %v911
        %v3196 = vunpack.c.h.b16 %v911
        %v3197 = vunpack.c.l.b16 %v912
        %v3198 = vunpack.c.h.b16 %v912
        %v3199 = vunpack.c.l.b16 %v913
        %v3200 = vunpack.c.h.b16 %v913
        %v3201 = vunpack.c.l.b16 %v914
        %v3202 = vunpack.c.h.b16 %v914
        %v3203 = vunpack.c.l.b16 %v915
        %v3204 = vunpack.c.h.b16 %v915
        %v3205 = vunpack.c.l.b16 %v916
        %v3206 = vunpack.c.h.b16 %v916
        %v3207 = vunpack.c.l.b16 %v917
        %v3208 = vunpack.c.h.b16 %v917
        %v3209 = vunpack.c.l.b16 %v918
        %v3210 = vunpack.c.h.b16 %v918
        %v3211 = vunpack.c.l.b16 %v919
        %v3212 = vunpack.c.h.b16 %v919
        %v3213 = vunpack.c.l.b16 %v920
        %v3214 = vunpack.c.h.b16 %v920
        %v3215 = vunpack.c.l.b16 %v921
        %v3216 = vunpack.c.h.b16 %v921
        %v3217 = vunpack.c.l.b16 %v922
        %v3218 = vunpack.c.h.b16 %v922
        %v3219 = vunpack.c.l.b16 %v923
        %v3220 = vunpack.c.h.b16 %v923
        %v3221 = vunpack.c.l.b16 %v924
        %v3222 = vunpack.c.h.b16 %v924
        %v3223 = vunpack.c.l.b16 %v925
        %v3224 = vunpack.c.h.b16 %v925
        %v3225 = vunpack.c.l.b16 %v926
        %v3226 = vunpack.c.h.b16 %v926
        %v3227 = vunpack.c.l.b16 %v927
        %v3228 = vunpack.c.h.b16 %v927
        %v3229 = vunpack.c.l.b16 %v928
        %v3230 = vunpack.c.h.b16 %v928
        %v3231 = vunpack.c.l.b16 %v929
        %v3232 = vunpack.c.h.b16 %v929
        %v3233 = vunpack.c.l.b16 %v930
        %v3234 = vunpack.c.h.b16 %v930
        %v3235 = vunpack.c.l.b16 %v931
        %v3236 = vunpack.c.h.b16 %v931
        %v3237 = vunpack.c.l.b16 %v932
        %v3238 = vunpack.c.h.b16 %v932
        %v3239 = vunpack.c.l.b16 %v933
        %v3240 = vunpack.c.h.b16 %v933
        %v3241 = vunpack.c.l.b16 %v934
        %v3242 = vunpack.c.h.b16 %v934
        %v3243 = vunpack.c.l.b16 %v935
        %v3244 = vunpack.c.h.b16 %v935
        %v3245 = vunpack.c.l.b16 %v936
        %v3246 = vunpack.c.h.b16 %v936
        %v3247 = vunpack.c.l.b16 %v937
        %v3248 = vunpack.c.h.b16 %v937
        %v3249 = vunpack.c.l.b16 %v938
        %v3250 = vunpack.c.h.b16 %v938
        %v3251 = vunpack.c.l.b16 %v939
        %v3252 = vunpack.c.h.b16 %v939
        %v3253 = vunpack.c.l.b16 %v940
        %v3254 = vunpack.c.h.b16 %v940
        %v3255 = vunpack.c.l.b16 %v941
        %v3256 = vunpack.c.h.b16 %v941
        %v3257 = vunpack.c.l.b16 %v942
        %v3258 = vunpack.c.h.b16 %v942
        %v3259 = vunpack.c.l.b16 %v943
        %v3260 = vunpack.c.h.b16 %v943
        %v3261 = vunpack.c.l.b16 %v944
        %v3262 = vunpack.c.h.b16 %v944
        %v3263 = vunpack.c.l.b16 %v945
        %v3264 = vunpack.c.h.b16 %v945
        %v3265 = vunpack.c.l.b16 %v946
        %v3266 = vunpack.c.h.b16 %v946
        %v3267 = vunpack.c.l.b16 %v947
        %v3268 = vunpack.c.h.b16 %v947
        %v3269 = vunpack.c.l.b16 %v948
        %v3270 = vunpack.c.h.b16 %v948
        %v3271 = vunpack.c.l.b16 %v949
        %v3272 = vunpack.c.h.b16 %v949
        %v3273 = vunpack.c.l.b16 %v950
        %v3274 = vunpack.c.h.b16 %v950
        %v3275 = vunpack.c.l.b16 %v951
        %v3276 = vunpack.c.h.b16 %v951
        %v3277 = vunpack.c.l.b16 %v952
        %v3278 = vunpack.c.h.b16 %v952
        %v3279 = vunpack.c.l.b16 %v953
        %v3280 = vunpack.c.h.b16 %v953
        %v3281 = vunpack.c.l.b16 %v954
        %v3282 = vunpack.c.h.b16 %v954
        %v3283 = vunpack.c.l.b16 %v955
        %v3284 = vunpack.c.h.b16 %v955
        %v3285 = vunpack.c.l.b16 %v956
        %v3286 = vunpack.c.h.b16 %v956
        %v3287 = vunpack.c.l.b16 %v957
        %v3288 = vunpack.c.h.b16 %v957
        %v3289 = vunpack.c.l.b16 %v958
        %v3290 = vunpack.c.h.b16 %v958
        %v3291 = vunpack.c.l.b16 %v959
        %v3292 = vunpack.c.h.b16 %v959
        %v3293 = vunpack.c.l.b16 %v960
        %v3294 = vunpack.c.h.b16 %v960
        %v3295 = vunpack.c.l.b16 %v961
        %v3296 = vunpack.c.h.b16 %v961
        %v3297 = vunpack.c.l.b16 %v962
        %v3298 = vunpack.c.h.b16 %v962
        %v3299 = vunpack.c.l.b16 %v963
        %v3300 = vunpack.c.h.b16 %v963
        %v3301 = vunpack.c.l.b16 %v964
        %v3302 = vunpack.c.h.b16 %v964
        %v3303 = vunpack.c.l.b16 %v965
        %v3304 = vunpack.c.h.b16 %v965
        %v3305 = vunpack.c.l.b16 %v966
        %v3306 = vunpack.c.h.b16 %v966
        %v3307 = vunpack.c.l.b16 %v967
        %v3308 = vunpack.c.h.b16 %v967
        %v3309 = vunpack.c.l.b16 %v968
        %v3310 = vunpack.c.h.b16 %v968
        %v3311 = vunpack.c.l.b16 %v969
        %v3312 = vunpack.c.h.b16 %v969
        %v3313 = vunpack.c.l.b16 %v970
        %v3314 = vunpack.c.h.b16 %v970
        %v3315 = vunpack.c.l.b16 %v971
        %v3316 = vunpack.c.h.b16 %v971
        %v3317 = vunpack.c.l.b16 %v972
        %v3318 = vunpack.c.h.b16 %v972
        %v3319 = vunpack.c.l.b16 %v973
        %v3320 = vunpack.c.h.b16 %v973
        %v3321 = vunpack.c.l.b16 %v974
        %v3322 = vunpack.c.h.b16 %v974
        %v3323 = vunpack.c.l.b16 %v975
        %v3324 = vunpack.c.h.b16 %v975
        %v3325 = vunpack.c.l.b16 %v976
        %v3326 = vunpack.c.h.b16 %v976
        %v3327 = vunpack.c.l.b16 %v977
        %v3328 = vunpack.c.h.b16 %v977
        %v3329 = vunpack.c.l.b16 %v978
        %v3330 = vunpack.c.h.b16 %v978
        %v3331 = vunpack.c.l.b16 %v979
        %v3332 = vunpack.c.h.b16 %v979
        %v3333 = vunpack.c.l.b16 %v980
        %v3334 = vunpack.c.h.b16 %v980
        %v3335 = vunpack.c.l.b16 %v981
        %v3336 = vunpack.c.h.b16 %v981
        %v3337 = vunpack.c.l.b16 %v982
        %v3338 = vunpack.c.h.b16 %v982
        %v3339 = vunpack.c.l.b16 %v983
        %v3340 = vunpack.c.h.b16 %v983
        %v3341 = vunpack.c.l.b16 %v984
        %v3342 = vunpack.c.h.b16 %v984
        %v3343 = vunpack.c.l.b16 %v985
        %v3344 = vunpack.c.h.b16 %v985
        %v3345 = vunpack.c.l.b16 %v986
        %v3346 = vunpack.c.h.b16 %v986
        %v3347 = vunpack.c.l.b16 %v987
        %v3348 = vunpack.c.h.b16 %v987
        %v3349 = vunpack.c.l.b16 %v988
        %v3350 = vunpack.c.h.b16 %v988
        %v3351 = vunpack.c.l.b16 %v989
        %v3352 = vunpack.c.h.b16 %v989
        %v3353 = vunpack.c.l.b16 %v990
        %v3354 = vunpack.c.h.b16 %v990
        %v3355 = vunpack.c.l.b16 %v991
        %v3356 = vunpack.c.h.b16 %v991
        %v3357 = vunpack.c.l.b16 %v992
        %v3358 = vunpack.c.h.b16 %v992
        %v3359 = vunpack.c.l.b16 %v993
        %v3360 = vunpack.c.h.b16 %v993
        %v3361 = vunpack.c.l.b16 %v994
        %v3362 = vunpack.c.h.b16 %v994
        %v3363 = vunpack.c.l.b16 %v995
        %v3364 = vunpack.c.h.b16 %v995
        %v3365 = vunpack.c.l.b16 %v996
        %v3366 = vunpack.c.h.b16 %v996
        %v3367 = vunpack.c.l.b16 %v997
        %v3368 = vunpack.c.h.b16 %v997
        %v3369 = vunpack.c.l.b16 %v998
        %v3370 = vunpack.c.h.b16 %v998
        %v3371 = vunpack.c.l.b16 %v999
        %v3372 = vunpack.c.h.b16 %v999
        %v3373 = vunpack.c.l.b16 %v1000
        %v3374 = vunpack.c.h.b16 %v1000
        %v3375 = vunpack.c.l.b16 %v1001
        %v3376 = vunpack.c.h.b16 %v1001
        %v3377 = vunpack.c.l.b16 %v1002
        %v3378 = vunpack.c.h.b16 %v1002
        %v3379 = vunpack.c.l.b16 %v1003
        %v3380 = vunpack.c.h.b16 %v1003
        %v3381 = vunpack.c.l.b16 %v1004
        %v3382 = vunpack.c.h.b16 %v1004
        %v3383 = vunpack.c.l.b16 %v1005
        %v3384 = vunpack.c.h.b16 %v1005
        %v3385 = vunpack.c.l.b16 %v1006
        %v3386 = vunpack.c.h.b16 %v1006
        %v3387 = vunpack.c.l.b16 %v1007
        %v3388 = vunpack.c.h.b16 %v1007
        %v3389 = vunpack.c.l.b16 %v1008
        %v3390 = vunpack.c.h.b16 %v1008
        %v3391 = vunpack.c.l.b16 %v1009
        %v3392 = vunpack.c.h.b16 %v1009
        %v3393 = vunpack.c.l.b16 %v1010
        %v3394 = vunpack.c.h.b16 %v1010
        %v3395 = vunpack.c.l.b16 %v1011
        %v3396 = vunpack.c.h.b16 %v1011
        %v3397 = vunpack.c.l.b16 %v1012
        %v3398 = vunpack.c.h.b16 %v1012
        %v3399 = vunpack.c.l.b16 %v1013
        %v3400 = vunpack.c.h.b16 %v1013
        %v3401 = vunpack.c.l.b16 %v1014
        %v3402 = vunpack.c.h.b16 %v1014
        %v3403 = vunpack.c.l.b16 %v1015
        %v3404 = vunpack.c.h.b16 %v1015
        %v3405 = vunpack.c.l.b16 %v1016
        %v3406 = vunpack.c.h.b16 %v1016
        %v3407 = vunpack.c.l.b16 %v1017
        %v3408 = vunpack.c.h.b16 %v1017
        %v3409 = vunpack.c.l.b16 %v1018
        %v3410 = vunpack.c.h.b16 %v1018
        %v3411 = vunpack.c.l.b16 %v1019
        %v3412 = vunpack.c.h.b16 %v1019
        %v3413 = vunpack.c.l.b16 %v1020
        %v3414 = vunpack.c.h.b16 %v1020
        %v3415 = vunpack.c.l.b16 %v1021
        %v3416 = vunpack.c.h.b16 %v1021
        %v3417 = vunpack.c.l.b16 %v1022
        %v3418 = vunpack.c.h.b16 %v1022
        %v3419 = vunpack.c.l.b16 %v1023
        %v3420 = vunpack.c.h.b16 %v1023
        %v3421 = vunpack.c.l.b16 %v1024
        %v3422 = vunpack.c.h.b16 %v1024
        %v3423 = vpack.c.b16 %v1891, %v1887
        %v3424 = vpack.c.b16 %v1892, %v1888
        %v3425 = vpack.c.b16 %v1893, %v1889
        %v3426 = vpack.c.b16 %v1894, %v1890
        %v3427 = vpack.c.b16 %v1899, %v1895
        %v3428 = vpack.c.b16 %v1900, %v1896
        %v3429 = vpack.c.b16 %v1901, %v1897
        %v3430 = vpack.c.b16 %v1902, %v1898
        %v3431 = vpack.c.b16 %v1907, %v1903
        %v3432 = vpack.c.b16 %v1908, %v1904
        %v3433 = vpack.c.b16 %v1909, %v1905
        %v3434 = vpack.c.b16 %v1910, %v1906
        %v3435 = vpack.c.b16 %v1915, %v1911
        %v3436 = vpack.c.b16 %v1916, %v1912
        %v3437 = vpack.c.b16 %v1917, %v1913
        %v3438 = vpack.c.b16 %v1918, %v1914
        %v3439 = vpack.c.b16 %v1923, %v1919
        %v3440 = vpack.c.b16 %v1924, %v1920
        %v3441 = vpack.c.b16 %v1925, %v1921
        %v3442 = vpack.c.b16 %v1926, %v1922
        %v3443 = vpack.c.b16 %v1931, %v1927
        %v3444 = vpack.c.b16 %v1932, %v1928
        %v3445 = vpack.c.b16 %v1933, %v1929
        %v3446 = vpack.c.b16 %v1934, %v1930
        %v3447 = vpack.c.b16 %v1939, %v1935
        %v3448 = vpack.c.b16 %v1940, %v1936
        %v3449 = vpack.c.b16 %v1941, %v1937
        %v3450 = vpack.c.b16 %v1942, %v1938
        %v3451 = vpack.c.b16 %v1947, %v1943
        %v3452 = vpack.c.b16 %v1948, %v1944
        %v3453 = vpack.c.b16 %v1949, %v1945
        %v3454 = vpack.c.b16 %v1950, %v1946
        %v3455 = vpack.c.b16 %v1955, %v1951
        %v3456 = vpack.c.b16 %v1956, %v1952
        %v3457 = vpack.c.b16 %v1957, %v1953
        %v3458 = vpack.c.b16 %v1958, %v1954
        %v3459 = vpack.c.b16 %v1963, %v1959
        %v3460 = vpack.c.b16 %v1964, %v1960
        %v3461 = vpack.c.b16 %v1965, %v1961
        %v3462 = vpack.c.b16 %v1966, %v1962
        %v3463 = vpack.c.b16 %v1971, %v1967
        %v3464 = vpack.c.b16 %v1972, %v1968
        %v3465 = vpack.c.b16 %v1973, %v1969
        %v3466 = vpack.c.b16 %v1974, %v1970
        %v3467 = vpack.c.b16 %v1979, %v1975
        %v3468 = vpack.c.b16 %v1980, %v1976
        %v3469 = vpack.c.b16 %v1981, %v1977
        %v3470 = vpack.c.b16 %v1982, %v1978
        %v3471 = vpack.c.b16 %v1987, %v1983
        %v3472 = vpack.c.b16 %v1988, %v1984
        %v3473 = vpack.c.b16 %v1989, %v1985
        %v3474 = vpack.c.b16 %v1990, %v1986
        %v3475 = vpack.c.b16 %v1995, %v1991
        %v3476 = vpack.c.b16 %v1996, %v1992
        %v3477 = vpack.c.b16 %v1997, %v1993
        %v3478 = vpack.c.b16 %v1998, %v1994
        %v3479 = vpack.c.b16 %v2003, %v1999
        %v3480 = vpack.c.b16 %v2004, %v2000
        %v3481 = vpack.c.b16 %v2005, %v2001
        %v3482 = vpack.c.b16 %v2006, %v2002
        %v3483 = vpack.c.b16 %v2011, %v2007
        %v3484 = vpack.c.b16 %v2012, %v2008
        %v3485 = vpack.c.b16 %v2013, %v2009
        %v3486 = vpack.c.b16 %v2014, %v2010
        %v3487 = vpack.c.b16 %v2019, %v2015
        %v3488 = vpack.c.b16 %v2020, %v2016
        %v3489 = vpack.c.b16 %v2021, %v2017
        %v3490 = vpack.c.b16 %v2022, %v2018
        %v3491 = vpack.c.b16 %v2027, %v2023
        %v3492 = vpack.c.b16 %v2028, %v2024
        %v3493 = vpack.c.b16 %v2029, %v2025
        %v3494 = vpack.c.b16 %v2030, %v2026
        %v3495 = vpack.c.b16 %v2035, %v2031
        %v3496 = vpack.c.b16 %v2036, %v2032
        %v3497 = vpack.c.b16 %v2037, %v2033
        %v3498 = vpack.c.b16 %v2038, %v2034
        %v3499 = vpack.c.b16 %v2043, %v2039
        %v3500 = vpack.c.b16 %v2044, %v2040
        %v3501 = vpack.c.b16 %v2045, %v2041
        %v3502 = vpack.c.b16 %v2046, %v2042
        %v3503 = vpack.c.b16 %v2051, %v2047
        %v3504 = vpack.c.b16 %v2052, %v2048
        %v3505 = vpack.c.b16 %v2053, %v2049
        %v3506 = vpack.c.b16 %v2054, %v2050
        %v3507 = vpack.c.b16 %v2059, %v2055
        %v3508 = vpack.c.b16 %v2060, %v2056
        %v3509 = vpack.c.b16 %v2061, %v2057
        %v3510 = vpack.c.b16 %v2062, %v2058
        %v3511 = vpack.c.b16 %v2067, %v2063
        %v3512 = vpack.c.b16 %v2068, %v2064
        %v3513 = vpack.c.b16 %v2069, %v2065
        %v3514 = vpack.c.b16 %v2070, %v2066
        %v3515 = vpack.c.b16 %v2075, %v2071
        %v3516 = vpack.c.b16 %v2076, %v2072
        %v3517 = vpack.c.b16 %v2077, %v2073
        %v3518 = vpack.c.b16 %v2078, %v2074
        %v3519 = vpack.c.b16 %v2083, %v2079
        %v3520 = vpack.c.b16 %v2084, %v2080
        %v3521 = vpack.c.b16 %v2085, %v2081
        %v3522 = vpack.c.b16 %v2086, %v2082
        %v3523 = vpack.c.b16 %v2091, %v2087
        %v3524 = vpack.c.b16 %v2092, %v2088
        %v3525 = vpack.c.b16 %v2093, %v2089
        %v3526 = vpack.c.b16 %v2094, %v2090
        %v3527 = vpack.c.b16 %v2099, %v2095
        %v3528 = vpack.c.b16 %v2100, %v2096
        %v3529 = vpack.c.b16 %v2101, %v2097
        %v3530 = vpack.c.b16 %v2102, %v2098
        %v3531 = vpack.c.b16 %v2107, %v2103
        %v3532 = vpack.c.b16 %v2108, %v2104
        %v3533 = vpack.c.b16 %v2109, %v2105
        %v3534 = vpack.c.b16 %v2110, %v2106
        %v3535 = vpack.c.b16 %v2115, %v2111
        %v3536 = vpack.c.b16 %v2116, %v2112
        %v3537 = vpack.c.b16 %v2117, %v2113
        %v3538 = vpack.c.b16 %v2118, %v2114
        %v3539 = vpack.c.b16 %v2123, %v2119
        %v3540 = vpack.c.b16 %v2124, %v2120
        %v3541 = vpack.c.b16 %v2125, %v2121
        %v3542 = vpack.c.b16 %v2126, %v2122
        %v3543 = vpack.c.b16 %v2131, %v2127
        %v3544 = vpack.c.b16 %v2132, %v2128
        %v3545 = vpack.c.b16 %v2133, %v2129
        %v3546 = vpack.c.b16 %v2134, %v2130
        %v3547 = vpack.c.b16 %v2139, %v2135
        %v3548 = vpack.c.b16 %v2140, %v2136
        %v3549 = vpack.c.b16 %v2141, %v2137
        %v3550 = vpack.c.b16 %v2142, %v2138
        %v3551 = vpack.c.b16 %v2147, %v2143
        %v3552 = vpack.c.b16 %v2148, %v2144
        %v3553 = vpack.c.b16 %v2149, %v2145
        %v3554 = vpack.c.b16 %v2150, %v2146
        %v3555 = vpack.c.b16 %v2155, %v2151
        %v3556 = vpack.c.b16 %v2156, %v2152
        %v3557 = vpack.c.b16 %v2157, %v2153
        %v3558 = vpack.c.b16 %v2158, %v2154
        %v3559 = vpack.c.b16 %v2163, %v2159
        %v3560 = vpack.c.b16 %v2164, %v2160
        %v3561 = vpack.c.b16 %v2165, %v2161
        %v3562 = vpack.c.b16 %v2166, %v2162
        %v3563 = vpack.c.b16 %v2171, %v2167
        %v3564 = vpack.c.b16 %v2172, %v2168
        %v3565 = vpack.c.b16 %v2173, %v2169
        %v3566 = vpack.c.b16 %v2174, %v2170
        %v3567 = vpack.c.b16 %v2179, %v2175
        %v3568 = vpack.c.b16 %v2180, %v2176
        %v3569 = vpack.c.b16 %v2181, %v2177
        %v3570 = vpack.c.b16 %v2182, %v2178
        %v3571 = vpack.c.b16 %v2187, %v2183
        %v3572 = vpack.c.b16 %v2188, %v2184
        %v3573 = vpack.c.b16 %v2189, %v2185
        %v3574 = vpack.c.b16 %v2190, %v2186
        %v3575 = vpack.c.b16 %v2195, %v2191
        %v3576 = vpack.c.b16 %v2196, %v2192
        %v3577 = vpack.c.b16 %v2197, %v2193
        %v3578 = vpack.c.b16 %v2198, %v2194
        %v3579 = vpack.c.b16 %v2203, %v2199
        %v3580 = vpack.c.b16 %v2204, %v2200
        %v3581 = vpack.c.b16 %v2205, %v2201
        %v3582 = vpack.c.b16 %v2206, %v2202
        %v3583 = vpack.c.b16 %v2211, %v2207
        %v3584 = vpack.c.b16 %v2212, %v2208
        %v3585 = vpack.c.b16 %v2213, %v2209
        %v3586 = vpack.c.b16 %v2214, %v2210
        %v3587 = vpack.c.b16 %v2219, %v2215
        %v3588 = vpack.c.b16 %v2220, %v2216
        %v3589 = vpack.c.b16 %v2221, %v2217
        %v3590 = vpack.c.b16 %v2222, %v2218
        %v3591 = vpack.c.b16 %v2227, %v2223
        %v3592 = vpack.c.b16 %v2228, %v2224
        %v3593 = vpack.c.b16 %v2229, %v2225
        %v3594 = vpack.c.b16 %v2230, %v2226
        %v3595 = vpack.c.b16 %v2235, %v2231
        %v3596 = vpack.c.b16 %v2236, %v2232
        %v3597 = vpack.c.b16 %v2237, %v2233
        %v3598 = vpack.c.b16 %v2238, %v2234
        %v3599 = vpack.c.b16 %v2243, %v2239
        %v3600 = vpack.c.b16 %v2244, %v2240
        %v3601 = vpack.c.b16 %v2245, %v2241
        %v3602 = vpack.c.b16 %v2246, %v2242
        %v3603 = vpack.c.b16 %v2251, %v2247
        %v3604 = vpack.c.b16 %v2252, %v2248
        %v3605 = vpack.c.b16 %v2253, %v2249
        %v3606 = vpack.c.b16 %v2254, %v2250
        %v3607 = vpack.c.b16 %v2259, %v2255
        %v3608 = vpack.c.b16 %v2260, %v2256
        %v3609 = vpack.c.b16 %v2261, %v2257
        %v3610 = vpack.c.b16 %v2262, %v2258
        %v3611 = vpack.c.b16 %v2267, %v2263
        %v3612 = vpack.c.b16 %v2268, %v2264
        %v3613 = vpack.c.b16 %v2269, %v2265
        %v3614 = vpack.c.b16 %v2270, %v2266
        %v3615 = vpack.c.b16 %v2275, %v2271
        %v3616 = vpack.c.b16 %v2276, %v2272
        %v3617 = vpack.c.b16 %v2277, %v2273
        %v3618 = vpack.c.b16 %v2278, %v2274
        %v3619 = vpack.c.b16 %v2283, %v2279
        %v3620 = vpack.c.b16 %v2284, %v2280
        %v3621 = vpack.c.b16 %v2285, %v2281
        %v3622 = vpack.c.b16 %v2286, %v2282
        %v3623 = vpack.c.b16 %v2291, %v2287
        %v3624 = vpack.c.b16 %v2292, %v2288
        %v3625 = vpack.c.b16 %v2293, %v2289
        %v3626 = vpack.c.b16 %v2294, %v2290
        %v3627 = vpack.c.b16 %v2299, %v2295
        %v3628 = vpack.c.b16 %v2300, %v2296
        %v3629 = vpack.c.b16 %v2301, %v2297
        %v3630 = vpack.c.b16 %v2302, %v2298
        %v3631 = vpack.c.b16 %v2307, %v2303
        %v3632 = vpack.c.b16 %v2308, %v2304
        %v3633 = vpack.c.b16 %v2309, %v2305
        %v3634 = vpack.c.b16 %v2310, %v2306
        %v3635 = vpack.c.b16 %v2315, %v2311
        %v3636 = vpack.c.b16 %v2316, %v2312
        %v3637 = vpack.c.b16 %v2317, %v2313
        %v3638 = vpack.c.b16 %v2318, %v2314
        %v3639 = vpack.c.b16 %v2323, %v2319
        %v3640 = vpack.c.b16 %v2324, %v2320
        %v3641 = vpack.c.b16 %v2325, %v2321
        %v3642 = vpack.c.b16 %v2326, %v2322
        %v3643 = vpack.c.b16 %v2331, %v2327
        %v3644 = vpack.c.b16 %v2332, %v2328
        %v3645 = vpack.c.b16 %v2333, %v2329
        %v3646 = vpack.c.b16 %v2334, %v2330
        %v3647 = vpack.c.b16 %v2339, %v2335
        %v3648 = vpack.c.b16 %v2340, %v2336
        %v3649 = vpack.c.b16 %v2341, %v2337
        %v3650 = vpack.c.b16 %v2342, %v2338
        %v3651 = vpack.c.b16 %v2347, %v2343
        %v3652 = vpack.c.b16 %v2348, %v2344
        %v3653 = vpack.c.b16 %v2349, %v2345
        %v3654 = vpack.c.b16 %v2350, %v2346
        %v3655 = vpack.c.b16 %v2355, %v2351
        %v3656 = vpack.c.b16 %v2356, %v2352
        %v3657 = vpack.c.b16 %v2357, %v2353
        %v3658 = vpack.c.b16 %v2358, %v2354
        %v3659 = vpack.c.b16 %v2363, %v2359
        %v3660 = vpack.c.b16 %v2364, %v2360
        %v3661 = vpack.c.b16 %v2365, %v2361
        %v3662 = vpack.c.b16 %v2366, %v2362
        %v3663 = vpack.c.b16 %v2371, %v2367
        %v3664 = vpack.c.b16 %v2372, %v2368
        %v3665 = vpack.c.b16 %v2373, %v2369
        %v3666 = vpack.c.b16 %v2374, %v2370
        %v3667 = vpack.c.b16 %v2379, %v2375
        %v3668 = vpack.c.b16 %v2380, %v2376
        %v3669 = vpack.c.b16 %v2381, %v2377
        %v3670 = vpack.c.b16 %v2382, %v2378
        %v3671 = vpack.c.b16 %v2387, %v2383
        %v3672 = vpack.c.b16 %v2388, %v2384
        %v3673 = vpack.c.b16 %v2389, %v2385
        %v3674 = vpack.c.b16 %v2390, %v2386
        %v3675 = vpack.c.b16 %v2395, %v2391
        %v3676 = vpack.c.b16 %v2396, %v2392
        %v3677 = vpack.c.b16 %v2397, %v2393
        %v3678 = vpack.c.b16 %v2398, %v2394
        %v3679 = vpack.c.b16 %v2403, %v2399
        %v3680 = vpack.c.b16 %v2404, %v2400
        %v3681 = vpack.c.b16 %v2405, %v2401
        %v3682 = vpack.c.b16 %v2406, %v2402
        %v3683 = vpack.c.b16 %v2411, %v2407
        %v3684 = vpack.c.b16 %v2412, %v2408
        %v3685 = vpack.c.b16 %v2413, %v2409
        %v3686 = vpack.c.b16 %v2414, %v2410
        %v3687 = vpack.c.b16 %v2419, %v2415
        %v3688 = vpack.c.b16 %v2420, %v2416
        %v3689 = vpack.c.b16 %v2421, %v2417
        %v3690 = vpack.c.b16 %v2422, %v2418
        %v3691 = vpack.c.b16 %v2427, %v2423
        %v3692 = vpack.c.b16 %v2428, %v2424
        %v3693 = vpack.c.b16 %v2429, %v2425
        %v3694 = vpack.c.b16 %v2430, %v2426
        %v3695 = vpack.c.b16 %v2435, %v2431
        %v3696 = vpack.c.b16 %v2436, %v2432
        %v3697 = vpack.c.b16 %v2437, %v2433
        %v3698 = vpack.c.b16 %v2438, %v2434
        %v3699 = vpack.c.b16 %v2443, %v2439
        %v3700 = vpack.c.b16 %v2444, %v2440
        %v3701 = vpack.c.b16 %v2445, %v2441
        %v3702 = vpack.c.b16 %v2446, %v2442
        %v3703 = vpack.c.b16 %v2451, %v2447
        %v3704 = vpack.c.b16 %v2452, %v2448
        %v3705 = vpack.c.b16 %v2453, %v2449
        %v3706 = vpack.c.b16 %v2454, %v2450
        %v3707 = vpack.c.b16 %v2459, %v2455
        %v3708 = vpack.c.b16 %v2460, %v2456
        %v3709 = vpack.c.b16 %v2461, %v2457
        %v3710 = vpack.c.b16 %v2462, %v2458
        %v3711 = vpack.c.b16 %v2467, %v2463
        %v3712 = vpack.c.b16 %v2468, %v2464
        %v3713 = vpack.c.b16 %v2469, %v2465
        %v3714 = vpack.c.b16 %v2470, %v2466
        %v3715 = vpack.c.b16 %v2475, %v2471
        %v3716 = vpack.c.b16 %v2476, %v2472
        %v3717 = vpack.c.b16 %v2477, %v2473
        %v3718 = vpack.c.b16 %v2478, %v2474
        %v3719 = vpack.c.b16 %v2483, %v2479
        %v3720 = vpack.c.b16 %v2484, %v2480
        %v3721 = vpack.c.b16 %v2485, %v2481
        %v3722 = vpack.c.b16 %v2486, %v2482
        %v3723 = vpack.c.b16 %v2491, %v2487
        %v3724 = vpack.c.b16 %v2492, %v2488
        %v3725 = vpack.c.b16 %v2493, %v2489
        %v3726 = vpack.c.b16 %v2494, %v2490
        %v3727 = vpack.c.b16 %v2499, %v2495
        %v3728 = vpack.c.b16 %v2500, %v2496
        %v3729 = vpack.c.b16 %v2501, %v2497
        %v3730 = vpack.c.b16 %v2502, %v2498
        %v3731 = vpack.c.b16 %v2507, %v2503
        %v3732 = vpack.c.b16 %v2508, %v2504
        %v3733 = vpack.c.b16 %v2509, %v2505
        %v3734 = vpack.c.b16 %v2510, %v2506
        %v3735 = vpack.c.b16 %v2515, %v2511
        %v3736 = vpack.c.b16 %v2516, %v2512
        %v3737 = vpack.c.b16 %v2517, %v2513
        %v3738 = vpack.c.b16 %v2518, %v2514
        %v3739 = vpack.c.b16 %v2523, %v2519
        %v3740 = vpack.c.b16 %v2524, %v2520
        %v3741 = vpack.c.b16 %v2525, %v2521
        %v3742 = vpack.c.b16 %v2526, %v2522
        %v3743 = vpack.c.b16 %v2531, %v2527
        %v3744 = vpack.c.b16 %v2532, %v2528
        %v3745 = vpack.c.b16 %v2533, %v2529
        %v3746 = vpack.c.b16 %v2534, %v2530
        %v3747 = vpack.c.b16 %v2539, %v2535
        %v3748 = vpack.c.b16 %v2540, %v2536
        %v3749 = vpack.c.b16 %v2541, %v2537
        %v3750 = vpack.c.b16 %v2542, %v2538
        %v3751 = vpack.c.b16 %v2547, %v2543
        %v3752 = vpack.c.b16 %v2548, %v2544
        %v3753 = vpack.c.b16 %v2549, %v2545
        %v3754 = vpack.c.b16 %v2550, %v2546
        %v3755 = vpack.c.b16 %v2555, %v2551
        %v3756 = vpack.c.b16 %v2556, %v2552
        %v3757 = vpack.c.b16 %v2557, %v2553
        %v3758 = vpack.c.b16 %v2558, %v2554
        %v3759 = vpack.c.b16 %v2563, %v2559
        %v3760 = vpack.c.b16 %v2564, %v2560
        %v3761 = vpack.c.b16 %v2565, %v2561
        %v3762 = vpack.c.b16 %v2566, %v2562
        %v3763 = vpack.c.b16 %v2571, %v2567
        %v3764 = vpack.c.b16 %v2572, %v2568
        %v3765 = vpack.c.b16 %v2573, %v2569
        %v3766 = vpack.c.b16 %v2574, %v2570
        %v3767 = vpack.c.b16 %v2579, %v2575
        %v3768 = vpack.c.b16 %v2580, %v2576
        %v3769 = vpack.c.b16 %v2581, %v2577
        %v3770 = vpack.c.b16 %v2582, %v2578
        %v3771 = vpack.c.b16 %v2587, %v2583
        %v3772 = vpack.c.b16 %v2588, %v2584
        %v3773 = vpack.c.b16 %v2589, %v2585
        %v3774 = vpack.c.b16 %v2590, %v2586
        %v3775 = vpack.c.b16 %v2595, %v2591
        %v3776 = vpack.c.b16 %v2596, %v2592
        %v3777 = vpack.c.b16 %v2597, %v2593
        %v3778 = vpack.c.b16 %v2598, %v2594
        %v3779 = vpack.c.b16 %v2603, %v2599
        %v3780 = vpack.c.b16 %v2604, %v2600
        %v3781 = vpack.c.b16 %v2605, %v2601
        %v3782 = vpack.c.b16 %v2606, %v2602
        %v3783 = vpack.c.b16 %v2611, %v2607
        %v3784 = vpack.c.b16 %v2612, %v2608
        %v3785 = vpack.c.b16 %v2613, %v2609
        %v3786 = vpack.c.b16 %v2614, %v2610
        %v3787 = vpack.c.b16 %v2619, %v2615
        %v3788 = vpack.c.b16 %v2620, %v2616
        %v3789 = vpack.c.b16 %v2621, %v2617
        %v3790 = vpack.c.b16 %v2622, %v2618
        %v3791 = vpack.c.b16 %v2627, %v2623
        %v3792 = vpack.c.b16 %v2628, %v2624
        %v3793 = vpack.c.b16 %v2629, %v2625
        %v3794 = vpack.c.b16 %v2630, %v2626
        %v3795 = vpack.c.b16 %v2635, %v2631
        %v3796 = vpack.c.b16 %v2636, %v2632
        %v3797 = vpack.c.b16 %v2637, %v2633
        %v3798 = vpack.c.b16 %v2638, %v2634
        %v3799 = vpack.c.b16 %v2643, %v2639
        %v3800 = vpack.c.b16 %v2644, %v2640
        %v3801 = vpack.c.b16 %v2645, %v2641
        %v3802 = vpack.c.b16 %v2646, %v2642
        %v3803 = vpack.c.b16 %v2651, %v2647
        %v3804 = vpack.c.b16 %v2652, %v2648
        %v3805 = vpack.c.b16 %v2653, %v2649
        %v3806 = vpack.c.b16 %v2654, %v2650
        %v3807 = vpack.c.b16 %v2659, %v2655
        %v3808 = vpack.c.b16 %v2660, %v2656
        %v3809 = vpack.c.b16 %v2661, %v2657
        %v3810 = vpack.c.b16 %v2662, %v2658
        %v3811 = vpack.c.b16 %v2667, %v2663
        %v3812 = vpack.c.b16 %v2668, %v2664
        %v3813 = vpack.c.b16 %v2669, %v2665
        %v3814 = vpack.c.b16 %v2670, %v2666
        %v3815 = vpack.c.b16 %v2675, %v2671
        %v3816 = vpack.c.b16 %v2676, %v2672
        %v3817 = vpack.c.b16 %v2677, %v2673
        %v3818 = vpack.c.b16 %v2678, %v2674
        %v3819 = vpack.c.b16 %v2683, %v2679
        %v3820 = vpack.c.b16 %v2684, %v2680
        %v3821 = vpack.c.b16 %v2685, %v2681
        %v3822 = vpack.c.b16 %v2686, %v2682
        %v3823 = vpack.c.b16 %v2691, %v2687
        %v3824 = vpack.c.b16 %v2692, %v2688
        %v3825 = vpack.c.b16 %v2693, %v2689
        %v3826 = vpack.c.b16 %v2694, %v2690
        %v3827 = vpack.c.b16 %v2699, %v2695
        %v3828 = vpack.c.b16 %v2700, %v2696
        %v3829 = vpack.c.b16 %v2701, %v2697
        %v3830 = vpack.c.b16 %v2702, %v2698
        %v3831 = vpack.c.b16 %v2707, %v2703
        %v3832 = vpack.c.b16 %v2708, %v2704
        %v3833 = vpack.c.b16 %v2709, %v2705
        %v3834 = vpack.c.b16 %v2710, %v2706
        %v3835 = vpack.c.b16 %v2715, %v2711
        %v3836 = vpack.c.b16 %v2716, %v2712
        %v3837 = vpack.c.b16 %v2717, %v2713
        %v3838 = vpack.c.b16 %v2718, %v2714
        %v3839 = vpack.c.b16 %v2723, %v2719
        %v3840 = vpack.c.b16 %v2724, %v2720
        %v3841 = vpack.c.b16 %v2725, %v2721
        %v3842 = vpack.c.b16 %v2726, %v2722
        %v3843 = vpack.c.b16 %v2731, %v2727
        %v3844 = vpack.c.b16 %v2732, %v2728
        %v3845 = vpack.c.b16 %v2733, %v2729
        %v3846 = vpack.c.b16 %v2734, %v2730
        %v3847 = vpack.c.b16 %v2739, %v2735
        %v3848 = vpack.c.b16 %v2740, %v2736
        %v3849 = vpack.c.b16 %v2741, %v2737
        %v3850 = vpack.c.b16 %v2742, %v2738
        %v3851 = vpack.c.b16 %v2747, %v2743
        %v3852 = vpack.c.b16 %v2748, %v2744
        %v3853 = vpack.c.b16 %v2749, %v2745
        %v3854 = vpack.c.b16 %v2750, %v2746
        %v3855 = vpack.c.b16 %v2755, %v2751
        %v3856 = vpack.c.b16 %v2756, %v2752
        %v3857 = vpack.c.b16 %v2757, %v2753
        %v3858 = vpack.c.b16 %v2758, %v2754
        %v3859 = vpack.c.b16 %v2763, %v2759
        %v3860 = vpack.c.b16 %v2764, %v2760
        %v3861 = vpack.c.b16 %v2765, %v2761
        %v3862 = vpack.c.b16 %v2766, %v2762
        %v3863 = vpack.c.b16 %v2771, %v2767
        %v3864 = vpack.c.b16 %v2772, %v2768
        %v3865 = vpack.c.b16 %v2773, %v2769
        %v3866 = vpack.c.b16 %v2774, %v2770
        %v3867 = vpack.c.b16 %v2779, %v2775
        %v3868 = vpack.c.b16 %v2780, %v2776
        %v3869 = vpack.c.b16 %v2781, %v2777
        %v3870 = vpack.c.b16 %v2782, %v2778
        %v3871 = vpack.c.b16 %v2787, %v2783
        %v3872 = vpack.c.b16 %v2788, %v2784
        %v3873 = vpack.c.b16 %v2789, %v2785
        %v3874 = vpack.c.b16 %v2790, %v2786
        %v3875 = vpack.c.b16 %v2795, %v2791
        %v3876 = vpack.c.b16 %v2796, %v2792
        %v3877 = vpack.c.b16 %v2797, %v2793
        %v3878 = vpack.c.b16 %v2798, %v2794
        %v3879 = vpack.c.b16 %v2803, %v2799
        %v3880 = vpack.c.b16 %v2804, %v2800
        %v3881 = vpack.c.b16 %v2805, %v2801
        %v3882 = vpack.c.b16 %v2806, %v2802
        %v3883 = vpack.c.b16 %v2811, %v2807
        %v3884 = vpack.c.b16 %v2812, %v2808
        %v3885 = vpack.c.b16 %v2813, %v2809
        %v3886 = vpack.c.b16 %v2814, %v2810
        %v3887 = vpack.c.b16 %v2819, %v2815
        %v3888 = vpack.c.b16 %v2820, %v2816
        %v3889 = vpack.c.b16 %v2821, %v2817
        %v3890 = vpack.c.b16 %v2822, %v2818
        %v3891 = vpack.c.b16 %v2827, %v2823
        %v3892 = vpack.c.b16 %v2828, %v2824
        %v3893 = vpack.c.b16 %v2829, %v2825
        %v3894 = vpack.c.b16 %v2830, %v2826
        %v3895 = vpack.c.b16 %v2835, %v2831
        %v3896 = vpack.c.b16 %v2836, %v2832
        %v3897 = vpack.c.b16 %v2837, %v2833
        %v3898 = vpack.c.b16 %v2838, %v2834
        %v3899 = vpack.c.b16 %v2843, %v2839
        %v3900 = vpack.c.b16 %v2844, %v2840
        %v3901 = vpack.c.b16 %v2845, %v2841
        %v3902 = vpack.c.b16 %v2846, %v2842
        %v3903 = vpack.c.b16 %v2851, %v2847
        %v3904 = vpack.c.b16 %v2852, %v2848
        %v3905 = vpack.c.b16 %v2853, %v2849
        %v3906 = vpack.c.b16 %v2854, %v2850
        %v3907 = vpack.c.b16 %v2859, %v2855
        %v3908 = vpack.c.b16 %v2860, %v2856
        %v3909 = vpack.c.b16 %v2861, %v2857
        %v3910 = vpack.c.b16 %v2862, %v2858
        %v3911 = vpack.c.b16 %v2867, %v2863
        %v3912 = vpack.c.b16 %v2868, %v2864
        %v3913 = vpack.c.b16 %v2869, %v2865
        %v3914 = vpack.c.b16 %v2870, %v2866
        %v3915 = vpack.c.b16 %v2875, %v2871
        %v3916 = vpack.c.b16 %v2876, %v2872
        %v3917 = vpack.c.b16 %v2877, %v2873
        %v3918 = vpack.c.b16 %v2878, %v2874
        %v3919 = vpack.c.b16 %v2883, %v2879
        %v3920 = vpack.c.b16 %v2884, %v2880
        %v3921 = vpack.c.b16 %v2885, %v2881
        %v3922 = vpack.c.b16 %v2886, %v2882
        %v3923 = vpack.c.b16 %v2891, %v2887
        %v3924 = vpack.c.b16 %v2892, %v2888
        %v3925 = vpack.c.b16 %v2893, %v2889
        %v3926 = vpack.c.b16 %v2894, %v2890
        %v3927 = vpack.c.b16 %v2899, %v2895
        %v3928 = vpack.c.b16 %v2900, %v2896
        %v3929 = vpack.c.b16 %v2901, %v2897
        %v3930 = vpack.c.b16 %v2902, %v2898
        %v3931 = vpack.c.b16 %v2907, %v2903
        %v3932 = vpack.c.b16 %v2908, %v2904
        %v3933 = vpack.c.b16 %v2909, %v2905
        %v3934 = vpack.c.b16 %v2910, %v2906
        %v3935 = vpack.c.b16 %v2915, %v2911
        %v3936 = vpack.c.b16 %v2916, %v2912
        %v3937 = vpack.c.b16 %v2917, %v2913
        %v3938 = vpack.c.b16 %v2918, %v2914
        %v3939 = vpack.c.b16 %v2923, %v2919
        %v3940 = vpack.c.b16 %v2924, %v2920
        %v3941 = vpack.c.b16 %v2925, %v2921
        %v3942 = vpack.c.b16 %v2926, %v2922
        %v3943 = vpack.c.b16 %v2931, %v2927
        %v3944 = vpack.c.b16 %v2932, %v2928
        %v3945 = vpack.c.b16 %v2933, %v2929
        %v3946 = vpack.c.b16 %v2934, %v2930
        %v3947 = vpack.c.b16 %v2939, %v2935
        %v3948 = vpack.c.b16 %v2940, %v2936
        %v3949 = vpack.c.b16 %v2941, %v2937
        %v3950 = vpack.c.b16 %v2942, %v2938
        %v3951 = vpack.c.b16 %v2947, %v2943
        %v3952 = vpack.c.b16 %v2948, %v2944
        %v3953 = vpack.c.b16 %v2949, %v2945
        %v3954 = vpack.c.b16 %v2950, %v2946
        %v3955 = vpack.c.b16 %v2955, %v2951
        %v3956 = vpack.c.b16 %v2956, %v2952
        %v3957 = vpack.c.b16 %v2957, %v2953
        %v3958 = vpack.c.b16 %v2958, %v2954
        %v3959 = vpack.c.b16 %v2963, %v2959
        %v3960 = vpack.c.b16 %v2964, %v2960
        %v3961 = vpack.c.b16 %v2965, %v2961
        %v3962 = vpack.c.b16 %v2966, %v2962
        %v3963 = vpack.c.b16 %v2971, %v2967
        %v3964 = vpack.c.b16 %v2972, %v2968
        %v3965 = vpack.c.b16 %v2973, %v2969
        %v3966 = vpack.c.b16 %v2974, %v2970
        %v3967 = vpack.c.b16 %v2979, %v2975
        %v3968 = vpack.c.b16 %v2980, %v2976
        %v3969 = vpack.c.b16 %v2981, %v2977
        %v3970 = vpack.c.b16 %v2982, %v2978
        %v3971 = vpack.c.b16 %v2987, %v2983
        %v3972 = vpack.c.b16 %v2988, %v2984
        %v3973 = vpack.c.b16 %v2989, %v2985
        %v3974 = vpack.c.b16 %v2990, %v2986
        %v3975 = vpack.c.b16 %v2995, %v2991
        %v3976 = vpack.c.b16 %v2996, %v2992
        %v3977 = vpack.c.b16 %v2997, %v2993
        %v3978 = vpack.c.b16 %v2998, %v2994
        %v3979 = vpack.c.b16 %v3003, %v2999
        %v3980 = vpack.c.b16 %v3004, %v3000
        %v3981 = vpack.c.b16 %v3005, %v3001
        %v3982 = vpack.c.b16 %v3006, %v3002
        %v3983 = vpack.c.b16 %v3011, %v3007
        %v3984 = vpack.c.b16 %v3012, %v3008
        %v3985 = vpack.c.b16 %v3013, %v3009
        %v3986 = vpack.c.b16 %v3014, %v3010
        %v3987 = vpack.c.b16 %v3019, %v3015
        %v3988 = vpack.c.b16 %v3020, %v3016
        %v3989 = vpack.c.b16 %v3021, %v3017
        %v3990 = vpack.c.b16 %v3022, %v3018
        %v3991 = vpack.c.b16 %v3027, %v3023
        %v3992 = vpack.c.b16 %v3028, %v3024
        %v3993 = vpack.c.b16 %v3029, %v3025
        %v3994 = vpack.c.b16 %v3030, %v3026
        %v3995 = vpack.c.b16 %v3035, %v3031
        %v3996 = vpack.c.b16 %v3036, %v3032
        %v3997 = vpack.c.b16 %v3037, %v3033
        %v3998 = vpack.c.b16 %v3038, %v3034
        %v3999 = vpack.c.b16 %v3043, %v3039
        %v4000 = vpack.c.b16 %v3044, %v3040
        %v4001 = vpack.c.b16 %v3045, %v3041
        %v4002 = vpack.c.b16 %v3046, %v3042
        %v4003 = vpack.c.b16 %v3051, %v3047
        %v4004 = vpack.c.b16 %v3052, %v3048
        %v4005 = vpack.c.b16 %v3053, %v3049
        %v4006 = vpack.c.b16 %v3054, %v3050
        %v4007 = vpack.c.b16 %v3059, %v3055
        %v4008 = vpack.c.b16 %v3060, %v3056
        %v4009 = vpack.c.b16 %v3061, %v3057
        %v4010 = vpack.c.b16 %v3062, %v3058
        %v4011 = vpack.c.b16 %v3067, %v3063
        %v4012 = vpack.c.b16 %v3068, %v3064
        %v4013 = vpack.c.b16 %v3069, %v3065
        %v4014 = vpack.c.b16 %v3070, %v3066
        %v4015 = vpack.c.b16 %v3075, %v3071
        %v4016 = vpack.c.b16 %v3076, %v3072
        %v4017 = vpack.c.b16 %v3077, %v3073
        %v4018 = vpack.c.b16 %v3078, %v3074
        %v4019 = vpack.c.b16 %v3083, %v3079
        %v4020 = vpack.c.b16 %v3084, %v3080
        %v4021 = vpack.c.b16 %v3085, %v3081
        %v4022 = vpack.c.b16 %v3086, %v3082
        %v4023 = vpack.c.b16 %v3091, %v3087
        %v4024 = vpack.c.b16 %v3092, %v3088
        %v4025 = vpack.c.b16 %v3093, %v3089
        %v4026 = vpack.c.b16 %v3094, %v3090
        %v4027 = vpack.c.b16 %v3099, %v3095
        %v4028 = vpack.c.b16 %v3100, %v3096
        %v4029 = vpack.c.b16 %v3101, %v3097
        %v4030 = vpack.c.b16 %v3102, %v3098
        %v4031 = vpack.c.b16 %v3107, %v3103
        %v4032 = vpack.c.b16 %v3108, %v3104
        %v4033 = vpack.c.b16 %v3109, %v3105
        %v4034 = vpack.c.b16 %v3110, %v3106
        %v4035 = vpack.c.b16 %v3115, %v3111
        %v4036 = vpack.c.b16 %v3116, %v3112
        %v4037 = vpack.c.b16 %v3117, %v3113
        %v4038 = vpack.c.b16 %v3118, %v3114
        %v4039 = vpack.c.b16 %v3123, %v3119
        %v4040 = vpack.c.b16 %v3124, %v3120
        %v4041 = vpack.c.b16 %v3125, %v3121
        %v4042 = vpack.c.b16 %v3126, %v3122
        %v4043 = vpack.c.b16 %v3131, %v3127
        %v4044 = vpack.c.b16 %v3132, %v3128
        %v4045 = vpack.c.b16 %v3133, %v3129
        %v4046 = vpack.c.b16 %v3134, %v3130
        %v4047 = vpack.c.b16 %v3139, %v3135
        %v4048 = vpack.c.b16 %v3140, %v3136
        %v4049 = vpack.c.b16 %v3141, %v3137
        %v4050 = vpack.c.b16 %v3142, %v3138
        %v4051 = vpack.c.b16 %v3147, %v3143
        %v4052 = vpack.c.b16 %v3148, %v3144
        %v4053 = vpack.c.b16 %v3149, %v3145
        %v4054 = vpack.c.b16 %v3150, %v3146
        %v4055 = vpack.c.b16 %v3155, %v3151
        %v4056 = vpack.c.b16 %v3156, %v3152
        %v4057 = vpack.c.b16 %v3157, %v3153
        %v4058 = vpack.c.b16 %v3158, %v3154
        %v4059 = vpack.c.b16 %v3163, %v3159
        %v4060 = vpack.c.b16 %v3164, %v3160
        %v4061 = vpack.c.b16 %v3165, %v3161
        %v4062 = vpack.c.b16 %v3166, %v3162
        %v4063 = vpack.c.b16 %v3171, %v3167
        %v4064 = vpack.c.b16 %v3172, %v3168
        %v4065 = vpack.c.b16 %v3173, %v3169
        %v4066 = vpack.c.b16 %v3174, %v3170
        %v4067 = vpack.c.b16 %v3179, %v3175
        %v4068 = vpack.c.b16 %v3180, %v3176
        %v4069 = vpack.c.b16 %v3181, %v3177
        %v4070 = vpack.c.b16 %v3182, %v3178
        %v4071 = vpack.c.b16 %v3187, %v3183
        %v4072 = vpack.c.b16 %v3188, %v3184
        %v4073 = vpack.c.b16 %v3189, %v3185
        %v4074 = vpack.c.b16 %v3190, %v3186
        %v4075 = vpack.c.b16 %v3195, %v3191
        %v4076 = vpack.c.b16 %v3196, %v3192
        %v4077 = vpack.c.b16 %v3197, %v3193
        %v4078 = vpack.c.b16 %v3198, %v3194
        %v4079 = vpack.c.b16 %v3203, %v3199
        %v4080 = vpack.c.b16 %v3204, %v3200
        %v4081 = vpack.c.b16 %v3205, %v3201
        %v4082 = vpack.c.b16 %v3206, %v3202
        %v4083 = vpack.c.b16 %v3211, %v3207
        %v4084 = vpack.c.b16 %v3212, %v3208
        %v4085 = vpack.c.b16 %v3213, %v3209
        %v4086 = vpack.c.b16 %v3214, %v3210
        %v4087 = vpack.c.b16 %v3219, %v3215
        %v4088 = vpack.c.b16 %v3220, %v3216
        %v4089 = vpack.c.b16 %v3221, %v3217
        %v4090 = vpack.c.b16 %v3222, %v3218
        %v4091 = vpack.c.b16 %v3227, %v3223
        %v4092 = vpack.c.b16 %v3228, %v3224
        %v4093 = vpack.c.b16 %v3229, %v3225
        %v4094 = vpack.c.b16 %v3230, %v3226
        %v4095 = vpack.c.b16 %v3235, %v3231
        %v4096 = vpack.c.b16 %v3236, %v3232
        %v4097 = vpack.c.b16 %v3237, %v3233
        %v4098 = vpack.c.b16 %v3238, %v3234
        %v4099 = vpack.c.b16 %v3243, %v3239
        %v4100 = vpack.c.b16 %v3244, %v3240
        %v4101 = vpack.c.b16 %v3245, %v3241
        %v4102 = vpack.c.b16 %v3246, %v3242
        %v4103 = vpack.c.b16 %v3251, %v3247
        %v4104 = vpack.c.b16 %v3252, %v3248
        %v4105 = vpack.c.b16 %v3253, %v3249
        %v4106 = vpack.c.b16 %v3254, %v3250
        %v4107 = vpack.c.b16 %v3259, %v3255
        %v4108 = vpack.c.b16 %v3260, %v3256
        %v4109 = vpack.c.b16 %v3261, %v3257
        %v4110 = vpack.c.b16 %v3262, %v3258
        %v4111 = vpack.c.b16 %v3267, %v3263
        %v4112 = vpack.c.b16 %v3268, %v3264
        %v4113 = vpack.c.b16 %v3269, %v3265
        %v4114 = vpack.c.b16 %v3270, %v3266
        %v4115 = vpack.c.b16 %v3275, %v3271
        %v4116 = vpack.c.b16 %v3276, %v3272
        %v4117 = vpack.c.b16 %v3277, %v3273
        %v4118 = vpack.c.b16 %v3278, %v3274
        %v4119 = vpack.c.b16 %v3283, %v3279
        %v4120 = vpack.c.b16 %v3284, %v3280
        %v4121 = vpack.c.b16 %v3285, %v3281
        %v4122 = vpack.c.b16 %v3286, %v3282
        %v4123 = vpack.c.b16 %v3291, %v3287
        %v4124 = vpack.c.b16 %v3292, %v3288
        %v4125 = vpack.c.b16 %v3293, %v3289
        %v4126 = vpack.c.b16 %v3294, %v3290
        %v4127 = vpack.c.b16 %v3299, %v3295
        %v4128 = vpack.c.b16 %v3300, %v3296
        %v4129 = vpack.c.b16 %v3301, %v3297
        %v4130 = vpack.c.b16 %v3302, %v3298
        %v4131 = vpack.c.b16 %v3307, %v3303
        %v4132 = vpack.c.b16 %v3308, %v3304
        %v4133 = vpack.c.b16 %v3309, %v3305
        %v4134 = vpack.c.b16 %v3310, %v3306
        %v4135 = vpack.c.b16 %v3315, %v3311
        %v4136 = vpack.c.b16 %v3316, %v3312
        %v4137 = vpack.c.b16 %v3317, %v3313
        %v4138 = vpack.c.b16 %v3318, %v3314
        %v4139 = vpack.c.b16 %v3323, %v3319
        %v4140 = vpack.c.b16 %v3324, %v3320
        %v4141 = vpack.c.b16 %v3325, %v3321
        %v4142 = vpack.c.b16 %v3326, %v3322
        %v4143 = vpack.c.b16 %v3331, %v3327
        %v4144 = vpack.c.b16 %v3332, %v3328
        %v4145 = vpack.c.b16 %v3333, %v3329
        %v4146 = vpack.c.b16 %v3334, %v3330
        %v4147 = vpack.c.b16 %v3339, %v3335
        %v4148 = vpack.c.b16 %v3340, %v3336
        %v4149 = vpack.c.b16 %v3341, %v3337
        %v4150 = vpack.c.b16 %v3342, %v3338
        %v4151 = vpack.c.b16 %v3347, %v3343
        %v4152 = vpack.c.b16 %v3348, %v3344
        %v4153 = vpack.c.b16 %v3349, %v3345
        %v4154 = vpack.c.b16 %v3350, %v3346
        %v4155 = vpack.c.b16 %v3355, %v3351
        %v4156 = vpack.c.b16 %v3356, %v3352
        %v4157 = vpack.c.b16 %v3357, %v3353
        %v4158 = vpack.c.b16 %v3358, %v3354
        %v4159 = vpack.c.b16 %v3363, %v3359
        %v4160 = vpack.c.b16 %v3364, %v3360
        %v4161 = vpack.c.b16 %v3365, %v3361
        %v4162 = vpack.c.b16 %v3366, %v3362
        %v4163 = vpack.c.b16 %v3371, %v3367
        %v4164 = vpack.c.b16 %v3372, %v3368
        %v4165 = vpack.c.b16 %v3373, %v3369
        %v4166 = vpack.c.b16 %v3374, %v3370
        %v4167 = vpack.c.b16 %v3379, %v3375
        %v4168 = vpack.c.b16 %v3380, %v3376
        %v4169 = vpack.c.b16 %v3381, %v3377
        %v4170 = vpack.c.b16 %v3382, %v3378
        %v4171 = vpack.c.b16 %v3387, %v3383
        %v4172 = vpack.c.b16 %v3388, %v3384
        %v4173 = vpack.c.b16 %v3389, %v3385
        %v4174 = vpack.c.b16 %v3390, %v3386
        %v4175 = vpack.c.b16 %v3395, %v3391
        %v4176 = vpack.c.b16 %v3396, %v3392
        %v4177 = vpack.c.b16 %v3397, %v3393
        %v4178 = vpack.c.b16 %v3398, %v3394
        %v4179 = vpack.c.b16 %v3403, %v3399
        %v4180 = vpack.c.b16 %v3404, %v3400
        %v4181 = vpack.c.b16 %v3405, %v3401
        %v4182 = vpack.c.b16 %v3406, %v3402
        %v4183 = vpack.c.b16 %v3411, %v3407
        %v4184 = vpack.c.b16 %v3412, %v3408
        %v4185 = vpack.c.b16 %v3413, %v3409
        %v4186 = vpack.c.b16 %v3414, %v3410
        %v4187 = vpack.c.b16 %v3419, %v3415
        %v4188 = vpack.c.b16 %v3420, %v3416
        %v4189 = vpack.c.b16 %v3421, %v3417
        %v4190 = vpack.c.b16 %v3422, %v3418
        %4959 = vmatpush.bf16.msra.mxu0 %v3451
        %4960 = vmatpush.bf16.msra.mxu0 %v3447
        %4961 = vmatpush.bf16.msra.mxu0 %v3443
        %4962 = vmatpush.bf16.msra.mxu0 %v3439
        %4963 = vmatpush.bf16.msra.mxu0 %v3435
        %4964 = vmatpush.bf16.msra.mxu0 %v3431
        %4965 = vmatpush.bf16.msra.mxu0 %v3427
        %4966 = vmatpush.bf16.msra.mxu0 %v3423
        %4967 = vmatmul.bf16.gmra.mxu0 %v1071
        %v4968 = vpop.f32.mrf.mxu0
        %v4969 = vadd.f32 %v1027, %v4968
        %v4970 = vpop.f32.mrf.mxu0
        %4971 = vdwg.mxu0
        %4972 = vmatpush.bf16.msra.mxu0 %v3483
        %4973 = vmatpush.bf16.msra.mxu0 %v3479
        %4974 = vmatpush.bf16.msra.mxu0 %v3475
        %4975 = vmatpush.bf16.msra.mxu0 %v3471
        %4976 = vmatpush.bf16.msra.mxu0 %v3467
        %4977 = vmatpush.bf16.msra.mxu0 %v3463
        %4978 = vmatpush.bf16.msra.mxu0 %v3459
        %4979 = vmatpush.bf16.msra.mxu0 %v3455
        %4980 = vmatmul.bf16.gmra.mxu0 %v1072
        %v4981 = vpop.f32.mrf.mxu0
        %v4982 = vadd.f32 %v4969, %v4981
        %v4983 = vpop.f32.mrf.mxu0
        %4984 = vdwg.mxu0
        %4985 = vmatpush.bf16.msra.mxu0 %v3515
        %4986 = vmatpush.bf16.msra.mxu0 %v3511
        %4987 = vmatpush.bf16.msra.mxu0 %v3507
        %4988 = vmatpush.bf16.msra.mxu0 %v3503
        %4989 = vmatpush.bf16.msra.mxu0 %v3499
        %4990 = vmatpush.bf16.msra.mxu0 %v3495
        %4991 = vmatpush.bf16.msra.mxu0 %v3491
        %4992 = vmatpush.bf16.msra.mxu0 %v3487
        %4993 = vmatmul.bf16.gmra.mxu0 %v1073
        %v4994 = vpop.f32.mrf.mxu0
        %v4995 = vadd.f32 %v4982, %v4994
        %v4996 = vpop.f32.mrf.mxu0
        %4997 = vdwg.mxu0
        %4998 = vmatpush.bf16.msra.mxu0 %v3547
        %4999 = vmatpush.bf16.msra.mxu0 %v3543
        %5000 = vmatpush.bf16.msra.mxu0 %v3539
        %5001 = vmatpush.bf16.msra.mxu0 %v3535
        %5002 = vmatpush.bf16.msra.mxu0 %v3531
        %5003 = vmatpush.bf16.msra.mxu0 %v3527
        %5004 = vmatpush.bf16.msra.mxu0 %v3523
        %5005 = vmatpush.bf16.msra.mxu0 %v3519
        %5006 = vmatmul.bf16.gmra.mxu0 %v1074
        %v5007 = vpop.f32.mrf.mxu0
        %v5008 = vadd.f32 %v4995, %v5007
        %v5009 = vpop.f32.mrf.mxu0
        %5010 = vdwg.mxu0
        %5011 = vmatpush.bf16.msra.mxu0 %v3579
        %5012 = vmatpush.bf16.msra.mxu0 %v3575
        %5013 = vmatpush.bf16.msra.mxu0 %v3571
        %5014 = vmatpush.bf16.msra.mxu0 %v3567
        %5015 = vmatpush.bf16.msra.mxu0 %v3563
        %5016 = vmatpush.bf16.msra.mxu0 %v3559
        %5017 = vmatpush.bf16.msra.mxu0 %v3555
        %5018 = vmatpush.bf16.msra.mxu0 %v3551
        %5019 = vmatmul.bf16.gmra.mxu0 %v1075
        %v5020 = vpop.f32.mrf.mxu0
        %v5021 = vadd.f32 %v5008, %v5020
        %v5022 = vpop.f32.mrf.mxu0
        %5023 = vdwg.mxu0
        %5024 = vmatpush.bf16.msra.mxu0 %v3611
        %5025 = vmatpush.bf16.msra.mxu0 %v3607
        %5026 = vmatpush.bf16.msra.mxu0 %v3603
        %5027 = vmatpush.bf16.msra.mxu0 %v3599
        %5028 = vmatpush.bf16.msra.mxu0 %v3595
        %5029 = vmatpush.bf16.msra.mxu0 %v3591
        %5030 = vmatpush.bf16.msra.mxu0 %v3587
        %5031 = vmatpush.bf16.msra.mxu0 %v3583
        %5032 = vmatmul.bf16.gmra.mxu0 %v1076
        %v5033 = vpop.f32.mrf.mxu0
        %v5034 = vadd.f32 %v5021, %v5033
        %v5035 = vpop.f32.mrf.mxu0
        %5036 = vdwg.mxu0
        %5037 = vmatpush.bf16.msra.mxu0 %v3643
        %5038 = vmatpush.bf16.msra.mxu0 %v3639
        %5039 = vmatpush.bf16.msra.mxu0 %v3635
        %5040 = vmatpush.bf16.msra.mxu0 %v3631
        %5041 = vmatpush.bf16.msra.mxu0 %v3627
        %5042 = vmatpush.bf16.msra.mxu0 %v3623
        %5043 = vmatpush.bf16.msra.mxu0 %v3619
        %5044 = vmatpush.bf16.msra.mxu0 %v3615
        %5045 = vmatmul.bf16.gmra.mxu0 %v1077
        %v5046 = vpop.f32.mrf.mxu0
        %v5047 = vadd.f32 %v5034, %v5046
        %v5048 = vpop.f32.mrf.mxu0
        %5049 = vdwg.mxu0
        %5050 = vmatpush.bf16.msra.mxu0 %v3675
        %5051 = vmatpush.bf16.msra.mxu0 %v3671
        %5052 = vmatpush.bf16.msra.mxu0 %v3667
        %5053 = vmatpush.bf16.msra.mxu0 %v3663
        %5054 = vmatpush.bf16.msra.mxu0 %v3659
        %5055 = vmatpush.bf16.msra.mxu0 %v3655
        %5056 = vmatpush.bf16.msra.mxu0 %v3651
        %5057 = vmatpush.bf16.msra.mxu0 %v3647
        %5058 = vmatmul.bf16.gmra.mxu0 %v1078
        %v5059 = vpop.f32.mrf.mxu0
        %v5060 = vadd.f32 %v5047, %v5059
        %v5061 = vpop.f32.mrf.mxu0
        %5062 = vdwg.mxu0
        %5063 = vmatpush.bf16.msra.mxu0 %v3707
        %5064 = vmatpush.bf16.msra.mxu0 %v3703
        %5065 = vmatpush.bf16.msra.mxu0 %v3699
        %5066 = vmatpush.bf16.msra.mxu0 %v3695
        %5067 = vmatpush.bf16.msra.mxu0 %v3691
        %5068 = vmatpush.bf16.msra.mxu0 %v3687
        %5069 = vmatpush.bf16.msra.mxu0 %v3683
        %5070 = vmatpush.bf16.msra.mxu0 %v3679
        %5071 = vmatmul.bf16.gmra.mxu0 %v1079
        %v5072 = vpop.f32.mrf.mxu0
        %v5073 = vadd.f32 %v5060, %v5072
        %v5074 = vpop.f32.mrf.mxu0
        %5075 = vdwg.mxu0
        %5076 = vmatpush.bf16.msra.mxu0 %v3739
        %5077 = vmatpush.bf16.msra.mxu0 %v3735
        %5078 = vmatpush.bf16.msra.mxu0 %v3731
        %5079 = vmatpush.bf16.msra.mxu0 %v3727
        %5080 = vmatpush.bf16.msra.mxu0 %v3723
        %5081 = vmatpush.bf16.msra.mxu0 %v3719
        %5082 = vmatpush.bf16.msra.mxu0 %v3715
        %5083 = vmatpush.bf16.msra.mxu0 %v3711
        %5084 = vmatmul.bf16.gmra.mxu0 %v1080
        %v5085 = vpop.f32.mrf.mxu0
        %v5086 = vadd.f32 %v5073, %v5085
        %v5087 = vpop.f32.mrf.mxu0
        %5088 = vdwg.mxu0
        %5089 = vmatpush.bf16.msra.mxu0 %v3771
        %5090 = vmatpush.bf16.msra.mxu0 %v3767
        %5091 = vmatpush.bf16.msra.mxu0 %v3763
        %5092 = vmatpush.bf16.msra.mxu0 %v3759
        %5093 = vmatpush.bf16.msra.mxu0 %v3755
        %5094 = vmatpush.bf16.msra.mxu0 %v3751
        %5095 = vmatpush.bf16.msra.mxu0 %v3747
        %5096 = vmatpush.bf16.msra.mxu0 %v3743
        %5097 = vmatmul.bf16.gmra.mxu0 %v1081
        %v5098 = vpop.f32.mrf.mxu0
        %v5099 = vadd.f32 %v5086, %v5098
        %v5100 = vpop.f32.mrf.mxu0
        %5101 = vdwg.mxu0
        %5102 = vmatpush.bf16.msra.mxu0 %v3803
        %5103 = vmatpush.bf16.msra.mxu0 %v3799
        %5104 = vmatpush.bf16.msra.mxu0 %v3795
        %5105 = vmatpush.bf16.msra.mxu0 %v3791
        %5106 = vmatpush.bf16.msra.mxu0 %v3787
        %5107 = vmatpush.bf16.msra.mxu0 %v3783
        %5108 = vmatpush.bf16.msra.mxu0 %v3779
        %5109 = vmatpush.bf16.msra.mxu0 %v3775
        %5110 = vmatmul.bf16.gmra.mxu0 %v1082
        %v5111 = vpop.f32.mrf.mxu0
        %v5112 = vadd.f32 %v5099, %v5111
        %v5113 = vpop.f32.mrf.mxu0
        %5114 = vdwg.mxu0
        %5115 = vmatpush.bf16.msra.mxu0 %v3835
        %5116 = vmatpush.bf16.msra.mxu0 %v3831
        %5117 = vmatpush.bf16.msra.mxu0 %v3827
        %5118 = vmatpush.bf16.msra.mxu0 %v3823
        %5119 = vmatpush.bf16.msra.mxu0 %v3819
        %5120 = vmatpush.bf16.msra.mxu0 %v3815
        %5121 = vmatpush.bf16.msra.mxu0 %v3811
        %5122 = vmatpush.bf16.msra.mxu0 %v3807
        %5123 = vmatmul.bf16.gmra.mxu0 %v1083
        %v5124 = vpop.f32.mrf.mxu0
        %v5125 = vadd.f32 %v5112, %v5124
        %v5126 = vpop.f32.mrf.mxu0
        %5127 = vdwg.mxu0
        %5128 = vmatpush.bf16.msra.mxu0 %v3867
        %5129 = vmatpush.bf16.msra.mxu0 %v3863
        %5130 = vmatpush.bf16.msra.mxu0 %v3859
        %5131 = vmatpush.bf16.msra.mxu0 %v3855
        %5132 = vmatpush.bf16.msra.mxu0 %v3851
        %5133 = vmatpush.bf16.msra.mxu0 %v3847
        %5134 = vmatpush.bf16.msra.mxu0 %v3843
        %5135 = vmatpush.bf16.msra.mxu0 %v3839
        %5136 = vmatmul.bf16.gmra.mxu0 %v1084
        %v5137 = vpop.f32.mrf.mxu0
        %v5138 = vadd.f32 %v5125, %v5137
        %v5139 = vpop.f32.mrf.mxu0
        %5140 = vdwg.mxu0
        %5141 = vmatpush.bf16.msra.mxu0 %v3899
        %5142 = vmatpush.bf16.msra.mxu0 %v3895
        %5143 = vmatpush.bf16.msra.mxu0 %v3891
        %5144 = vmatpush.bf16.msra.mxu0 %v3887
        %5145 = vmatpush.bf16.msra.mxu0 %v3883
        %5146 = vmatpush.bf16.msra.mxu0 %v3879
        %5147 = vmatpush.bf16.msra.mxu0 %v3875
        %5148 = vmatpush.bf16.msra.mxu0 %v3871
        %5149 = vmatmul.bf16.gmra.mxu0 %v1085
        %v5150 = vpop.f32.mrf.mxu0
        %v5151 = vadd.f32 %v5138, %v5150
        %v5152 = vpop.f32.mrf.mxu0
        %5153 = vdwg.mxu0
        %5154 = vmatpush.bf16.msra.mxu0 %v3931
        %5155 = vmatpush.bf16.msra.mxu0 %v3927
        %5156 = vmatpush.bf16.msra.mxu0 %v3923
        %5157 = vmatpush.bf16.msra.mxu0 %v3919
        %5158 = vmatpush.bf16.msra.mxu0 %v3915
        %5159 = vmatpush.bf16.msra.mxu0 %v3911
        %5160 = vmatpush.bf16.msra.mxu0 %v3907
        %5161 = vmatpush.bf16.msra.mxu0 %v3903
        %5162 = vmatmul.bf16.gmra.mxu0 %v1086
        %v5163 = vpop.f32.mrf.mxu0
        %v5164 = vadd.f32 %v5151, %v5163
        %v5165 = vpop.f32.mrf.mxu0
        %5166 = vdwg.mxu0
        %5167 = vmatpush.bf16.msra.mxu0 %v3963
        %5168 = vmatpush.bf16.msra.mxu0 %v3959
        %5169 = vmatpush.bf16.msra.mxu0 %v3955
        %5170 = vmatpush.bf16.msra.mxu0 %v3951
        %5171 = vmatpush.bf16.msra.mxu0 %v3947
        %5172 = vmatpush.bf16.msra.mxu0 %v3943
        %5173 = vmatpush.bf16.msra.mxu0 %v3939
        %5174 = vmatpush.bf16.msra.mxu0 %v3935
        %5175 = vmatmul.bf16.gmra.mxu0 %v1087
        %v5176 = vpop.f32.mrf.mxu0
        %v5177 = vadd.f32 %v5164, %v5176
        %v5178 = vpop.f32.mrf.mxu0
        %5179 = vdwg.mxu0
        %5180 = vmatpush.bf16.msra.mxu0 %v3995
        %5181 = vmatpush.bf16.msra.mxu0 %v3991
        %5182 = vmatpush.bf16.msra.mxu0 %v3987
        %5183 = vmatpush.bf16.msra.mxu0 %v3983
        %5184 = vmatpush.bf16.msra.mxu0 %v3979
        %5185 = vmatpush.bf16.msra.mxu0 %v3975
        %5186 = vmatpush.bf16.msra.mxu0 %v3971
        %5187 = vmatpush.bf16.msra.mxu0 %v3967
        %5188 = vmatmul.bf16.gmra.mxu0 %v1088
        %v5189 = vpop.f32.mrf.mxu0
        %v5190 = vadd.f32 %v5177, %v5189
        %v5191 = vpop.f32.mrf.mxu0
        %5192 = vdwg.mxu0
        %5193 = vmatpush.bf16.msra.mxu0 %v4027
        %5194 = vmatpush.bf16.msra.mxu0 %v4023
        %5195 = vmatpush.bf16.msra.mxu0 %v4019
        %5196 = vmatpush.bf16.msra.mxu0 %v4015
        %5197 = vmatpush.bf16.msra.mxu0 %v4011
        %5198 = vmatpush.bf16.msra.mxu0 %v4007
        %5199 = vmatpush.bf16.msra.mxu0 %v4003
        %5200 = vmatpush.bf16.msra.mxu0 %v3999
        %5201 = vmatmul.bf16.gmra.mxu0 %v1089
        %v5202 = vpop.f32.mrf.mxu0
        %v5203 = vadd.f32 %v5190, %v5202
        %v5204 = vpop.f32.mrf.mxu0
        %5205 = vdwg.mxu0
        %5206 = vmatpush.bf16.msra.mxu0 %v4059
        %5207 = vmatpush.bf16.msra.mxu0 %v4055
        %5208 = vmatpush.bf16.msra.mxu0 %v4051
        %5209 = vmatpush.bf16.msra.mxu0 %v4047
        %5210 = vmatpush.bf16.msra.mxu0 %v4043
        %5211 = vmatpush.bf16.msra.mxu0 %v4039
        %5212 = vmatpush.bf16.msra.mxu0 %v4035
        %5213 = vmatpush.bf16.msra.mxu0 %v4031
        %5214 = vmatmul.bf16.gmra.mxu0 %v1090
        %v5215 = vpop.f32.mrf.mxu0
        %v5216 = vadd.f32 %v5203, %v5215
        %v5217 = vpop.f32.mrf.mxu0
        %5218 = vdwg.mxu0
        %5219 = vmatpush.bf16.msra.mxu0 %v4091
        %5220 = vmatpush.bf16.msra.mxu0 %v4087
        %5221 = vmatpush.bf16.msra.mxu0 %v4083
        %5222 = vmatpush.bf16.msra.mxu0 %v4079
        %5223 = vmatpush.bf16.msra.mxu0 %v4075
        %5224 = vmatpush.bf16.msra.mxu0 %v4071
        %5225 = vmatpush.bf16.msra.mxu0 %v4067
        %5226 = vmatpush.bf16.msra.mxu0 %v4063
        %5227 = vmatmul.bf16.gmra.mxu0 %v1091
        %v5228 = vpop.f32.mrf.mxu0
        %v5229 = vadd.f32 %v5216, %v5228
        %v5230 = vpop.f32.mrf.mxu0
        %5231 = vdwg.mxu0
        %5232 = vmatpush.bf16.msra.mxu0 %v4123
        %5233 = vmatpush.bf16.msra.mxu0 %v4119
        %5234 = vmatpush.bf16.msra.mxu0 %v4115
        %5235 = vmatpush.bf16.msra.mxu0 %v4111
        %5236 = vmatpush.bf16.msra.mxu0 %v4107
        %5237 = vmatpush.bf16.msra.mxu0 %v4103
        %5238 = vmatpush.bf16.msra.mxu0 %v4099
        %5239 = vmatpush.bf16.msra.mxu0 %v4095
        %5240 = vmatmul.bf16.gmra.mxu0 %v1092
        %v5241 = vpop.f32.mrf.mxu0
        %v5242 = vadd.f32 %v5229, %v5241
        %v5243 = vpop.f32.mrf.mxu0
        %5244 = vdwg.mxu0
        %5245 = vmatpush.bf16.msra.mxu0 %v4155
        %5246 = vmatpush.bf16.msra.mxu0 %v4151
        %5247 = vmatpush.bf16.msra.mxu0 %v4147
        %5248 = vmatpush.bf16.msra.mxu0 %v4143
        %5249 = vmatpush.bf16.msra.mxu0 %v4139
        %5250 = vmatpush.bf16.msra.mxu0 %v4135
        %5251 = vmatpush.bf16.msra.mxu0 %v4131
        %5252 = vmatpush.bf16.msra.mxu0 %v4127
        %5253 = vmatmul.bf16.gmra.mxu0 %v1093
        %v5254 = vpop.f32.mrf.mxu0
        %v5255 = vadd.f32 %v5242, %v5254
        %v5256 = vpop.f32.mrf.mxu0
        %5257 = vdwg.mxu0
        %5258 = vmatpush.bf16.msra.mxu0 %v4187
        %5259 = vmatpush.bf16.msra.mxu0 %v4183
        %5260 = vmatpush.bf16.msra.mxu0 %v4179
        %5261 = vmatpush.bf16.msra.mxu0 %v4175
        %5262 = vmatpush.bf16.msra.mxu0 %v4171
        %5263 = vmatpush.bf16.msra.mxu0 %v4167
        %5264 = vmatpush.bf16.msra.mxu0 %v4163
        %5265 = vmatpush.bf16.msra.mxu0 %v4159
        %5266 = vmatmul.bf16.gmra.mxu0 %v1094
        %v5267 = vpop.f32.mrf.mxu0
        %v5268 = vadd.f32 %v5255, %v5267
        %v5269 = vpop.f32.mrf.mxu0
        %5270 = vdwg.mxu0
        %5271 = vmatpush.bf16.msra.mxu0 %v3452
        %5272 = vmatpush.bf16.msra.mxu0 %v3448
        %5273 = vmatpush.bf16.msra.mxu0 %v3444
        %5274 = vmatpush.bf16.msra.mxu0 %v3440
        %5275 = vmatpush.bf16.msra.mxu0 %v3436
        %5276 = vmatpush.bf16.msra.mxu0 %v3432
        %5277 = vmatpush.bf16.msra.mxu0 %v3428
        %5278 = vmatpush.bf16.msra.mxu0 %v3424
        %5279 = vmatmul.bf16.gmra.mxu0 %v1071
        %v5280 = vpop.f32.mrf.mxu0
        %v5281 = vadd.f32 %v1028, %v5280
        %v5282 = vpop.f32.mrf.mxu0
        %5283 = vdwg.mxu0
        %5284 = vmatpush.bf16.msra.mxu0 %v3484
        %5285 = vmatpush.bf16.msra.mxu0 %v3480
        %5286 = vmatpush.bf16.msra.mxu0 %v3476
        %5287 = vmatpush.bf16.msra.mxu0 %v3472
        %5288 = vmatpush.bf16.msra.mxu0 %v3468
        %5289 = vmatpush.bf16.msra.mxu0 %v3464
        %5290 = vmatpush.bf16.msra.mxu0 %v3460
        %5291 = vmatpush.bf16.msra.mxu0 %v3456
        %5292 = vmatmul.bf16.gmra.mxu0 %v1072
        %v5293 = vpop.f32.mrf.mxu0
        %v5294 = vadd.f32 %v5281, %v5293
        %v5295 = vpop.f32.mrf.mxu0
        %5296 = vdwg.mxu0
        %5297 = vmatpush.bf16.msra.mxu0 %v3516
        %5298 = vmatpush.bf16.msra.mxu0 %v3512
        %5299 = vmatpush.bf16.msra.mxu0 %v3508
        %5300 = vmatpush.bf16.msra.mxu0 %v3504
        %5301 = vmatpush.bf16.msra.mxu0 %v3500
        %5302 = vmatpush.bf16.msra.mxu0 %v3496
        %5303 = vmatpush.bf16.msra.mxu0 %v3492
        %5304 = vmatpush.bf16.msra.mxu0 %v3488
        %5305 = vmatmul.bf16.gmra.mxu0 %v1073
        %v5306 = vpop.f32.mrf.mxu0
        %v5307 = vadd.f32 %v5294, %v5306
        %v5308 = vpop.f32.mrf.mxu0
        %5309 = vdwg.mxu0
        %5310 = vmatpush.bf16.msra.mxu0 %v3548
        %5311 = vmatpush.bf16.msra.mxu0 %v3544
        %5312 = vmatpush.bf16.msra.mxu0 %v3540
        %5313 = vmatpush.bf16.msra.mxu0 %v3536
        %5314 = vmatpush.bf16.msra.mxu0 %v3532
        %5315 = vmatpush.bf16.msra.mxu0 %v3528
        %5316 = vmatpush.bf16.msra.mxu0 %v3524
        %5317 = vmatpush.bf16.msra.mxu0 %v3520
        %5318 = vmatmul.bf16.gmra.mxu0 %v1074
        %v5319 = vpop.f32.mrf.mxu0
        %v5320 = vadd.f32 %v5307, %v5319
        %v5321 = vpop.f32.mrf.mxu0
        %5322 = vdwg.mxu0
        %5323 = vmatpush.bf16.msra.mxu0 %v3580
        %5324 = vmatpush.bf16.msra.mxu0 %v3576
        %5325 = vmatpush.bf16.msra.mxu0 %v3572
        %5326 = vmatpush.bf16.msra.mxu0 %v3568
        %5327 = vmatpush.bf16.msra.mxu0 %v3564
        %5328 = vmatpush.bf16.msra.mxu0 %v3560
        %5329 = vmatpush.bf16.msra.mxu0 %v3556
        %5330 = vmatpush.bf16.msra.mxu0 %v3552
        %5331 = vmatmul.bf16.gmra.mxu0 %v1075
        %v5332 = vpop.f32.mrf.mxu0
        %v5333 = vadd.f32 %v5320, %v5332
        %v5334 = vpop.f32.mrf.mxu0
        %5335 = vdwg.mxu0
        %5336 = vmatpush.bf16.msra.mxu0 %v3612
        %5337 = vmatpush.bf16.msra.mxu0 %v3608
        %5338 = vmatpush.bf16.msra.mxu0 %v3604
        %5339 = vmatpush.bf16.msra.mxu0 %v3600
        %5340 = vmatpush.bf16.msra.mxu0 %v3596
        %5341 = vmatpush.bf16.msra.mxu0 %v3592
        %5342 = vmatpush.bf16.msra.mxu0 %v3588
        %5343 = vmatpush.bf16.msra.mxu0 %v3584
        %5344 = vmatmul.bf16.gmra.mxu0 %v1076
        %v5345 = vpop.f32.mrf.mxu0
        %v5346 = vadd.f32 %v5333, %v5345
        %v5347 = vpop.f32.mrf.mxu0
        %5348 = vdwg.mxu0
        %5349 = vmatpush.bf16.msra.mxu0 %v3644
        %5350 = vmatpush.bf16.msra.mxu0 %v3640
        %5351 = vmatpush.bf16.msra.mxu0 %v3636
        %5352 = vmatpush.bf16.msra.mxu0 %v3632
        %5353 = vmatpush.bf16.msra.mxu0 %v3628
        %5354 = vmatpush.bf16.msra.mxu0 %v3624
        %5355 = vmatpush.bf16.msra.mxu0 %v3620
        %5356 = vmatpush.bf16.msra.mxu0 %v3616
        %5357 = vmatmul.bf16.gmra.mxu0 %v1077
        %v5358 = vpop.f32.mrf.mxu0
        %v5359 = vadd.f32 %v5346, %v5358
        %v5360 = vpop.f32.mrf.mxu0
        %5361 = vdwg.mxu0
        %5362 = vmatpush.bf16.msra.mxu0 %v3676
        %5363 = vmatpush.bf16.msra.mxu0 %v3672
        %5364 = vmatpush.bf16.msra.mxu0 %v3668
        %5365 = vmatpush.bf16.msra.mxu0 %v3664
        %5366 = vmatpush.bf16.msra.mxu0 %v3660
        %5367 = vmatpush.bf16.msra.mxu0 %v3656
        %5368 = vmatpush.bf16.msra.mxu0 %v3652
        %5369 = vmatpush.bf16.msra.mxu0 %v3648
        %5370 = vmatmul.bf16.gmra.mxu0 %v1078
        %v5371 = vpop.f32.mrf.mxu0
        %v5372 = vadd.f32 %v5359, %v5371
        %v5373 = vpop.f32.mrf.mxu0
        %5374 = vdwg.mxu0
        %5375 = vmatpush.bf16.msra.mxu0 %v3708
        %5376 = vmatpush.bf16.msra.mxu0 %v3704
        %5377 = vmatpush.bf16.msra.mxu0 %v3700
        %5378 = vmatpush.bf16.msra.mxu0 %v3696
        %5379 = vmatpush.bf16.msra.mxu0 %v3692
        %5380 = vmatpush.bf16.msra.mxu0 %v3688
        %5381 = vmatpush.bf16.msra.mxu0 %v3684
        %5382 = vmatpush.bf16.msra.mxu0 %v3680
        %5383 = vmatmul.bf16.gmra.mxu0 %v1079
        %v5384 = vpop.f32.mrf.mxu0
        %v5385 = vadd.f32 %v5372, %v5384
        %v5386 = vpop.f32.mrf.mxu0
        %5387 = vdwg.mxu0
        %5388 = vmatpush.bf16.msra.mxu0 %v3740
        %5389 = vmatpush.bf16.msra.mxu0 %v3736
        %5390 = vmatpush.bf16.msra.mxu0 %v3732
        %5391 = vmatpush.bf16.msra.mxu0 %v3728
        %5392 = vmatpush.bf16.msra.mxu0 %v3724
        %5393 = vmatpush.bf16.msra.mxu0 %v3720
        %5394 = vmatpush.bf16.msra.mxu0 %v3716
        %5395 = vmatpush.bf16.msra.mxu0 %v3712
        %5396 = vmatmul.bf16.gmra.mxu0 %v1080
        %v5397 = vpop.f32.mrf.mxu0
        %v5398 = vadd.f32 %v5385, %v5397
        %v5399 = vpop.f32.mrf.mxu0
        %5400 = vdwg.mxu0
        %5401 = vmatpush.bf16.msra.mxu0 %v3772
        %5402 = vmatpush.bf16.msra.mxu0 %v3768
        %5403 = vmatpush.bf16.msra.mxu0 %v3764
        %5404 = vmatpush.bf16.msra.mxu0 %v3760
        %5405 = vmatpush.bf16.msra.mxu0 %v3756
        %5406 = vmatpush.bf16.msra.mxu0 %v3752
        %5407 = vmatpush.bf16.msra.mxu0 %v3748
        %5408 = vmatpush.bf16.msra.mxu0 %v3744
        %5409 = vmatmul.bf16.gmra.mxu0 %v1081
        %v5410 = vpop.f32.mrf.mxu0
        %v5411 = vadd.f32 %v5398, %v5410
        %v5412 = vpop.f32.mrf.mxu0
        %5413 = vdwg.mxu0
        %5414 = vmatpush.bf16.msra.mxu0 %v3804
        %5415 = vmatpush.bf16.msra.mxu0 %v3800
        %5416 = vmatpush.bf16.msra.mxu0 %v3796
        %5417 = vmatpush.bf16.msra.mxu0 %v3792
        %5418 = vmatpush.bf16.msra.mxu0 %v3788
        %5419 = vmatpush.bf16.msra.mxu0 %v3784
        %5420 = vmatpush.bf16.msra.mxu0 %v3780
        %5421 = vmatpush.bf16.msra.mxu0 %v3776
        %5422 = vmatmul.bf16.gmra.mxu0 %v1082
        %v5423 = vpop.f32.mrf.mxu0
        %v5424 = vadd.f32 %v5411, %v5423
        %v5425 = vpop.f32.mrf.mxu0
        %5426 = vdwg.mxu0
        %5427 = vmatpush.bf16.msra.mxu0 %v3836
        %5428 = vmatpush.bf16.msra.mxu0 %v3832
        %5429 = vmatpush.bf16.msra.mxu0 %v3828
        %5430 = vmatpush.bf16.msra.mxu0 %v3824
        %5431 = vmatpush.bf16.msra.mxu0 %v3820
        %5432 = vmatpush.bf16.msra.mxu0 %v3816
        %5433 = vmatpush.bf16.msra.mxu0 %v3812
        %5434 = vmatpush.bf16.msra.mxu0 %v3808
        %5435 = vmatmul.bf16.gmra.mxu0 %v1083
        %v5436 = vpop.f32.mrf.mxu0
        %v5437 = vadd.f32 %v5424, %v5436
        %v5438 = vpop.f32.mrf.mxu0
        %5439 = vdwg.mxu0
        %5440 = vmatpush.bf16.msra.mxu0 %v3868
        %5441 = vmatpush.bf16.msra.mxu0 %v3864
        %5442 = vmatpush.bf16.msra.mxu0 %v3860
        %5443 = vmatpush.bf16.msra.mxu0 %v3856
        %5444 = vmatpush.bf16.msra.mxu0 %v3852
        %5445 = vmatpush.bf16.msra.mxu0 %v3848
        %5446 = vmatpush.bf16.msra.mxu0 %v3844
        %5447 = vmatpush.bf16.msra.mxu0 %v3840
        %5448 = vmatmul.bf16.gmra.mxu0 %v1084
        %v5449 = vpop.f32.mrf.mxu0
        %v5450 = vadd.f32 %v5437, %v5449
        %v5451 = vpop.f32.mrf.mxu0
        %5452 = vdwg.mxu0
        %5453 = vmatpush.bf16.msra.mxu0 %v3900
        %5454 = vmatpush.bf16.msra.mxu0 %v3896
        %5455 = vmatpush.bf16.msra.mxu0 %v3892
        %5456 = vmatpush.bf16.msra.mxu0 %v3888
        %5457 = vmatpush.bf16.msra.mxu0 %v3884
        %5458 = vmatpush.bf16.msra.mxu0 %v3880
        %5459 = vmatpush.bf16.msra.mxu0 %v3876
        %5460 = vmatpush.bf16.msra.mxu0 %v3872
        %5461 = vmatmul.bf16.gmra.mxu0 %v1085
        %v5462 = vpop.f32.mrf.mxu0
        %v5463 = vadd.f32 %v5450, %v5462
        %v5464 = vpop.f32.mrf.mxu0
        %5465 = vdwg.mxu0
        %5466 = vmatpush.bf16.msra.mxu0 %v3932
        %5467 = vmatpush.bf16.msra.mxu0 %v3928
        %5468 = vmatpush.bf16.msra.mxu0 %v3924
        %5469 = vmatpush.bf16.msra.mxu0 %v3920
        %5470 = vmatpush.bf16.msra.mxu0 %v3916
        %5471 = vmatpush.bf16.msra.mxu0 %v3912
        %5472 = vmatpush.bf16.msra.mxu0 %v3908
        %5473 = vmatpush.bf16.msra.mxu0 %v3904
        %5474 = vmatmul.bf16.gmra.mxu0 %v1086
        %v5475 = vpop.f32.mrf.mxu0
        %v5476 = vadd.f32 %v5463, %v5475
        %v5477 = vpop.f32.mrf.mxu0
        %5478 = vdwg.mxu0
        %5479 = vmatpush.bf16.msra.mxu0 %v3964
        %5480 = vmatpush.bf16.msra.mxu0 %v3960
        %5481 = vmatpush.bf16.msra.mxu0 %v3956
        %5482 = vmatpush.bf16.msra.mxu0 %v3952
        %5483 = vmatpush.bf16.msra.mxu0 %v3948
        %5484 = vmatpush.bf16.msra.mxu0 %v3944
        %5485 = vmatpush.bf16.msra.mxu0 %v3940
        %5486 = vmatpush.bf16.msra.mxu0 %v3936
        %5487 = vmatmul.bf16.gmra.mxu0 %v1087
        %v5488 = vpop.f32.mrf.mxu0
        %v5489 = vadd.f32 %v5476, %v5488
        %v5490 = vpop.f32.mrf.mxu0
        %5491 = vdwg.mxu0
        %5492 = vmatpush.bf16.msra.mxu0 %v3996
        %5493 = vmatpush.bf16.msra.mxu0 %v3992
        %5494 = vmatpush.bf16.msra.mxu0 %v3988
        %5495 = vmatpush.bf16.msra.mxu0 %v3984
        %5496 = vmatpush.bf16.msra.mxu0 %v3980
        %5497 = vmatpush.bf16.msra.mxu0 %v3976
        %5498 = vmatpush.bf16.msra.mxu0 %v3972
        %5499 = vmatpush.bf16.msra.mxu0 %v3968
        %5500 = vmatmul.bf16.gmra.mxu0 %v1088
        %v5501 = vpop.f32.mrf.mxu0
        %v5502 = vadd.f32 %v5489, %v5501
        %v5503 = vpop.f32.mrf.mxu0
        %5504 = vdwg.mxu0
        %5505 = vmatpush.bf16.msra.mxu0 %v4028
        %5506 = vmatpush.bf16.msra.mxu0 %v4024
        %5507 = vmatpush.bf16.msra.mxu0 %v4020
        %5508 = vmatpush.bf16.msra.mxu0 %v4016
        %5509 = vmatpush.bf16.msra.mxu0 %v4012
        %5510 = vmatpush.bf16.msra.mxu0 %v4008
        %5511 = vmatpush.bf16.msra.mxu0 %v4004
        %5512 = vmatpush.bf16.msra.mxu0 %v4000
        %5513 = vmatmul.bf16.gmra.mxu0 %v1089
        %v5514 = vpop.f32.mrf.mxu0
        %v5515 = vadd.f32 %v5502, %v5514
        %v5516 = vpop.f32.mrf.mxu0
        %5517 = vdwg.mxu0
        %5518 = vmatpush.bf16.msra.mxu0 %v4060
        %5519 = vmatpush.bf16.msra.mxu0 %v4056
        %5520 = vmatpush.bf16.msra.mxu0 %v4052
        %5521 = vmatpush.bf16.msra.mxu0 %v4048
        %5522 = vmatpush.bf16.msra.mxu0 %v4044
        %5523 = vmatpush.bf16.msra.mxu0 %v4040
        %5524 = vmatpush.bf16.msra.mxu0 %v4036
        %5525 = vmatpush.bf16.msra.mxu0 %v4032
        %5526 = vmatmul.bf16.gmra.mxu0 %v1090
        %v5527 = vpop.f32.mrf.mxu0
        %v5528 = vadd.f32 %v5515, %v5527
        %v5529 = vpop.f32.mrf.mxu0
        %5530 = vdwg.mxu0
        %5531 = vmatpush.bf16.msra.mxu0 %v4092
        %5532 = vmatpush.bf16.msra.mxu0 %v4088
        %5533 = vmatpush.bf16.msra.mxu0 %v4084
        %5534 = vmatpush.bf16.msra.mxu0 %v4080
        %5535 = vmatpush.bf16.msra.mxu0 %v4076
        %5536 = vmatpush.bf16.msra.mxu0 %v4072
        %5537 = vmatpush.bf16.msra.mxu0 %v4068
        %5538 = vmatpush.bf16.msra.mxu0 %v4064
        %5539 = vmatmul.bf16.gmra.mxu0 %v1091
        %v5540 = vpop.f32.mrf.mxu0
        %v5541 = vadd.f32 %v5528, %v5540
        %v5542 = vpop.f32.mrf.mxu0
        %5543 = vdwg.mxu0
        %5544 = vmatpush.bf16.msra.mxu0 %v4124
        %5545 = vmatpush.bf16.msra.mxu0 %v4120
        %5546 = vmatpush.bf16.msra.mxu0 %v4116
        %5547 = vmatpush.bf16.msra.mxu0 %v4112
        %5548 = vmatpush.bf16.msra.mxu0 %v4108
        %5549 = vmatpush.bf16.msra.mxu0 %v4104
        %5550 = vmatpush.bf16.msra.mxu0 %v4100
        %5551 = vmatpush.bf16.msra.mxu0 %v4096
        %5552 = vmatmul.bf16.gmra.mxu0 %v1092
        %v5553 = vpop.f32.mrf.mxu0
        %v5554 = vadd.f32 %v5541, %v5553
        %v5555 = vpop.f32.mrf.mxu0
        %5556 = vdwg.mxu0
        %5557 = vmatpush.bf16.msra.mxu0 %v4156
        %5558 = vmatpush.bf16.msra.mxu0 %v4152
        %5559 = vmatpush.bf16.msra.mxu0 %v4148
        %5560 = vmatpush.bf16.msra.mxu0 %v4144
        %5561 = vmatpush.bf16.msra.mxu0 %v4140
        %5562 = vmatpush.bf16.msra.mxu0 %v4136
        %5563 = vmatpush.bf16.msra.mxu0 %v4132
        %5564 = vmatpush.bf16.msra.mxu0 %v4128
        %5565 = vmatmul.bf16.gmra.mxu0 %v1093
        %v5566 = vpop.f32.mrf.mxu0
        %v5567 = vadd.f32 %v5554, %v5566
        %v5568 = vpop.f32.mrf.mxu0
        %5569 = vdwg.mxu0
        %5570 = vmatpush.bf16.msra.mxu0 %v4188
        %5571 = vmatpush.bf16.msra.mxu0 %v4184
        %5572 = vmatpush.bf16.msra.mxu0 %v4180
        %5573 = vmatpush.bf16.msra.mxu0 %v4176
        %5574 = vmatpush.bf16.msra.mxu0 %v4172
        %5575 = vmatpush.bf16.msra.mxu0 %v4168
        %5576 = vmatpush.bf16.msra.mxu0 %v4164
        %5577 = vmatpush.bf16.msra.mxu0 %v4160
        %5578 = vmatmul.bf16.gmra.mxu0 %v1094
        %v5579 = vpop.f32.mrf.mxu0
        %v5580 = vadd.f32 %v5567, %v5579
        %v5581 = vpop.f32.mrf.mxu0
        %5582 = vdwg.mxu0
        %5583 = vmatpush.bf16.msra.mxu0 %v3453
        %5584 = vmatpush.bf16.msra.mxu0 %v3449
        %5585 = vmatpush.bf16.msra.mxu0 %v3445
        %5586 = vmatpush.bf16.msra.mxu0 %v3441
        %5587 = vmatpush.bf16.msra.mxu0 %v3437
        %5588 = vmatpush.bf16.msra.mxu0 %v3433
        %5589 = vmatpush.bf16.msra.mxu0 %v3429
        %5590 = vmatpush.bf16.msra.mxu0 %v3425
        %5591 = vmatmul.bf16.gmra.mxu0 %v1071
        %v5592 = vpop.f32.mrf.mxu0
        %v5593 = vadd.f32 %v1029, %v5592
        %v5594 = vpop.f32.mrf.mxu0
        %5595 = vdwg.mxu0
        %5596 = vmatpush.bf16.msra.mxu0 %v3485
        %5597 = vmatpush.bf16.msra.mxu0 %v3481
        %5598 = vmatpush.bf16.msra.mxu0 %v3477
        %5599 = vmatpush.bf16.msra.mxu0 %v3473
        %5600 = vmatpush.bf16.msra.mxu0 %v3469
        %5601 = vmatpush.bf16.msra.mxu0 %v3465
        %5602 = vmatpush.bf16.msra.mxu0 %v3461
        %5603 = vmatpush.bf16.msra.mxu0 %v3457
        %5604 = vmatmul.bf16.gmra.mxu0 %v1072
        %v5605 = vpop.f32.mrf.mxu0
        %v5606 = vadd.f32 %v5593, %v5605
        %v5607 = vpop.f32.mrf.mxu0
        %5608 = vdwg.mxu0
        %5609 = vmatpush.bf16.msra.mxu0 %v3517
        %5610 = vmatpush.bf16.msra.mxu0 %v3513
        %5611 = vmatpush.bf16.msra.mxu0 %v3509
        %5612 = vmatpush.bf16.msra.mxu0 %v3505
        %5613 = vmatpush.bf16.msra.mxu0 %v3501
        %5614 = vmatpush.bf16.msra.mxu0 %v3497
        %5615 = vmatpush.bf16.msra.mxu0 %v3493
        %5616 = vmatpush.bf16.msra.mxu0 %v3489
        %5617 = vmatmul.bf16.gmra.mxu0 %v1073
        %v5618 = vpop.f32.mrf.mxu0
        %v5619 = vadd.f32 %v5606, %v5618
        %v5620 = vpop.f32.mrf.mxu0
        %5621 = vdwg.mxu0
        %5622 = vmatpush.bf16.msra.mxu0 %v3549
        %5623 = vmatpush.bf16.msra.mxu0 %v3545
        %5624 = vmatpush.bf16.msra.mxu0 %v3541
        %5625 = vmatpush.bf16.msra.mxu0 %v3537
        %5626 = vmatpush.bf16.msra.mxu0 %v3533
        %5627 = vmatpush.bf16.msra.mxu0 %v3529
        %5628 = vmatpush.bf16.msra.mxu0 %v3525
        %5629 = vmatpush.bf16.msra.mxu0 %v3521
        %5630 = vmatmul.bf16.gmra.mxu0 %v1074
        %v5631 = vpop.f32.mrf.mxu0
        %v5632 = vadd.f32 %v5619, %v5631
        %v5633 = vpop.f32.mrf.mxu0
        %5634 = vdwg.mxu0
        %5635 = vmatpush.bf16.msra.mxu0 %v3581
        %5636 = vmatpush.bf16.msra.mxu0 %v3577
        %5637 = vmatpush.bf16.msra.mxu0 %v3573
        %5638 = vmatpush.bf16.msra.mxu0 %v3569
        %5639 = vmatpush.bf16.msra.mxu0 %v3565
        %5640 = vmatpush.bf16.msra.mxu0 %v3561
        %5641 = vmatpush.bf16.msra.mxu0 %v3557
        %5642 = vmatpush.bf16.msra.mxu0 %v3553
        %5643 = vmatmul.bf16.gmra.mxu0 %v1075
        %v5644 = vpop.f32.mrf.mxu0
        %v5645 = vadd.f32 %v5632, %v5644
        %v5646 = vpop.f32.mrf.mxu0
        %5647 = vdwg.mxu0
        %5648 = vmatpush.bf16.msra.mxu0 %v3613
        %5649 = vmatpush.bf16.msra.mxu0 %v3609
        %5650 = vmatpush.bf16.msra.mxu0 %v3605
        %5651 = vmatpush.bf16.msra.mxu0 %v3601
        %5652 = vmatpush.bf16.msra.mxu0 %v3597
        %5653 = vmatpush.bf16.msra.mxu0 %v3593
        %5654 = vmatpush.bf16.msra.mxu0 %v3589
        %5655 = vmatpush.bf16.msra.mxu0 %v3585
        %5656 = vmatmul.bf16.gmra.mxu0 %v1076
        %v5657 = vpop.f32.mrf.mxu0
        %v5658 = vadd.f32 %v5645, %v5657
        %v5659 = vpop.f32.mrf.mxu0
        %5660 = vdwg.mxu0
        %5661 = vmatpush.bf16.msra.mxu0 %v3645
        %5662 = vmatpush.bf16.msra.mxu0 %v3641
        %5663 = vmatpush.bf16.msra.mxu0 %v3637
        %5664 = vmatpush.bf16.msra.mxu0 %v3633
        %5665 = vmatpush.bf16.msra.mxu0 %v3629
        %5666 = vmatpush.bf16.msra.mxu0 %v3625
        %5667 = vmatpush.bf16.msra.mxu0 %v3621
        %5668 = vmatpush.bf16.msra.mxu0 %v3617
        %5669 = vmatmul.bf16.gmra.mxu0 %v1077
        %v5670 = vpop.f32.mrf.mxu0
        %v5671 = vadd.f32 %v5658, %v5670
        %v5672 = vpop.f32.mrf.mxu0
        %5673 = vdwg.mxu0
        %5674 = vmatpush.bf16.msra.mxu0 %v3677
        %5675 = vmatpush.bf16.msra.mxu0 %v3673
        %5676 = vmatpush.bf16.msra.mxu0 %v3669
        %5677 = vmatpush.bf16.msra.mxu0 %v3665
        %5678 = vmatpush.bf16.msra.mxu0 %v3661
        %5679 = vmatpush.bf16.msra.mxu0 %v3657
        %5680 = vmatpush.bf16.msra.mxu0 %v3653
        %5681 = vmatpush.bf16.msra.mxu0 %v3649
        %5682 = vmatmul.bf16.gmra.mxu0 %v1078
        %v5683 = vpop.f32.mrf.mxu0
        %v5684 = vadd.f32 %v5671, %v5683
        %v5685 = vpop.f32.mrf.mxu0
        %5686 = vdwg.mxu0
        %5687 = vmatpush.bf16.msra.mxu0 %v3709
        %5688 = vmatpush.bf16.msra.mxu0 %v3705
        %5689 = vmatpush.bf16.msra.mxu0 %v3701
        %5690 = vmatpush.bf16.msra.mxu0 %v3697
        %5691 = vmatpush.bf16.msra.mxu0 %v3693
        %5692 = vmatpush.bf16.msra.mxu0 %v3689
        %5693 = vmatpush.bf16.msra.mxu0 %v3685
        %5694 = vmatpush.bf16.msra.mxu0 %v3681
        %5695 = vmatmul.bf16.gmra.mxu0 %v1079
        %v5696 = vpop.f32.mrf.mxu0
        %v5697 = vadd.f32 %v5684, %v5696
        %v5698 = vpop.f32.mrf.mxu0
        %5699 = vdwg.mxu0
        %5700 = vmatpush.bf16.msra.mxu0 %v3741
        %5701 = vmatpush.bf16.msra.mxu0 %v3737
        %5702 = vmatpush.bf16.msra.mxu0 %v3733
        %5703 = vmatpush.bf16.msra.mxu0 %v3729
        %5704 = vmatpush.bf16.msra.mxu0 %v3725
        %5705 = vmatpush.bf16.msra.mxu0 %v3721
        %5706 = vmatpush.bf16.msra.mxu0 %v3717
        %5707 = vmatpush.bf16.msra.mxu0 %v3713
        %5708 = vmatmul.bf16.gmra.mxu0 %v1080
        %v5709 = vpop.f32.mrf.mxu0
        %v5710 = vadd.f32 %v5697, %v5709
        %v5711 = vpop.f32.mrf.mxu0
        %5712 = vdwg.mxu0
        %5713 = vmatpush.bf16.msra.mxu0 %v3773
        %5714 = vmatpush.bf16.msra.mxu0 %v3769
        %5715 = vmatpush.bf16.msra.mxu0 %v3765
        %5716 = vmatpush.bf16.msra.mxu0 %v3761
        %5717 = vmatpush.bf16.msra.mxu0 %v3757
        %5718 = vmatpush.bf16.msra.mxu0 %v3753
        %5719 = vmatpush.bf16.msra.mxu0 %v3749
        %5720 = vmatpush.bf16.msra.mxu0 %v3745
        %5721 = vmatmul.bf16.gmra.mxu0 %v1081
        %v5722 = vpop.f32.mrf.mxu0
        %v5723 = vadd.f32 %v5710, %v5722
        %v5724 = vpop.f32.mrf.mxu0
        %5725 = vdwg.mxu0
        %5726 = vmatpush.bf16.msra.mxu0 %v3805
        %5727 = vmatpush.bf16.msra.mxu0 %v3801
        %5728 = vmatpush.bf16.msra.mxu0 %v3797
        %5729 = vmatpush.bf16.msra.mxu0 %v3793
        %5730 = vmatpush.bf16.msra.mxu0 %v3789
        %5731 = vmatpush.bf16.msra.mxu0 %v3785
        %5732 = vmatpush.bf16.msra.mxu0 %v3781
        %5733 = vmatpush.bf16.msra.mxu0 %v3777
        %5734 = vmatmul.bf16.gmra.mxu0 %v1082
        %v5735 = vpop.f32.mrf.mxu0
        %v5736 = vadd.f32 %v5723, %v5735
        %v5737 = vpop.f32.mrf.mxu0
        %5738 = vdwg.mxu0
        %5739 = vmatpush.bf16.msra.mxu0 %v3837
        %5740 = vmatpush.bf16.msra.mxu0 %v3833
        %5741 = vmatpush.bf16.msra.mxu0 %v3829
        %5742 = vmatpush.bf16.msra.mxu0 %v3825
        %5743 = vmatpush.bf16.msra.mxu0 %v3821
        %5744 = vmatpush.bf16.msra.mxu0 %v3817
        %5745 = vmatpush.bf16.msra.mxu0 %v3813
        %5746 = vmatpush.bf16.msra.mxu0 %v3809
        %5747 = vmatmul.bf16.gmra.mxu0 %v1083
        %v5748 = vpop.f32.mrf.mxu0
        %v5749 = vadd.f32 %v5736, %v5748
        %v5750 = vpop.f32.mrf.mxu0
        %5751 = vdwg.mxu0
        %5752 = vmatpush.bf16.msra.mxu0 %v3869
        %5753 = vmatpush.bf16.msra.mxu0 %v3865
        %5754 = vmatpush.bf16.msra.mxu0 %v3861
        %5755 = vmatpush.bf16.msra.mxu0 %v3857
        %5756 = vmatpush.bf16.msra.mxu0 %v3853
        %5757 = vmatpush.bf16.msra.mxu0 %v3849
        %5758 = vmatpush.bf16.msra.mxu0 %v3845
        %5759 = vmatpush.bf16.msra.mxu0 %v3841
        %5760 = vmatmul.bf16.gmra.mxu0 %v1084
        %v5761 = vpop.f32.mrf.mxu0
        %v5762 = vadd.f32 %v5749, %v5761
        %v5763 = vpop.f32.mrf.mxu0
        %5764 = vdwg.mxu0
        %5765 = vmatpush.bf16.msra.mxu0 %v3901
        %5766 = vmatpush.bf16.msra.mxu0 %v3897
        %5767 = vmatpush.bf16.msra.mxu0 %v3893
        %5768 = vmatpush.bf16.msra.mxu0 %v3889
        %5769 = vmatpush.bf16.msra.mxu0 %v3885
        %5770 = vmatpush.bf16.msra.mxu0 %v3881
        %5771 = vmatpush.bf16.msra.mxu0 %v3877
        %5772 = vmatpush.bf16.msra.mxu0 %v3873
        %5773 = vmatmul.bf16.gmra.mxu0 %v1085
        %v5774 = vpop.f32.mrf.mxu0
        %v5775 = vadd.f32 %v5762, %v5774
        %v5776 = vpop.f32.mrf.mxu0
        %5777 = vdwg.mxu0
        %5778 = vmatpush.bf16.msra.mxu0 %v3933
        %5779 = vmatpush.bf16.msra.mxu0 %v3929
        %5780 = vmatpush.bf16.msra.mxu0 %v3925
        %5781 = vmatpush.bf16.msra.mxu0 %v3921
        %5782 = vmatpush.bf16.msra.mxu0 %v3917
        %5783 = vmatpush.bf16.msra.mxu0 %v3913
        %5784 = vmatpush.bf16.msra.mxu0 %v3909
        %5785 = vmatpush.bf16.msra.mxu0 %v3905
        %5786 = vmatmul.bf16.gmra.mxu0 %v1086
        %v5787 = vpop.f32.mrf.mxu0
        %v5788 = vadd.f32 %v5775, %v5787
        %v5789 = vpop.f32.mrf.mxu0
        %5790 = vdwg.mxu0
        %5791 = vmatpush.bf16.msra.mxu0 %v3965
        %5792 = vmatpush.bf16.msra.mxu0 %v3961
        %5793 = vmatpush.bf16.msra.mxu0 %v3957
        %5794 = vmatpush.bf16.msra.mxu0 %v3953
        %5795 = vmatpush.bf16.msra.mxu0 %v3949
        %5796 = vmatpush.bf16.msra.mxu0 %v3945
        %5797 = vmatpush.bf16.msra.mxu0 %v3941
        %5798 = vmatpush.bf16.msra.mxu0 %v3937
        %5799 = vmatmul.bf16.gmra.mxu0 %v1087
        %v5800 = vpop.f32.mrf.mxu0
        %v5801 = vadd.f32 %v5788, %v5800
        %v5802 = vpop.f32.mrf.mxu0
        %5803 = vdwg.mxu0
        %5804 = vmatpush.bf16.msra.mxu0 %v3997
        %5805 = vmatpush.bf16.msra.mxu0 %v3993
        %5806 = vmatpush.bf16.msra.mxu0 %v3989
        %5807 = vmatpush.bf16.msra.mxu0 %v3985
        %5808 = vmatpush.bf16.msra.mxu0 %v3981
        %5809 = vmatpush.bf16.msra.mxu0 %v3977
        %5810 = vmatpush.bf16.msra.mxu0 %v3973
        %5811 = vmatpush.bf16.msra.mxu0 %v3969
        %5812 = vmatmul.bf16.gmra.mxu0 %v1088
        %v5813 = vpop.f32.mrf.mxu0
        %v5814 = vadd.f32 %v5801, %v5813
        %v5815 = vpop.f32.mrf.mxu0
        %5816 = vdwg.mxu0
        %5817 = vmatpush.bf16.msra.mxu0 %v4029
        %5818 = vmatpush.bf16.msra.mxu0 %v4025
        %5819 = vmatpush.bf16.msra.mxu0 %v4021
        %5820 = vmatpush.bf16.msra.mxu0 %v4017
        %5821 = vmatpush.bf16.msra.mxu0 %v4013
        %5822 = vmatpush.bf16.msra.mxu0 %v4009
        %5823 = vmatpush.bf16.msra.mxu0 %v4005
        %5824 = vmatpush.bf16.msra.mxu0 %v4001
        %5825 = vmatmul.bf16.gmra.mxu0 %v1089
        %v5826 = vpop.f32.mrf.mxu0
        %v5827 = vadd.f32 %v5814, %v5826
        %v5828 = vpop.f32.mrf.mxu0
        %5829 = vdwg.mxu0
        %5830 = vmatpush.bf16.msra.mxu0 %v4061
        %5831 = vmatpush.bf16.msra.mxu0 %v4057
        %5832 = vmatpush.bf16.msra.mxu0 %v4053
        %5833 = vmatpush.bf16.msra.mxu0 %v4049
        %5834 = vmatpush.bf16.msra.mxu0 %v4045
        %5835 = vmatpush.bf16.msra.mxu0 %v4041
        %5836 = vmatpush.bf16.msra.mxu0 %v4037
        %5837 = vmatpush.bf16.msra.mxu0 %v4033
        %5838 = vmatmul.bf16.gmra.mxu0 %v1090
        %v5839 = vpop.f32.mrf.mxu0
        %v5840 = vadd.f32 %v5827, %v5839
        %v5841 = vpop.f32.mrf.mxu0
        %5842 = vdwg.mxu0
        %5843 = vmatpush.bf16.msra.mxu0 %v4093
        %5844 = vmatpush.bf16.msra.mxu0 %v4089
        %5845 = vmatpush.bf16.msra.mxu0 %v4085
        %5846 = vmatpush.bf16.msra.mxu0 %v4081
        %5847 = vmatpush.bf16.msra.mxu0 %v4077
        %5848 = vmatpush.bf16.msra.mxu0 %v4073
        %5849 = vmatpush.bf16.msra.mxu0 %v4069
        %5850 = vmatpush.bf16.msra.mxu0 %v4065
        %5851 = vmatmul.bf16.gmra.mxu0 %v1091
        %v5852 = vpop.f32.mrf.mxu0
        %v5853 = vadd.f32 %v5840, %v5852
        %v5854 = vpop.f32.mrf.mxu0
        %5855 = vdwg.mxu0
        %5856 = vmatpush.bf16.msra.mxu0 %v4125
        %5857 = vmatpush.bf16.msra.mxu0 %v4121
        %5858 = vmatpush.bf16.msra.mxu0 %v4117
        %5859 = vmatpush.bf16.msra.mxu0 %v4113
        %5860 = vmatpush.bf16.msra.mxu0 %v4109
        %5861 = vmatpush.bf16.msra.mxu0 %v4105
        %5862 = vmatpush.bf16.msra.mxu0 %v4101
        %5863 = vmatpush.bf16.msra.mxu0 %v4097
        %5864 = vmatmul.bf16.gmra.mxu0 %v1092
        %v5865 = vpop.f32.mrf.mxu0
        %v5866 = vadd.f32 %v5853, %v5865
        %v5867 = vpop.f32.mrf.mxu0
        %5868 = vdwg.mxu0
        %5869 = vmatpush.bf16.msra.mxu0 %v4157
        %5870 = vmatpush.bf16.msra.mxu0 %v4153
        %5871 = vmatpush.bf16.msra.mxu0 %v4149
        %5872 = vmatpush.bf16.msra.mxu0 %v4145
        %5873 = vmatpush.bf16.msra.mxu0 %v4141
        %5874 = vmatpush.bf16.msra.mxu0 %v4137
        %5875 = vmatpush.bf16.msra.mxu0 %v4133
        %5876 = vmatpush.bf16.msra.mxu0 %v4129
        %5877 = vmatmul.bf16.gmra.mxu0 %v1093
        %v5878 = vpop.f32.mrf.mxu0
        %v5879 = vadd.f32 %v5866, %v5878
        %v5880 = vpop.f32.mrf.mxu0
        %5881 = vdwg.mxu0
        %5882 = vmatpush.bf16.msra.mxu0 %v4189
        %5883 = vmatpush.bf16.msra.mxu0 %v4185
        %5884 = vmatpush.bf16.msra.mxu0 %v4181
        %5885 = vmatpush.bf16.msra.mxu0 %v4177
        %5886 = vmatpush.bf16.msra.mxu0 %v4173
        %5887 = vmatpush.bf16.msra.mxu0 %v4169
        %5888 = vmatpush.bf16.msra.mxu0 %v4165
        %5889 = vmatpush.bf16.msra.mxu0 %v4161
        %5890 = vmatmul.bf16.gmra.mxu0 %v1094
        %v5891 = vpop.f32.mrf.mxu0
        %v5892 = vadd.f32 %v5879, %v5891
        %v5893 = vpop.f32.mrf.mxu0
        %5894 = vdwg.mxu0
        %5895 = vmatpush.bf16.msra.mxu0 %v3454
        %5896 = vmatpush.bf16.msra.mxu0 %v3450
        %5897 = vmatpush.bf16.msra.mxu0 %v3446
        %5898 = vmatpush.bf16.msra.mxu0 %v3442
        %5899 = vmatpush.bf16.msra.mxu0 %v3438
        %5900 = vmatpush.bf16.msra.mxu0 %v3434
        %5901 = vmatpush.bf16.msra.mxu0 %v3430
        %5902 = vmatpush.bf16.msra.mxu0 %v3426
        %5903 = vmatmul.bf16.gmra.mxu0 %v1071
        %v5904 = vpop.f32.mrf.mxu0
        %v5905 = vadd.f32 %v1030, %v5904
        %v5906 = vpop.f32.mrf.mxu0
        %5907 = vdwg.mxu0
        %5908 = vmatpush.bf16.msra.mxu0 %v3486
        %5909 = vmatpush.bf16.msra.mxu0 %v3482
        %5910 = vmatpush.bf16.msra.mxu0 %v3478
        %5911 = vmatpush.bf16.msra.mxu0 %v3474
        %5912 = vmatpush.bf16.msra.mxu0 %v3470
        %5913 = vmatpush.bf16.msra.mxu0 %v3466
        %5914 = vmatpush.bf16.msra.mxu0 %v3462
        %5915 = vmatpush.bf16.msra.mxu0 %v3458
        %5916 = vmatmul.bf16.gmra.mxu0 %v1072
        %v5917 = vpop.f32.mrf.mxu0
        %v5918 = vadd.f32 %v5905, %v5917
        %v5919 = vpop.f32.mrf.mxu0
        %5920 = vdwg.mxu0
        %5921 = vmatpush.bf16.msra.mxu0 %v3518
        %5922 = vmatpush.bf16.msra.mxu0 %v3514
        %5923 = vmatpush.bf16.msra.mxu0 %v3510
        %5924 = vmatpush.bf16.msra.mxu0 %v3506
        %5925 = vmatpush.bf16.msra.mxu0 %v3502
        %5926 = vmatpush.bf16.msra.mxu0 %v3498
        %5927 = vmatpush.bf16.msra.mxu0 %v3494
        %5928 = vmatpush.bf16.msra.mxu0 %v3490
        %5929 = vmatmul.bf16.gmra.mxu0 %v1073
        %v5930 = vpop.f32.mrf.mxu0
        %v5931 = vadd.f32 %v5918, %v5930
        %v5932 = vpop.f32.mrf.mxu0
        %5933 = vdwg.mxu0
        %5934 = vmatpush.bf16.msra.mxu0 %v3550
        %5935 = vmatpush.bf16.msra.mxu0 %v3546
        %5936 = vmatpush.bf16.msra.mxu0 %v3542
        %5937 = vmatpush.bf16.msra.mxu0 %v3538
        %5938 = vmatpush.bf16.msra.mxu0 %v3534
        %5939 = vmatpush.bf16.msra.mxu0 %v3530
        %5940 = vmatpush.bf16.msra.mxu0 %v3526
        %5941 = vmatpush.bf16.msra.mxu0 %v3522
        %5942 = vmatmul.bf16.gmra.mxu0 %v1074
        %v5943 = vpop.f32.mrf.mxu0
        %v5944 = vadd.f32 %v5931, %v5943
        %v5945 = vpop.f32.mrf.mxu0
        %5946 = vdwg.mxu0
        %5947 = vmatpush.bf16.msra.mxu0 %v3582
        %5948 = vmatpush.bf16.msra.mxu0 %v3578
        %5949 = vmatpush.bf16.msra.mxu0 %v3574
        %5950 = vmatpush.bf16.msra.mxu0 %v3570
        %5951 = vmatpush.bf16.msra.mxu0 %v3566
        %5952 = vmatpush.bf16.msra.mxu0 %v3562
        %5953 = vmatpush.bf16.msra.mxu0 %v3558
        %5954 = vmatpush.bf16.msra.mxu0 %v3554
        %5955 = vmatmul.bf16.gmra.mxu0 %v1075
        %v5956 = vpop.f32.mrf.mxu0
        %v5957 = vadd.f32 %v5944, %v5956
        %v5958 = vpop.f32.mrf.mxu0
        %5959 = vdwg.mxu0
        %5960 = vmatpush.bf16.msra.mxu0 %v3614
        %5961 = vmatpush.bf16.msra.mxu0 %v3610
        %5962 = vmatpush.bf16.msra.mxu0 %v3606
        %5963 = vmatpush.bf16.msra.mxu0 %v3602
        %5964 = vmatpush.bf16.msra.mxu0 %v3598
        %5965 = vmatpush.bf16.msra.mxu0 %v3594
        %5966 = vmatpush.bf16.msra.mxu0 %v3590
        %5967 = vmatpush.bf16.msra.mxu0 %v3586
        %5968 = vmatmul.bf16.gmra.mxu0 %v1076
        %v5969 = vpop.f32.mrf.mxu0
        %v5970 = vadd.f32 %v5957, %v5969
        %v5971 = vpop.f32.mrf.mxu0
        %5972 = vdwg.mxu0
        %5973 = vmatpush.bf16.msra.mxu0 %v3646
        %5974 = vmatpush.bf16.msra.mxu0 %v3642
        %5975 = vmatpush.bf16.msra.mxu0 %v3638
        %5976 = vmatpush.bf16.msra.mxu0 %v3634
        %5977 = vmatpush.bf16.msra.mxu0 %v3630
        %5978 = vmatpush.bf16.msra.mxu0 %v3626
        %5979 = vmatpush.bf16.msra.mxu0 %v3622
        %5980 = vmatpush.bf16.msra.mxu0 %v3618
        %5981 = vmatmul.bf16.gmra.mxu0 %v1077
        %v5982 = vpop.f32.mrf.mxu0
        %v5983 = vadd.f32 %v5970, %v5982
        %v5984 = vpop.f32.mrf.mxu0
        %5985 = vdwg.mxu0
        %5986 = vmatpush.bf16.msra.mxu0 %v3678
        %5987 = vmatpush.bf16.msra.mxu0 %v3674
        %5988 = vmatpush.bf16.msra.mxu0 %v3670
        %5989 = vmatpush.bf16.msra.mxu0 %v3666
        %5990 = vmatpush.bf16.msra.mxu0 %v3662
        %5991 = vmatpush.bf16.msra.mxu0 %v3658
        %5992 = vmatpush.bf16.msra.mxu0 %v3654
        %5993 = vmatpush.bf16.msra.mxu0 %v3650
        %5994 = vmatmul.bf16.gmra.mxu0 %v1078
        %v5995 = vpop.f32.mrf.mxu0
        %v5996 = vadd.f32 %v5983, %v5995
        %v5997 = vpop.f32.mrf.mxu0
        %5998 = vdwg.mxu0
        %5999 = vmatpush.bf16.msra.mxu0 %v3710
        %6000 = vmatpush.bf16.msra.mxu0 %v3706
        %6001 = vmatpush.bf16.msra.mxu0 %v3702
        %6002 = vmatpush.bf16.msra.mxu0 %v3698
        %6003 = vmatpush.bf16.msra.mxu0 %v3694
        %6004 = vmatpush.bf16.msra.mxu0 %v3690
        %6005 = vmatpush.bf16.msra.mxu0 %v3686
        %6006 = vmatpush.bf16.msra.mxu0 %v3682
        %6007 = vmatmul.bf16.gmra.mxu0 %v1079
        %v6008 = vpop.f32.mrf.mxu0
        %v6009 = vadd.f32 %v5996, %v6008
        %v6010 = vpop.f32.mrf.mxu0
        %6011 = vdwg.mxu0
        %6012 = vmatpush.bf16.msra.mxu0 %v3742
        %6013 = vmatpush.bf16.msra.mxu0 %v3738
        %6014 = vmatpush.bf16.msra.mxu0 %v3734
        %6015 = vmatpush.bf16.msra.mxu0 %v3730
        %6016 = vmatpush.bf16.msra.mxu0 %v3726
        %6017 = vmatpush.bf16.msra.mxu0 %v3722
        %6018 = vmatpush.bf16.msra.mxu0 %v3718
        %6019 = vmatpush.bf16.msra.mxu0 %v3714
        %6020 = vmatmul.bf16.gmra.mxu0 %v1080
        %v6021 = vpop.f32.mrf.mxu0
        %v6022 = vadd.f32 %v6009, %v6021
        %v6023 = vpop.f32.mrf.mxu0
        %6024 = vdwg.mxu0
        %6025 = vmatpush.bf16.msra.mxu0 %v3774
        %6026 = vmatpush.bf16.msra.mxu0 %v3770
        %6027 = vmatpush.bf16.msra.mxu0 %v3766
        %6028 = vmatpush.bf16.msra.mxu0 %v3762
        %6029 = vmatpush.bf16.msra.mxu0 %v3758
        %6030 = vmatpush.bf16.msra.mxu0 %v3754
        %6031 = vmatpush.bf16.msra.mxu0 %v3750
        %6032 = vmatpush.bf16.msra.mxu0 %v3746
        %6033 = vmatmul.bf16.gmra.mxu0 %v1081
        %v6034 = vpop.f32.mrf.mxu0
        %v6035 = vadd.f32 %v6022, %v6034
        %v6036 = vpop.f32.mrf.mxu0
        %6037 = vdwg.mxu0
        %6038 = vmatpush.bf16.msra.mxu0 %v3806
        %6039 = vmatpush.bf16.msra.mxu0 %v3802
        %6040 = vmatpush.bf16.msra.mxu0 %v3798
        %6041 = vmatpush.bf16.msra.mxu0 %v3794
        %6042 = vmatpush.bf16.msra.mxu0 %v3790
        %6043 = vmatpush.bf16.msra.mxu0 %v3786
        %6044 = vmatpush.bf16.msra.mxu0 %v3782
        %6045 = vmatpush.bf16.msra.mxu0 %v3778
        %6046 = vmatmul.bf16.gmra.mxu0 %v1082
        %v6047 = vpop.f32.mrf.mxu0
        %v6048 = vadd.f32 %v6035, %v6047
        %v6049 = vpop.f32.mrf.mxu0
        %6050 = vdwg.mxu0
        %6051 = vmatpush.bf16.msra.mxu0 %v3838
        %6052 = vmatpush.bf16.msra.mxu0 %v3834
        %6053 = vmatpush.bf16.msra.mxu0 %v3830
        %6054 = vmatpush.bf16.msra.mxu0 %v3826
        %6055 = vmatpush.bf16.msra.mxu0 %v3822
        %6056 = vmatpush.bf16.msra.mxu0 %v3818
        %6057 = vmatpush.bf16.msra.mxu0 %v3814
        %6058 = vmatpush.bf16.msra.mxu0 %v3810
        %6059 = vmatmul.bf16.gmra.mxu0 %v1083
        %v6060 = vpop.f32.mrf.mxu0
        %v6061 = vadd.f32 %v6048, %v6060
        %v6062 = vpop.f32.mrf.mxu0
        %6063 = vdwg.mxu0
        %6064 = vmatpush.bf16.msra.mxu0 %v3870
        %6065 = vmatpush.bf16.msra.mxu0 %v3866
        %6066 = vmatpush.bf16.msra.mxu0 %v3862
        %6067 = vmatpush.bf16.msra.mxu0 %v3858
        %6068 = vmatpush.bf16.msra.mxu0 %v3854
        %6069 = vmatpush.bf16.msra.mxu0 %v3850
        %6070 = vmatpush.bf16.msra.mxu0 %v3846
        %6071 = vmatpush.bf16.msra.mxu0 %v3842
        %6072 = vmatmul.bf16.gmra.mxu0 %v1084
        %v6073 = vpop.f32.mrf.mxu0
        %v6074 = vadd.f32 %v6061, %v6073
        %v6075 = vpop.f32.mrf.mxu0
        %6076 = vdwg.mxu0
        %6077 = vmatpush.bf16.msra.mxu0 %v3902
        %6078 = vmatpush.bf16.msra.mxu0 %v3898
        %6079 = vmatpush.bf16.msra.mxu0 %v3894
        %6080 = vmatpush.bf16.msra.mxu0 %v3890
        %6081 = vmatpush.bf16.msra.mxu0 %v3886
        %6082 = vmatpush.bf16.msra.mxu0 %v3882
        %6083 = vmatpush.bf16.msra.mxu0 %v3878
        %6084 = vmatpush.bf16.msra.mxu0 %v3874
        %6085 = vmatmul.bf16.gmra.mxu0 %v1085
        %v6086 = vpop.f32.mrf.mxu0
        %v6087 = vadd.f32 %v6074, %v6086
        %v6088 = vpop.f32.mrf.mxu0
        %6089 = vdwg.mxu0
        %6090 = vmatpush.bf16.msra.mxu0 %v3934
        %6091 = vmatpush.bf16.msra.mxu0 %v3930
        %6092 = vmatpush.bf16.msra.mxu0 %v3926
        %6093 = vmatpush.bf16.msra.mxu0 %v3922
        %6094 = vmatpush.bf16.msra.mxu0 %v3918
        %6095 = vmatpush.bf16.msra.mxu0 %v3914
        %6096 = vmatpush.bf16.msra.mxu0 %v3910
        %6097 = vmatpush.bf16.msra.mxu0 %v3906
        %6098 = vmatmul.bf16.gmra.mxu0 %v1086
        %v6099 = vpop.f32.mrf.mxu0
        %v6100 = vadd.f32 %v6087, %v6099
        %v6101 = vpop.f32.mrf.mxu0
        %6102 = vdwg.mxu0
        %6103 = vmatpush.bf16.msra.mxu0 %v3966
        %6104 = vmatpush.bf16.msra.mxu0 %v3962
        %6105 = vmatpush.bf16.msra.mxu0 %v3958
        %6106 = vmatpush.bf16.msra.mxu0 %v3954
        %6107 = vmatpush.bf16.msra.mxu0 %v3950
        %6108 = vmatpush.bf16.msra.mxu0 %v3946
        %6109 = vmatpush.bf16.msra.mxu0 %v3942
        %6110 = vmatpush.bf16.msra.mxu0 %v3938
        %6111 = vmatmul.bf16.gmra.mxu0 %v1087
        %v6112 = vpop.f32.mrf.mxu0
        %v6113 = vadd.f32 %v6100, %v6112
        %v6114 = vpop.f32.mrf.mxu0
        %6115 = vdwg.mxu0
        %6116 = vmatpush.bf16.msra.mxu0 %v3998
        %6117 = vmatpush.bf16.msra.mxu0 %v3994
        %6118 = vmatpush.bf16.msra.mxu0 %v3990
        %6119 = vmatpush.bf16.msra.mxu0 %v3986
        %6120 = vmatpush.bf16.msra.mxu0 %v3982
        %6121 = vmatpush.bf16.msra.mxu0 %v3978
        %6122 = vmatpush.bf16.msra.mxu0 %v3974
        %6123 = vmatpush.bf16.msra.mxu0 %v3970
        %6124 = vmatmul.bf16.gmra.mxu0 %v1088
        %v6125 = vpop.f32.mrf.mxu0
        %v6126 = vadd.f32 %v6113, %v6125
        %v6127 = vpop.f32.mrf.mxu0
        %6128 = vdwg.mxu0
        %6129 = vmatpush.bf16.msra.mxu0 %v4030
        %6130 = vmatpush.bf16.msra.mxu0 %v4026
        %6131 = vmatpush.bf16.msra.mxu0 %v4022
        %6132 = vmatpush.bf16.msra.mxu0 %v4018
        %6133 = vmatpush.bf16.msra.mxu0 %v4014
        %6134 = vmatpush.bf16.msra.mxu0 %v4010
        %6135 = vmatpush.bf16.msra.mxu0 %v4006
        %6136 = vmatpush.bf16.msra.mxu0 %v4002
        %6137 = vmatmul.bf16.gmra.mxu0 %v1089
        %v6138 = vpop.f32.mrf.mxu0
        %v6139 = vadd.f32 %v6126, %v6138
        %v6140 = vpop.f32.mrf.mxu0
        %6141 = vdwg.mxu0
        %6142 = vmatpush.bf16.msra.mxu0 %v4062
        %6143 = vmatpush.bf16.msra.mxu0 %v4058
        %6144 = vmatpush.bf16.msra.mxu0 %v4054
        %6145 = vmatpush.bf16.msra.mxu0 %v4050
        %6146 = vmatpush.bf16.msra.mxu0 %v4046
        %6147 = vmatpush.bf16.msra.mxu0 %v4042
        %6148 = vmatpush.bf16.msra.mxu0 %v4038
        %6149 = vmatpush.bf16.msra.mxu0 %v4034
        %6150 = vmatmul.bf16.gmra.mxu0 %v1090
        %v6151 = vpop.f32.mrf.mxu0
        %v6152 = vadd.f32 %v6139, %v6151
        %v6153 = vpop.f32.mrf.mxu0
        %6154 = vdwg.mxu0
        %6155 = vmatpush.bf16.msra.mxu0 %v4094
        %6156 = vmatpush.bf16.msra.mxu0 %v4090
        %6157 = vmatpush.bf16.msra.mxu0 %v4086
        %6158 = vmatpush.bf16.msra.mxu0 %v4082
        %6159 = vmatpush.bf16.msra.mxu0 %v4078
        %6160 = vmatpush.bf16.msra.mxu0 %v4074
        %6161 = vmatpush.bf16.msra.mxu0 %v4070
        %6162 = vmatpush.bf16.msra.mxu0 %v4066
        %6163 = vmatmul.bf16.gmra.mxu0 %v1091
        %v6164 = vpop.f32.mrf.mxu0
        %v6165 = vadd.f32 %v6152, %v6164
        %v6166 = vpop.f32.mrf.mxu0
        %6167 = vdwg.mxu0
        %6168 = vmatpush.bf16.msra.mxu0 %v4126
        %6169 = vmatpush.bf16.msra.mxu0 %v4122
        %6170 = vmatpush.bf16.msra.mxu0 %v4118
        %6171 = vmatpush.bf16.msra.mxu0 %v4114
        %6172 = vmatpush.bf16.msra.mxu0 %v4110
        %6173 = vmatpush.bf16.msra.mxu0 %v4106
        %6174 = vmatpush.bf16.msra.mxu0 %v4102
        %6175 = vmatpush.bf16.msra.mxu0 %v4098
        %6176 = vmatmul.bf16.gmra.mxu0 %v1092
        %v6177 = vpop.f32.mrf.mxu0
        %v6178 = vadd.f32 %v6165, %v6177
        %v6179 = vpop.f32.mrf.mxu0
        %6180 = vdwg.mxu0
        %6181 = vmatpush.bf16.msra.mxu0 %v4158
        %6182 = vmatpush.bf16.msra.mxu0 %v4154
        %6183 = vmatpush.bf16.msra.mxu0 %v4150
        %6184 = vmatpush.bf16.msra.mxu0 %v4146
        %6185 = vmatpush.bf16.msra.mxu0 %v4142
        %6186 = vmatpush.bf16.msra.mxu0 %v4138
        %6187 = vmatpush.bf16.msra.mxu0 %v4134
        %6188 = vmatpush.bf16.msra.mxu0 %v4130
        %6189 = vmatmul.bf16.gmra.mxu0 %v1093
        %v6190 = vpop.f32.mrf.mxu0
        %v6191 = vadd.f32 %v6178, %v6190
        %v6192 = vpop.f32.mrf.mxu0
        %6193 = vdwg.mxu0
        %6194 = vmatpush.bf16.msra.mxu0 %v4190
        %6195 = vmatpush.bf16.msra.mxu0 %v4186
        %6196 = vmatpush.bf16.msra.mxu0 %v4182
        %6197 = vmatpush.bf16.msra.mxu0 %v4178
        %6198 = vmatpush.bf16.msra.mxu0 %v4174
        %6199 = vmatpush.bf16.msra.mxu0 %v4170
        %6200 = vmatpush.bf16.msra.mxu0 %v4166
        %6201 = vmatpush.bf16.msra.mxu0 %v4162
        %6202 = vmatmul.bf16.gmra.mxu0 %v1094
        %v6203 = vpop.f32.mrf.mxu0
        %v6204 = vadd.f32 %v6191, %v6203
        %v6205 = vpop.f32.mrf.mxu0
        %6206 = vdwg.mxu0
        %6207 = vst [vmem:[%s241] sm:$0xff] %v5268
        %6208 = vst [vmem:[%s241 + $0x8] sm:$0xff] %v5580
        %6209 = vst [vmem:[%s241 + $0x10] sm:$0xff] %v5892
        %6210 = vst [vmem:[%s241 + $0x18] sm:$0xff] %v6204
        %s6211 = sand.u32 %s102, 1
        %s6212 = scalar_lea.sflag [#allocation4], %s6211
        %s6213 = sand.u32 %s102, 1
        %s6214 = smul.addr %s6213, 32
        %s6215 = scalar_lea.vmem [#allocation8], %s6214
        // Predicated region
        $region45: #{tpu_custom_call.1} parent=31 // pred_check
          %p6216 = pneg %p112
        $region46: #{tpu_custom_call.1} parent=31 // pred_check_branch
          %6218 = sbr.rel (%p6216) target = $region48
        $region47: #{tpu_custom_call.1} parent=31 // pred_region
          %s6219 = smul.u32 4, %s21
          %6221 = vsyncadd %s6212, 0
          %s6222 = smul.addr %s6219, 8
          %s6223 = scalar_lea.hbm %s3, %s6222
          %s6225 = sshll.u32 %s6215, 4
          %s6226 = int_to_ptr.vmem [resolvable:$true] %s6225
          %s6227 = sshll.u32 %s6223, 4
          %s6228 = int_to_ptr.hbm [resolvable:$true] %s6227
          %6230 = dma.vmem_to_hbm [thread:$0]  %s6226, 512, %s6228, %s6212
        $region48: #{tpu_custom_call.1} parent=31 // pred_fallthru
          _
      $region32: #{tpu_custom_call.1} parent=5 // pred_fallthru
        _
      %p6231 = scmp.le.s32.totalorder 2, %s16
      // Predicated region
      $region49: #{tpu_custom_call.1} parent=5 // pred_check
        %p6232 = pneg %p6231
      $region50: #{tpu_custom_call.1} parent=5 // pred_check_branch
        %6234 = sbr.rel (%p6232) target = $region52
      $region51: #{tpu_custom_call.1} parent=5 // pred_region
        %s6235 = ssub.s32 %s16, 2
        // Predicated region
        $region53: #{tpu_custom_call.1} parent=51 // pred_check
          %p6236 = pneg %p118
        $region54: #{tpu_custom_call.1} parent=51 // pred_check_branch
          %6238 = sbr.rel (%p6236) target = $region56
        $region55: #{tpu_custom_call.1} parent=51 // pred_region
          %s6239 = sand.u32 %s103, 1
          %s6240 = scalar_lea.sflag [#allocation4], %s6239
          %s6241 = sand.u32 %s103, 1
          %s6242 = smul.addr %s6241, 32
          %s6243 = scalar_lea.vmem [#allocation8], %s6242
          %6245 = dma.done %s6240, 512
        $region56: #{tpu_custom_call.1} parent=51 // pred_fallthru
          _
      $region52: #{tpu_custom_call.1} parent=5 // pred_fallthru
        _
    $region6: #{tpu_custom_call.1} parent=1 // loop_footer
      %s20 = sadd.s32 1, %s16
    $region7: #{tpu_custom_call.1} parent=1 // loop_footer_branch
      %15 = sbr.rel target = $region3
    $region8: #{tpu_custom_call.1} parent=1 // loop_exit
      _
    %6246 = vsyncpa [#allocation3], 1
    %s6247 = scalar_lea.sflag [#allocation3], 1
    %6248 = vsyncpa %s6247, 1
    %6249 = vsyncpa [#allocation6], 1
    %s6250 = scalar_lea.sflag [#allocation6], 1
    %6251 = vsyncpa %s6250, 1
    %6252 = vsyncpa [#allocation4], 1
    %s6253 = scalar_lea.sflag [#allocation4], 1
    %6254 = vsyncpa %s6253, 1

</llo_original>
